<compile_context>
chip_gen: v5e
topology: v5e:2x2
jax: 0.10.0
libtpu: 0.0.40
codegen_flags: <defaults>
</compile_context>

<pallas_src>
import jax
import jax.numpy as jnp
import numpy as np
from jax import lax
from jax.experimental import pallas as pl
from jax.experimental.pallas import tpu as pltpu

EPS = 1e-5
_PAD_L = 8   # sublane-aligned left pad of the interior inside the halo scratch


# ---------------------------------------------------------------------------
# Pallas kernel: one grid step == one block of B images.
# ---------------------------------------------------------------------------
def _complex_upsample_kernel(x_ref, w3_ref, w5_ref,
                             pw3_ref, pb3_ref, pw5_ref, pb5_ref,
                             out_ref, xp_ref):
    B, H, W, C = x_ref.shape
    Co = pw3_ref.shape[1]
    Wp = xp_ref.shape[2]
    c0 = _PAD_L - 2                      # leftmost column any 5x5 tap reads

    # --- halo-only zeroing + aligned interior copy --------------------------
    # Only the strips the taps can actually read are zeroed (top/bottom 2 rows
    # full width, plus 2-wide left/right column strips over the interior rows);
    # the interior is fully overwritten right after.  Re-done every step so the
    # kernel stays correct when the grid axis is sharded across TensorCores.
    zrow = jnp.zeros((B, 2, Wp, C), jnp.float32)
    xp_ref[:, 0:2, :, :] = zrow
    xp_ref[:, H + 2:H + 4, :, :] = zrow
    zcol = jnp.zeros((B, H, 2, C), jnp.float32)
    xp_ref[:, 2:H + 2, c0:_PAD_L, :] = zcol
    xp_ref[:, 2:H + 2, _PAD_L + W:_PAD_L + W + 2, :] = zcol
    # interior starts at sublane offset 8 -> unmasked dense stores.
    xp_ref[:, 2:H + 2, _PAD_L:_PAD_L + W, :] = x_ref[...]

    # --- fused 3x3 + 5x5 depthwise (grouped) convs ---------------------------
    # One column-shifted, full-height slab load per dj (5 loads total); the 5
    # row shifts per dj are free major-axis slices of the loaded slab.  Weights
    # arrive pre-broadcast as (K*K, W, C), so the multiply needs no broadcast op.
    acc3 = jnp.zeros((B, H, W, C), jnp.float32)
    acc5 = jnp.zeros((B, H, W, C), jnp.float32)
    for dj in range(5):
        slab = xp_ref[:, :, c0 + dj:c0 + dj + W, :]        # (B, H+4, W, C)
        for di in range(5):
            tap = slab[:, di:di + H, :, :]
            acc5 = acc5 + tap * w5_ref[di * 5 + dj]
            if 1 <= di <= 3 and 1 <= dj <= 3:
                acc3 = acc3 + tap * w3_ref[(di - 1) * 3 + (dj - 1)]

    # --- pointwise 1x1 conv (+ all folded BN biases) + ReLU -> MXU matmul ---
    # Depthwise-BN biases are pre-folded into pb3/pb5 in the wrapper, so the
    # accumulators feed the matmul directly (no extra (B,H,W,C) add passes).
    m = B * H * W
    y3 = jnp.dot(acc3.reshape(m, C), pw3_ref[...],
                 preferred_element_type=jnp.float32) + pb3_ref[...]
    y5 = jnp.dot(acc5.reshape(m, C), pw5_ref[...],
                 preferred_element_type=jnp.float32) + pb5_ref[...]
    z = (jnp.maximum(y3, 0.0) + jnp.maximum(y5, 0.0)).reshape(B, H, W, Co)

    # --- bilinear x2, align_corners=False (half-pixel, edge clamp) ----------
    #   out[2j]   = 0.75*z[j] + 0.25*z[j-1]   (row/col 0 clamps to index 0)
    #   out[2j+1] = 0.75*z[j] + 0.25*z[j+1]   (last row/col clamps to last)
    # Row neighbours come from shifted slices (no concat copies); each row/col
    # parity slab is computed and stored immediately to keep liveness low.
    col = lax.broadcasted_iota(jnp.int32, (W, 1), 0)
    first_col = col == 0
    last_col = col == W - 1

    def emit_rows(r, row_par, h0):
        # r: (B, h, W, Co) = per-output-row values before column upsampling.
        h = r.shape[1]
        left = jnp.where(first_col, r, pltpu.roll(r, shift=1, axis=2))
        right = jnp.where(last_col, r, pltpu.roll(r, shift=W - 1, axis=2))
        out_ref[:, h0:h0 + h, row_par, :, 0:Co] = \
            (0.75 * r + 0.25 * left).astype(out_ref.dtype)
        out_ref[:, h0:h0 + h, row_par, :, Co:2 * Co] = \
            (0.75 * r + 0.25 * right).astype(out_ref.dtype)

    emit_rows(z[:, :1], 0, 0)                                  # even row 0
    if H > 1:
        emit_rows(0.75 * z[:, 1:] + 0.25 * z[:, :-1], 0, 1)    # even rows 1..H-1
        emit_rows(0.75 * z[:, :-1] + 0.25 * z[:, 1:], 1, 0)    # odd rows 0..H-2
    emit_rows(z[:, -1:], 1, H - 1)                             # odd row H-1


# ---------------------------------------------------------------------------
# Wrapper
# ---------------------------------------------------------------------------
def _pick_block_batch(N, H, W, target_m=1024, num_tensorcores=1):
    """Images per grid step: grow the pointwise-matmul M = B*H*W toward
    `target_m` (MXU fill / ~0.35us-per-step amortization).  The 'keep a >=2
    grid' rule is only enforced when there is more than one TensorCore to
    shard across (v7x); on single-TC v5e/v6e a grid of 1 is fine."""
    best = 1
    for B in range(1, N + 1):
        if N % B:
            continue
        if num_tensorcores > 1 and N // B < num_tensorcores:
            break
        best = B
        if B * H * W >= target_m:
            break
    return best


def complex_upsample_pallas(x, folded_params, *, block_batch=None,
                            num_tensorcores=1, out_dtype=jnp.float32):
    """x: (N, H, W, C) float32 NHWC. Returns (N, 2H, 2W, Co) in `out_dtype`."""
    N, H, W, C = x.shape
    w3, w5, pw3, pb3, pw5, pb5 = folded_params
    Co = pw3.shape[1]

    B = block_batch or _pick_block_batch(N, H, W,
                                         num_tensorcores=num_tensorcores)
    assert N % B == 0

    # Pre-broadcast depthwise tap weights across the W (sublane) axis once in
    # the wrapper -> the per-tap weight operand arrives already replicated and
    # the kernel emits zero per-tap broadcast ops.  Resident across the grid.
    w3b = jnp.broadcast_to(w3[:, None, :], (9, W, C))
    w5b = jnp.broadcast_to(w5[:, None, :], (25, W, C))

    # Padded-scratch width: interior at sublane offset 8, total a multiple of 8.
    Wp = _PAD_L + ((W + 2 + 7) // 8) * 8

    # VMEM budget for this blocking (double-buffered in/out/weights + scratch +
    # a rough allowance for live f32 intermediates).  At the test shapes this
    # is just the 32 MiB default.
    f32b = 4
    out_ib = np.dtype(out_dtype).itemsize
    in_bytes = B * H * W * C * f32b
    out_bytes = B * H * 2 * W * 2 * Co * out_ib
    w_bytes = (9 + 25) * W * C * f32b + 2 * (C * Co + Co) * f32b
    xp_bytes = B * (H + 4) * Wp * C * f32b
    live_bytes = 10 * B * H * W * max(C, Co) * f32b
    vmem_limit = int(min(100 * 2 ** 20,
                         max(32 * 2 ** 20,
                             2 * (in_bytes + out_bytes + w_bytes)
                             + xp_bytes + live_bytes)))

    rep2 = lambda n: (0, 0)
    rep3 = lambda n: (0, 0, 0)

    # NOTE: for large H/W (esp. on v7x, 64 MiB physical VMEM) the whole-image
    # per-step block should be replaced by an H-tile grid axis with a 3-row
    # halo (2 rows for the 5x5 depthwise window + 1 row for the bilinear
    # cross-tile neighbours).  Not needed at these shapes; vmem_limit_bytes
    # above already scales with the footprint.
    out = pl.pallas_call(
        _complex_upsample_kernel,
        out_shape=jax.ShapeDtypeStruct((N, H, 2, W, 2 * Co), out_dtype),
        grid_spec=pltpu.PrefetchScalarGridSpec(
            num_scalar_prefetch=0,
            grid=(N // B,),
            in_specs=[
                pl.BlockSpec((B, H, W, C), lambda n: (n, 0, 0, 0)),
                pl.BlockSpec((9, W, C), rep3),
                pl.BlockSpec((25, W, C), rep3),
                pl.BlockSpec((C, Co), rep2),
                pl.BlockSpec((1, Co), rep2),
                pl.BlockSpec((C, Co), rep2),
                pl.BlockSpec((1, Co), rep2),
            ],
            out_specs=pl.BlockSpec((B, H, 2, W, 2 * Co),
                                   lambda n: (n, 0, 0, 0, 0)),
            scratch_shapes=[pltpu.VMEM((B, H + 4, Wp, C), jnp.float32)],
        ),
        compiler_params=pltpu.CompilerParams(
            dimension_semantics=("parallel",),
            vmem_limit_bytes=vmem_limit),
    )(x, w3b, w5b, pw3, pb3, pw5, pb5)

    # (N, H, rp, W, cp*Co+c) -> (N, 2H, 2W, Co): contiguous merge, no transpose.
    return out.reshape(N, 2 * H, 2 * W, Co)


# ---------------------------------------------------------------------------
# Deterministic parameter init + BN folding (eval-mode BN)
# ---------------------------------------------------------------------------
def init_params(key, C, Co):
    ks = jax.random.split(key, 10)

    def bn(k, n):
        k1, k2, k3, k4 = jax.random.split(k, 4)
        gamma = jax.random.uniform(k1, (n,), jnp.float32, 0.8, 1.2)
        beta = jax.random.normal(k2, (n,), jnp.float32) * 0.1
        mean = jax.random.normal(k3, (n,), jnp.float32) * 0.1
        var = jax.random.uniform(k4, (n,), jnp.float32, 0.5, 1.5)
        return gamma, beta, mean, var

    dw3 = jax.random.normal(ks[0], (3, 3, C), jnp.float32) * 0.2
    dw5 = jax.random.normal(ks[1], (5, 5, C), jnp.float32) * 0.1
    bn_dw3 = bn(ks[2], C)
    bn_dw5 = bn(ks[3], C)
    pw3_w = jax.random.normal(ks[4], (C, Co), jnp.float32) / np.sqrt(C)
    pw3_b = jax.random.normal(ks[5], (Co,), jnp.float32) * 0.1
    pw5_w = jax.random.normal(ks[6], (C, Co), jnp.float32) / np.sqrt(C)
    pw5_b = jax.random.normal(ks[7], (Co,), jnp.float32) * 0.1
    bn_o3 = bn(ks[8], Co)
    bn_o5 = bn(ks[9], Co)

    raw = dict(dw3=dw3, dw5=dw5, bn_dw3=bn_dw3, bn_dw5=bn_dw5,
               pw3_w=pw3_w, pw3_b=pw3_b, pw5_w=pw5_w, pw5_b=pw5_b,
               bn_o3=bn_o3, bn_o5=bn_o5)

    def fold_dw(w, bn_p):
        g, b, m, v = bn_p
        s = g / jnp.sqrt(v + EPS)
        k = w.shape[0]
        return (w * s).reshape(k * k, w.shape[-1]), (b - m * s).reshape(1, -1)

    def fold_pw(w, bias, bn_p):
        g, b, m, v = bn_p
        s = g / jnp.sqrt(v + EPS)
        return w * s[None, :], ((bias - m) * s + b).reshape(1, -1)

    w3_f, b3_f = fold_dw(dw3, bn_dw3)
    w5_f, b5_f = fold_dw(dw5, bn_dw5)
    pw3_f, pb3_f = fold_pw(pw3_w, pw3_b, bn_o3)
    pw5_f, pb5_f = fold_pw(pw5_w, pw5_b, bn_o5)

    # Fold the depthwise-BN bias through the pointwise matmul into its bias:
    #   (acc + b_dw) @ W_pw + b_pw  ==  acc @ W_pw + (b_dw @ W_pw + b_pw)
    pb3_full = pb3_f + b3_f @ pw3_f
    pb5_full = pb5_f + b5_f @ pw5_f

    folded = (w3_f, w5_f, pw3_f, pb3_full, pw5_f, pb5_full)
    return raw, folded


# ---------------------------------------------------------------------------
# Pure-JAX reference (independent: lax convs + explicit BN + torch bilinear)
# ---------------------------------------------------------------------------
def _bilinear_x2_torch(z):
    def coef(n_in):
        i = jnp.arange(2 * n_in)
        src = jnp.maximum((i + 0.5) * 0.5 - 0.5, 0.0)
        i0 = jnp.floor(src).astype(jnp.int32)
        lam = (src - i0).astype(z.dtype)
        i1 = jnp.minimum(i0 + 1, n_in - 1)
        return i0, i1, lam

    H, W = z.shape[1], z.shape[2]
    r0, r1, rl = coef(H)
    zr = (z[:, r0] * (1 - rl)[None, :, None, None]
          + z[:, r1] * rl[None, :, None, None])
    c0, c1, cl = coef(W)
    return (zr[:, :, c0] * (1 - cl)[None, None, :, None]
            + zr[:, :, c1] * cl[None, None, :, None])


def reference(x, raw):
    C = x.shape[-1]

    def bn_apply(y, bn_p):
        g, b, m, v = bn_p
        return (y - m) / jnp.sqrt(v + EPS) * g + b

    def branch(dw_w, bn1, pw_w, pw_b, bn2, pad):
        k = dw_w.shape[0]
        dw = lax.conv_general_dilated(
            x, dw_w.reshape(k, k, 1, C), (1, 1),
            ((pad, pad), (pad, pad)),
            dimension_numbers=('NHWC', 'HWIO', 'NHWC'),
            feature_group_count=C, precision=lax.Precision.HIGHEST)
        dw = bn_apply(dw, bn1)
        pw = lax.conv_general_dilated(
            dw, pw_w.reshape(1, 1, C, -1), (1, 1), 'VALID',
            dimension_numbers=('NHWC', 'HWIO', 'NHWC'),
            precision=lax.Precision.HIGHEST) + pw_b
        return jnp.maximum(bn_apply(pw, bn2), 0.0)

    z = (branch(raw['dw3'], raw['bn_dw3'], raw['pw3_w'], raw['pw3_b'],
                raw['bn_o3'], 1)
         + branch(raw['dw5'], raw['bn_dw5'], raw['pw5_w'], raw['pw5_b'],
                  raw['bn_o5'], 2))
    return _bilinear_x2_torch(z)


# ---------------------------------------------------------------------------
if __name__ == "__main__":
    key = jax.random.PRNGKey(0)
    kx, kp = jax.random.split(key)

    # small shapes: batch=2, spatial 8x8, channels = module default 128 (lanes)
    N, H, W, C, Co = 2, 8, 8, 128, 128
    x = jax.random.normal(kx, (N, H, W, C), jnp.float32)
    raw, folded = init_params(kp, C, Co)

    out = jax.jit(complex_upsample_pallas)(x, folded)
    out = jax.block_until_ready(out)
    assert out.shape == (N, 2 * H, 2 * W, Co)

    ref = reference(x, raw)
    np.testing.assert_allclose(np.asarray(out), np.asarray(ref),
                               atol=3e-3, rtol=3e-3)
    print("KERNEL_OK")
</pallas_src>

<mosaic_0001>
module attributes {stable_mosaic.version = 11 : i64} {
  func.func @_complex_upsample_kernel(%arg0: i32, %arg1: memref<2x8x8x128xf32, #tpu.memory_space<vmem>>, %arg2: memref<9x8x128xf32, #tpu.memory_space<vmem>>, %arg3: memref<25x8x128xf32, #tpu.memory_space<vmem>>, %arg4: memref<128x128xf32, #tpu.memory_space<vmem>>, %arg5: memref<1x128xf32, #tpu.memory_space<vmem>>, %arg6: memref<128x128xf32, #tpu.memory_space<vmem>>, %arg7: memref<1x128xf32, #tpu.memory_space<vmem>>, %arg8: memref<2x8x2x8x256xf32, #tpu.memory_space<vmem>>, %arg9: memref<2x12x24x128xf32, #tpu.memory_space<vmem>>) attributes {dimension_semantics = [#tpu.dimension_semantics<parallel>], iteration_bounds = array<i64: 1>, scalar_prefetch = 0 : i64, scratch_operands = 1 : i64, tpu.core_type = #tpu.core_type<tc>, window_params = [{transform_indices = @transform_0, window_bounds = array<i64: 2, 8, 8, 128>}, {pipeline_mode = #tpu.pipeline_mode<synchronous>, transform_indices = @transform_1, window_bounds = array<i64: 9, 8, 128>}, {pipeline_mode = #tpu.pipeline_mode<synchronous>, transform_indices = @transform_2, window_bounds = array<i64: 25, 8, 128>}, {pipeline_mode = #tpu.pipeline_mode<synchronous>, transform_indices = @transform_3, window_bounds = array<i64: 128, 128>}, {pipeline_mode = #tpu.pipeline_mode<synchronous>, transform_indices = @transform_4, window_bounds = array<i64: 1, 128>}, {pipeline_mode = #tpu.pipeline_mode<synchronous>, transform_indices = @transform_5, window_bounds = array<i64: 128, 128>}, {pipeline_mode = #tpu.pipeline_mode<synchronous>, transform_indices = @transform_6, window_bounds = array<i64: 1, 128>}, {transform_indices = @transform_7, window_bounds = array<i64: 2, 8, 2, 8, 256>}]} {
    %cst = arith.constant 0.000000e+00 : f32
    %0 = vector.broadcast %cst : f32 to vector<2x2x24x128xf32>
    %c0 = arith.constant 0 : index
    %c0_0 = arith.constant 0 : index
    %c0_1 = arith.constant 0 : index
    %c0_2 = arith.constant 0 : index
    %1 = vector.load %arg9[%c0, %c0_0, %c0_1, %c0_2] : memref<2x12x24x128xf32, #tpu.memory_space<vmem>>, vector<2x2x24x128xf32>
    tpu.vector_store %arg9[%c0, %c0_0, %c0_1, %c0_2], %0 {strides = array<i32>} : memref<2x12x24x128xf32, #tpu.memory_space<vmem>>, vector<2x2x24x128xf32>,
    %c0_3 = arith.constant 0 : index
    %c10 = arith.constant 10 : index
    %c0_4 = arith.constant 0 : index
    %c0_5 = arith.constant 0 : index
    %2 = vector.load %arg9[%c0_3, %c10, %c0_4, %c0_5] : memref<2x12x24x128xf32, #tpu.memory_space<vmem>>, vector<2x2x24x128xf32>
    tpu.vector_store %arg9[%c0_3, %c10, %c0_4, %c0_5], %0 {strides = array<i32>} : memref<2x12x24x128xf32, #tpu.memory_space<vmem>>, vector<2x2x24x128xf32>,
    %cst_6 = arith.constant 0.000000e+00 : f32
    %3 = vector.broadcast %cst_6 : f32 to vector<2x8x2x128xf32>
    %c0_7 = arith.constant 0 : index
    %c2 = arith.constant 2 : index
    %c6 = arith.constant 6 : index
    %c0_8 = arith.constant 0 : index
    %4 = vector.load %arg9[%c0_7, %c2, %c6, %c0_8] : memref<2x12x24x128xf32, #tpu.memory_space<vmem>>, vector<2x8x2x128xf32>
    tpu.vector_store %arg9[%c0_7, %c2, %c6, %c0_8], %3 {strides = array<i32>} : memref<2x12x24x128xf32, #tpu.memory_space<vmem>>, vector<2x8x2x128xf32>,
    %c0_9 = arith.constant 0 : index
    %c2_10 = arith.constant 2 : index
    %c16 = arith.constant 16 : index
    %c0_11 = arith.constant 0 : index
    %5 = vector.load %arg9[%c0_9, %c2_10, %c16, %c0_11] : memref<2x12x24x128xf32, #tpu.memory_space<vmem>>, vector<2x8x2x128xf32>
    tpu.vector_store %arg9[%c0_9, %c2_10, %c16, %c0_11], %3 {strides = array<i32>} : memref<2x12x24x128xf32, #tpu.memory_space<vmem>>, vector<2x8x2x128xf32>,
    %c0_12 = arith.constant 0 : index
    %c0_13 = arith.constant 0 : index
    %c0_14 = arith.constant 0 : index
    %c0_15 = arith.constant 0 : index
    %6 = vector.load %arg1[%c0_12, %c0_13, %c0_14, %c0_15] : memref<2x8x8x128xf32, #tpu.memory_space<vmem>>, vector<2x8x8x128xf32>
    %c0_16 = arith.constant 0 : index
    %c2_17 = arith.constant 2 : index
    %c8 = arith.constant 8 : index
    %c0_18 = arith.constant 0 : index
    %7 = vector.load %arg9[%c0_16, %c2_17, %c8, %c0_18] : memref<2x12x24x128xf32, #tpu.memory_space<vmem>>, vector<2x8x8x128xf32>
    tpu.vector_store %arg9[%c0_16, %c2_17, %c8, %c0_18], %6 {strides = array<i32>} : memref<2x12x24x128xf32, #tpu.memory_space<vmem>>, vector<2x8x8x128xf32>,
    %cst_19 = arith.constant 0.000000e+00 : f32
    %8 = vector.broadcast %cst_19 : f32 to vector<2x8x8x128xf32>
    %cst_20 = arith.constant 0.000000e+00 : f32
    %9 = vector.broadcast %cst_20 : f32 to vector<2x8x8x128xf32>
    %c0_21 = arith.constant 0 : index
    %c0_22 = arith.constant 0 : index
    %c6_23 = arith.constant 6 : index
    %c0_24 = arith.constant 0 : index
    %10 = vector.load %arg9[%c0_21, %c0_22, %c6_23, %c0_24] : memref<2x12x24x128xf32, #tpu.memory_space<vmem>>, vector<2x12x8x128xf32>
    %11 = vector.extract_strided_slice %10 {offsets = [0, 0, 0, 0], sizes = [2, 8, 8, 128], strides = [1, 1, 1, 1]} : vector<2x12x8x128xf32> to vector<2x8x8x128xf32>
    %c0_25 = arith.constant 0 : index
    %c0_26 = arith.constant 0 : index
    %c0_27 = arith.constant 0 : index
    %12 = vector.load %arg3[%c0_25, %c0_26, %c0_27] : memref<25x8x128xf32, #tpu.memory_space<vmem>>, vector<1x8x128xf32>
    %13 = vector.shape_cast %12 : vector<1x8x128xf32> to vector<8x128xf32>
    %14 = vector.shape_cast %13 : vector<8x128xf32> to vector<1x1x8x128xf32>
    %15 = vector.broadcast %14 : vector<1x1x8x128xf32> to vector<2x8x8x128xf32>
    %16 = arith.mulf %11, %15 : vector<2x8x8x128xf32>
    %17 = arith.addf %9, %16 : vector<2x8x8x128xf32>
    %18 = vector.extract_strided_slice %10 {offsets = [0, 1, 0, 0], sizes = [2, 8, 8, 128], strides = [1, 1, 1, 1]} : vector<2x12x8x128xf32> to vector<2x8x8x128xf32>
    %c5 = arith.constant 5 : index
    %c0_28 = arith.constant 0 : index
    %c0_29 = arith.constant 0 : index
    %19 = vector.load %arg3[%c5, %c0_28, %c0_29] : memref<25x8x128xf32, #tpu.memory_space<vmem>>, vector<1x8x128xf32>
    %20 = vector.shape_cast %19 : vector<1x8x128xf32> to vector<8x128xf32>
    %21 = vector.shape_cast %20 : vector<8x128xf32> to vector<1x1x8x128xf32>
    %22 = vector.broadcast %21 : vector<1x1x8x128xf32> to vector<2x8x8x128xf32>
    %23 = arith.mulf %18, %22 : vector<2x8x8x128xf32>
    %24 = arith.addf %17, %23 : vector<2x8x8x128xf32>
    %25 = vector.extract_strided_slice %10 {offsets = [0, 2, 0, 0], sizes = [2, 8, 8, 128], strides = [1, 1, 1, 1]} : vector<2x12x8x128xf32> to vector<2x8x8x128xf32>
    %c10_30 = arith.constant 10 : index
    %c0_31 = arith.constant 0 : index
    %c0_32 = arith.constant 0 : index
    %26 = vector.load %arg3[%c10_30, %c0_31, %c0_32] : memref<25x8x128xf32, #tpu.memory_space<vmem>>, vector<1x8x128xf32>
    %27 = vector.shape_cast %26 : vector<1x8x128xf32> to vector<8x128xf32>
    %28 = vector.shape_cast %27 : vector<8x128xf32> to vector<1x1x8x128xf32>
    %29 = vector.broadcast %28 : vector<1x1x8x128xf32> to vector<2x8x8x128xf32>
    %30 = arith.mulf %25, %29 : vector<2x8x8x128xf32>
    %31 = arith.addf %24, %30 : vector<2x8x8x128xf32>
    %32 = vector.extract_strided_slice %10 {offsets = [0, 3, 0, 0], sizes = [2, 8, 8, 128], strides = [1, 1, 1, 1]} : vector<2x12x8x128xf32> to vector<2x8x8x128xf32>
    %c15 = arith.constant 15 : index
    %c0_33 = arith.constant 0 : index
    %c0_34 = arith.constant 0 : index
    %33 = vector.load %arg3[%c15, %c0_33, %c0_34] : memref<25x8x128xf32, #tpu.memory_space<vmem>>, vector<1x8x128xf32>
    %34 = vector.shape_cast %33 : vector<1x8x128xf32> to vector<8x128xf32>
    %35 = vector.shape_cast %34 : vector<8x128xf32> to vector<1x1x8x128xf32>
    %36 = vector.broadcast %35 : vector<1x1x8x128xf32> to vector<2x8x8x128xf32>
    %37 = arith.mulf %32, %36 : vector<2x8x8x128xf32>
    %38 = arith.addf %31, %37 : vector<2x8x8x128xf32>
    %39 = vector.extract_strided_slice %10 {offsets = [0, 4, 0, 0], sizes = [2, 8, 8, 128], strides = [1, 1, 1, 1]} : vector<2x12x8x128xf32> to vector<2x8x8x128xf32>
    %c20 = arith.constant 20 : index
    %c0_35 = arith.constant 0 : index
    %c0_36 = arith.constant 0 : index
    %40 = vector.load %arg3[%c20, %c0_35, %c0_36] : memref<25x8x128xf32, #tpu.memory_space<vmem>>, vector<1x8x128xf32>
    %41 = vector.shape_cast %40 : vector<1x8x128xf32> to vector<8x128xf32>
    %42 = vector.shape_cast %41 : vector<8x128xf32> to vector<1x1x8x128xf32>
    %43 = vector.broadcast %42 : vector<1x1x8x128xf32> to vector<2x8x8x128xf32>
    %44 = arith.mulf %39, %43 : vector<2x8x8x128xf32>
    %45 = arith.addf %38, %44 : vector<2x8x8x128xf32>
    %c0_37 = arith.constant 0 : index
    %c0_38 = arith.constant 0 : index
    %c7 = arith.constant 7 : index
    %c0_39 = arith.constant 0 : index
    %46 = vector.load %arg9[%c0_37, %c0_38, %c7, %c0_39] : memref<2x12x24x128xf32, #tpu.memory_space<vmem>>, vector<2x12x8x128xf32>
    %47 = vector.extract_strided_slice %46 {offsets = [0, 0, 0, 0], sizes = [2, 8, 8, 128], strides = [1, 1, 1, 1]} : vector<2x12x8x128xf32> to vector<2x8x8x128xf32>
    %c1 = arith.constant 1 : index
    %c0_40 = arith.constant 0 : index
    %c0_41 = arith.constant 0 : index
    %48 = vector.load %arg3[%c1, %c0_40, %c0_41] : memref<25x8x128xf32, #tpu.memory_space<vmem>>, vector<1x8x128xf32>
    %49 = vector.shape_cast %48 : vector<1x8x128xf32> to vector<8x128xf32>
    %50 = vector.shape_cast %49 : vector<8x128xf32> to vector<1x1x8x128xf32>
    %51 = vector.broadcast %50 : vector<1x1x8x128xf32> to vector<2x8x8x128xf32>
    %52 = arith.mulf %47, %51 : vector<2x8x8x128xf32>
    %53 = arith.addf %45, %52 : vector<2x8x8x128xf32>
    %54 = vector.extract_strided_slice %46 {offsets = [0, 1, 0, 0], sizes = [2, 8, 8, 128], strides = [1, 1, 1, 1]} : vector<2x12x8x128xf32> to vector<2x8x8x128xf32>
    %c6_42 = arith.constant 6 : index
    %c0_43 = arith.constant 0 : index
    %c0_44 = arith.constant 0 : index
    %55 = vector.load %arg3[%c6_42, %c0_43, %c0_44] : memref<25x8x128xf32, #tpu.memory_space<vmem>>, vector<1x8x128xf32>
    %56 = vector.shape_cast %55 : vector<1x8x128xf32> to vector<8x128xf32>
    %57 = vector.shape_cast %56 : vector<8x128xf32> to vector<1x1x8x128xf32>
    %58 = vector.broadcast %57 : vector<1x1x8x128xf32> to vector<2x8x8x128xf32>
    %59 = arith.mulf %54, %58 : vector<2x8x8x128xf32>
    %60 = arith.addf %53, %59 : vector<2x8x8x128xf32>
    %c0_45 = arith.constant 0 : index
    %c0_46 = arith.constant 0 : index
    %c0_47 = arith.constant 0 : index
    %61 = vector.load %arg2[%c0_45, %c0_46, %c0_47] : memref<9x8x128xf32, #tpu.memory_space<vmem>>, vector<1x8x128xf32>
    %62 = vector.shape_cast %61 : vector<1x8x128xf32> to vector<8x128xf32>
    %63 = vector.shape_cast %62 : vector<8x128xf32> to vector<1x1x8x128xf32>
    %64 = vector.broadcast %63 : vector<1x1x8x128xf32> to vector<2x8x8x128xf32>
    %65 = arith.mulf %54, %64 : vector<2x8x8x128xf32>
    %66 = arith.addf %8, %65 : vector<2x8x8x128xf32>
    %67 = vector.extract_strided_slice %46 {offsets = [0, 2, 0, 0], sizes = [2, 8, 8, 128], strides = [1, 1, 1, 1]} : vector<2x12x8x128xf32> to vector<2x8x8x128xf32>
    %c11 = arith.constant 11 : index
    %c0_48 = arith.constant 0 : index
    %c0_49 = arith.constant 0 : index
    %68 = vector.load %arg3[%c11, %c0_48, %c0_49] : memref<25x8x128xf32, #tpu.memory_space<vmem>>, vector<1x8x128xf32>
    %69 = vector.shape_cast %68 : vector<1x8x128xf32> to vector<8x128xf32>
    %70 = vector.shape_cast %69 : vector<8x128xf32> to vector<1x1x8x128xf32>
    %71 = vector.broadcast %70 : vector<1x1x8x128xf32> to vector<2x8x8x128xf32>
    %72 = arith.mulf %67, %71 : vector<2x8x8x128xf32>
    %73 = arith.addf %60, %72 : vector<2x8x8x128xf32>
    %c3 = arith.constant 3 : index
    %c0_50 = arith.constant 0 : index
    %c0_51 = arith.constant 0 : index
    %74 = vector.load %arg2[%c3, %c0_50, %c0_51] : memref<9x8x128xf32, #tpu.memory_space<vmem>>, vector<1x8x128xf32>
    %75 = vector.shape_cast %74 : vector<1x8x128xf32> to vector<8x128xf32>
    %76 = vector.shape_cast %75 : vector<8x128xf32> to vector<1x1x8x128xf32>
    %77 = vector.broadcast %76 : vector<1x1x8x128xf32> to vector<2x8x8x128xf32>
    %78 = arith.mulf %67, %77 : vector<2x8x8x128xf32>
    %79 = arith.addf %66, %78 : vector<2x8x8x128xf32>
    %80 = vector.extract_strided_slice %46 {offsets = [0, 3, 0, 0], sizes = [2, 8, 8, 128], strides = [1, 1, 1, 1]} : vector<2x12x8x128xf32> to vector<2x8x8x128xf32>
    %c16_52 = arith.constant 16 : index
    %c0_53 = arith.constant 0 : index
    %c0_54 = arith.constant 0 : index
    %81 = vector.load %arg3[%c16_52, %c0_53, %c0_54] : memref<25x8x128xf32, #tpu.memory_space<vmem>>, vector<1x8x128xf32>
    %82 = vector.shape_cast %81 : vector<1x8x128xf32> to vector<8x128xf32>
    %83 = vector.shape_cast %82 : vector<8x128xf32> to vector<1x1x8x128xf32>
    %84 = vector.broadcast %83 : vector<1x1x8x128xf32> to vector<2x8x8x128xf32>
    %85 = arith.mulf %80, %84 : vector<2x8x8x128xf32>
    %86 = arith.addf %73, %85 : vector<2x8x8x128xf32>
    %c6_55 = arith.constant 6 : index
    %c0_56 = arith.constant 0 : index
    %c0_57 = arith.constant 0 : index
    %87 = vector.load %arg2[%c6_55, %c0_56, %c0_57] : memref<9x8x128xf32, #tpu.memory_space<vmem>>, vector<1x8x128xf32>
    %88 = vector.shape_cast %87 : vector<1x8x128xf32> to vector<8x128xf32>
    %89 = vector.shape_cast %88 : vector<8x128xf32> to vector<1x1x8x128xf32>
    %90 = vector.broadcast %89 : vector<1x1x8x128xf32> to vector<2x8x8x128xf32>
    %91 = arith.mulf %80, %90 : vector<2x8x8x128xf32>
    %92 = arith.addf %79, %91 : vector<2x8x8x128xf32>
    %93 = vector.extract_strided_slice %46 {offsets = [0, 4, 0, 0], sizes = [2, 8, 8, 128], strides = [1, 1, 1, 1]} : vector<2x12x8x128xf32> to vector<2x8x8x128xf32>
    %c21 = arith.constant 21 : index
    %c0_58 = arith.constant 0 : index
    %c0_59 = arith.constant 0 : index
    %94 = vector.load %arg3[%c21, %c0_58, %c0_59] : memref<25x8x128xf32, #tpu.memory_space<vmem>>, vector<1x8x128xf32>
    %95 = vector.shape_cast %94 : vector<1x8x128xf32> to vector<8x128xf32>
    %96 = vector.shape_cast %95 : vector<8x128xf32> to vector<1x1x8x128xf32>
    %97 = vector.broadcast %96 : vector<1x1x8x128xf32> to vector<2x8x8x128xf32>
    %98 = arith.mulf %93, %97 : vector<2x8x8x128xf32>
    %99 = arith.addf %86, %98 : vector<2x8x8x128xf32>
    %c0_60 = arith.constant 0 : index
    %c0_61 = arith.constant 0 : index
    %c8_62 = arith.constant 8 : index
    %c0_63 = arith.constant 0 : index
    %100 = vector.load %arg9[%c0_60, %c0_61, %c8_62, %c0_63] : memref<2x12x24x128xf32, #tpu.memory_space<vmem>>, vector<2x12x8x128xf32>
    %101 = vector.extract_strided_slice %100 {offsets = [0, 0, 0, 0], sizes = [2, 8, 8, 128], strides = [1, 1, 1, 1]} : vector<2x12x8x128xf32> to vector<2x8x8x128xf32>
    %c2_64 = arith.constant 2 : index
    %c0_65 = arith.constant 0 : index
    %c0_66 = arith.constant 0 : index
    %102 = vector.load %arg3[%c2_64, %c0_65, %c0_66] : memref<25x8x128xf32, #tpu.memory_space<vmem>>, vector<1x8x128xf32>
    %103 = vector.shape_cast %102 : vector<1x8x128xf32> to vector<8x128xf32>
    %104 = vector.shape_cast %103 : vector<8x128xf32> to vector<1x1x8x128xf32>
    %105 = vector.broadcast %104 : vector<1x1x8x128xf32> to vector<2x8x8x128xf32>
    %106 = arith.mulf %101, %105 : vector<2x8x8x128xf32>
    %107 = arith.addf %99, %106 : vector<2x8x8x128xf32>
    %108 = vector.extract_strided_slice %100 {offsets = [0, 1, 0, 0], sizes = [2, 8, 8, 128], strides = [1, 1, 1, 1]} : vector<2x12x8x128xf32> to vector<2x8x8x128xf32>
    %c7_67 = arith.constant 7 : index
    %c0_68 = arith.constant 0 : index
    %c0_69 = arith.constant 0 : index
    %109 = vector.load %arg3[%c7_67, %c0_68, %c0_69] : memref<25x8x128xf32, #tpu.memory_space<vmem>>, vector<1x8x128xf32>
    %110 = vector.shape_cast %109 : vector<1x8x128xf32> to vector<8x128xf32>
    %111 = vector.shape_cast %110 : vector<8x128xf32> to vector<1x1x8x128xf32>
    %112 = vector.broadcast %111 : vector<1x1x8x128xf32> to vector<2x8x8x128xf32>
    %113 = arith.mulf %108, %112 : vector<2x8x8x128xf32>
    %114 = arith.addf %107, %113 : vector<2x8x8x128xf32>
    %c1_70 = arith.constant 1 : index
    %c0_71 = arith.constant 0 : index
    %c0_72 = arith.constant 0 : index
    %115 = vector.load %arg2[%c1_70, %c0_71, %c0_72] : memref<9x8x128xf32, #tpu.memory_space<vmem>>, vector<1x8x128xf32>
    %116 = vector.shape_cast %115 : vector<1x8x128xf32> to vector<8x128xf32>
    %117 = vector.shape_cast %116 : vector<8x128xf32> to vector<1x1x8x128xf32>
    %118 = vector.broadcast %117 : vector<1x1x8x128xf32> to vector<2x8x8x128xf32>
    %119 = arith.mulf %108, %118 : vector<2x8x8x128xf32>
    %120 = arith.addf %92, %119 : vector<2x8x8x128xf32>
    %121 = vector.extract_strided_slice %100 {offsets = [0, 2, 0, 0], sizes = [2, 8, 8, 128], strides = [1, 1, 1, 1]} : vector<2x12x8x128xf32> to vector<2x8x8x128xf32>
    %c12 = arith.constant 12 : index
    %c0_73 = arith.constant 0 : index
    %c0_74 = arith.constant 0 : index
    %122 = vector.load %arg3[%c12, %c0_73, %c0_74] : memref<25x8x128xf32, #tpu.memory_space<vmem>>, vector<1x8x128xf32>
    %123 = vector.shape_cast %122 : vector<1x8x128xf32> to vector<8x128xf32>
    %124 = vector.shape_cast %123 : vector<8x128xf32> to vector<1x1x8x128xf32>
    %125 = vector.broadcast %124 : vector<1x1x8x128xf32> to vector<2x8x8x128xf32>
    %126 = arith.mulf %121, %125 : vector<2x8x8x128xf32>
    %127 = arith.addf %114, %126 : vector<2x8x8x128xf32>
    %c4 = arith.constant 4 : index
    %c0_75 = arith.constant 0 : index
    %c0_76 = arith.constant 0 : index
    %128 = vector.load %arg2[%c4, %c0_75, %c0_76] : memref<9x8x128xf32, #tpu.memory_space<vmem>>, vector<1x8x128xf32>
    %129 = vector.shape_cast %128 : vector<1x8x128xf32> to vector<8x128xf32>
    %130 = vector.shape_cast %129 : vector<8x128xf32> to vector<1x1x8x128xf32>
    %131 = vector.broadcast %130 : vector<1x1x8x128xf32> to vector<2x8x8x128xf32>
    %132 = arith.mulf %121, %131 : vector<2x8x8x128xf32>
    %133 = arith.addf %120, %132 : vector<2x8x8x128xf32>
    %134 = vector.extract_strided_slice %100 {offsets = [0, 3, 0, 0], sizes = [2, 8, 8, 128], strides = [1, 1, 1, 1]} : vector<2x12x8x128xf32> to vector<2x8x8x128xf32>
    %c17 = arith.constant 17 : index
    %c0_77 = arith.constant 0 : index
    %c0_78 = arith.constant 0 : index
    %135 = vector.load %arg3[%c17, %c0_77, %c0_78] : memref<25x8x128xf32, #tpu.memory_space<vmem>>, vector<1x8x128xf32>
    %136 = vector.shape_cast %135 : vector<1x8x128xf32> to vector<8x128xf32>
    %137 = vector.shape_cast %136 : vector<8x128xf32> to vector<1x1x8x128xf32>
    %138 = vector.broadcast %137 : vector<1x1x8x128xf32> to vector<2x8x8x128xf32>
    %139 = arith.mulf %134, %138 : vector<2x8x8x128xf32>
    %140 = arith.addf %127, %139 : vector<2x8x8x128xf32>
    %c7_79 = arith.constant 7 : index
    %c0_80 = arith.constant 0 : index
    %c0_81 = arith.constant 0 : index
    %141 = vector.load %arg2[%c7_79, %c0_80, %c0_81] : memref<9x8x128xf32, #tpu.memory_space<vmem>>, vector<1x8x128xf32>
    %142 = vector.shape_cast %141 : vector<1x8x128xf32> to vector<8x128xf32>
    %143 = vector.shape_cast %142 : vector<8x128xf32> to vector<1x1x8x128xf32>
    %144 = vector.broadcast %143 : vector<1x1x8x128xf32> to vector<2x8x8x128xf32>
    %145 = arith.mulf %134, %144 : vector<2x8x8x128xf32>
    %146 = arith.addf %133, %145 : vector<2x8x8x128xf32>
    %147 = vector.extract_strided_slice %100 {offsets = [0, 4, 0, 0], sizes = [2, 8, 8, 128], strides = [1, 1, 1, 1]} : vector<2x12x8x128xf32> to vector<2x8x8x128xf32>
    %c22 = arith.constant 22 : index
    %c0_82 = arith.constant 0 : index
    %c0_83 = arith.constant 0 : index
    %148 = vector.load %arg3[%c22, %c0_82, %c0_83] : memref<25x8x128xf32, #tpu.memory_space<vmem>>, vector<1x8x128xf32>
    %149 = vector.shape_cast %148 : vector<1x8x128xf32> to vector<8x128xf32>
    %150 = vector.shape_cast %149 : vector<8x128xf32> to vector<1x1x8x128xf32>
    %151 = vector.broadcast %150 : vector<1x1x8x128xf32> to vector<2x8x8x128xf32>
    %152 = arith.mulf %147, %151 : vector<2x8x8x128xf32>
    %153 = arith.addf %140, %152 : vector<2x8x8x128xf32>
    %c0_84 = arith.constant 0 : index
    %c0_85 = arith.constant 0 : index
    %c9 = arith.constant 9 : index
    %c0_86 = arith.constant 0 : index
    %154 = vector.load %arg9[%c0_84, %c0_85, %c9, %c0_86] : memref<2x12x24x128xf32, #tpu.memory_space<vmem>>, vector<2x12x8x128xf32>
    %155 = vector.extract_strided_slice %154 {offsets = [0, 0, 0, 0], sizes = [2, 8, 8, 128], strides = [1, 1, 1, 1]} : vector<2x12x8x128xf32> to vector<2x8x8x128xf32>
    %c3_87 = arith.constant 3 : index
    %c0_88 = arith.constant 0 : index
    %c0_89 = arith.constant 0 : index
    %156 = vector.load %arg3[%c3_87, %c0_88, %c0_89] : memref<25x8x128xf32, #tpu.memory_space<vmem>>, vector<1x8x128xf32>
    %157 = vector.shape_cast %156 : vector<1x8x128xf32> to vector<8x128xf32>
    %158 = vector.shape_cast %157 : vector<8x128xf32> to vector<1x1x8x128xf32>
    %159 = vector.broadcast %158 : vector<1x1x8x128xf32> to vector<2x8x8x128xf32>
    %160 = arith.mulf %155, %159 : vector<2x8x8x128xf32>
    %161 = arith.addf %153, %160 : vector<2x8x8x128xf32>
    %162 = vector.extract_strided_slice %154 {offsets = [0, 1, 0, 0], sizes = [2, 8, 8, 128], strides = [1, 1, 1, 1]} : vector<2x12x8x128xf32> to vector<2x8x8x128xf32>
    %c8_90 = arith.constant 8 : index
    %c0_91 = arith.constant 0 : index
    %c0_92 = arith.constant 0 : index
    %163 = vector.load %arg3[%c8_90, %c0_91, %c0_92] : memref<25x8x128xf32, #tpu.memory_space<vmem>>, vector<1x8x128xf32>
    %164 = vector.shape_cast %163 : vector<1x8x128xf32> to vector<8x128xf32>
    %165 = vector.shape_cast %164 : vector<8x128xf32> to vector<1x1x8x128xf32>
    %166 = vector.broadcast %165 : vector<1x1x8x128xf32> to vector<2x8x8x128xf32>
    %167 = arith.mulf %162, %166 : vector<2x8x8x128xf32>
    %168 = arith.addf %161, %167 : vector<2x8x8x128xf32>
    %c2_93 = arith.constant 2 : index
    %c0_94 = arith.constant 0 : index
    %c0_95 = arith.constant 0 : index
    %169 = vector.load %arg2[%c2_93, %c0_94, %c0_95] : memref<9x8x128xf32, #tpu.memory_space<vmem>>, vector<1x8x128xf32>
    %170 = vector.shape_cast %169 : vector<1x8x128xf32> to vector<8x128xf32>
    %171 = vector.shape_cast %170 : vector<8x128xf32> to vector<1x1x8x128xf32>
    %172 = vector.broadcast %171 : vector<1x1x8x128xf32> to vector<2x8x8x128xf32>
    %173 = arith.mulf %162, %172 : vector<2x8x8x128xf32>
    %174 = arith.addf %146, %173 : vector<2x8x8x128xf32>
    %175 = vector.extract_strided_slice %154 {offsets = [0, 2, 0, 0], sizes = [2, 8, 8, 128], strides = [1, 1, 1, 1]} : vector<2x12x8x128xf32> to vector<2x8x8x128xf32>
    %c13 = arith.constant 13 : index
    %c0_96 = arith.constant 0 : index
    %c0_97 = arith.constant 0 : index
    %176 = vector.load %arg3[%c13, %c0_96, %c0_97] : memref<25x8x128xf32, #tpu.memory_space<vmem>>, vector<1x8x128xf32>
    %177 = vector.shape_cast %176 : vector<1x8x128xf32> to vector<8x128xf32>
    %178 = vector.shape_cast %177 : vector<8x128xf32> to vector<1x1x8x128xf32>
    %179 = vector.broadcast %178 : vector<1x1x8x128xf32> to vector<2x8x8x128xf32>
    %180 = arith.mulf %175, %179 : vector<2x8x8x128xf32>
    %181 = arith.addf %168, %180 : vector<2x8x8x128xf32>
    %c5_98 = arith.constant 5 : index
    %c0_99 = arith.constant 0 : index
    %c0_100 = arith.constant 0 : index
    %182 = vector.load %arg2[%c5_98, %c0_99, %c0_100] : memref<9x8x128xf32, #tpu.memory_space<vmem>>, vector<1x8x128xf32>
    %183 = vector.shape_cast %182 : vector<1x8x128xf32> to vector<8x128xf32>
    %184 = vector.shape_cast %183 : vector<8x128xf32> to vector<1x1x8x128xf32>
    %185 = vector.broadcast %184 : vector<1x1x8x128xf32> to vector<2x8x8x128xf32>
    %186 = arith.mulf %175, %185 : vector<2x8x8x128xf32>
    %187 = arith.addf %174, %186 : vector<2x8x8x128xf32>
    %188 = vector.extract_strided_slice %154 {offsets = [0, 3, 0, 0], sizes = [2, 8, 8, 128], strides = [1, 1, 1, 1]} : vector<2x12x8x128xf32> to vector<2x8x8x128xf32>
    %c18 = arith.constant 18 : index
    %c0_101 = arith.constant 0 : index
    %c0_102 = arith.constant 0 : index
    %189 = vector.load %arg3[%c18, %c0_101, %c0_102] : memref<25x8x128xf32, #tpu.memory_space<vmem>>, vector<1x8x128xf32>
    %190 = vector.shape_cast %189 : vector<1x8x128xf32> to vector<8x128xf32>
    %191 = vector.shape_cast %190 : vector<8x128xf32> to vector<1x1x8x128xf32>
    %192 = vector.broadcast %191 : vector<1x1x8x128xf32> to vector<2x8x8x128xf32>
    %193 = arith.mulf %188, %192 : vector<2x8x8x128xf32>
    %194 = arith.addf %181, %193 : vector<2x8x8x128xf32>
    %c8_103 = arith.constant 8 : index
    %c0_104 = arith.constant 0 : index
    %c0_105 = arith.constant 0 : index
    %195 = vector.load %arg2[%c8_103, %c0_104, %c0_105] : memref<9x8x128xf32, #tpu.memory_space<vmem>>, vector<1x8x128xf32>
    %196 = vector.shape_cast %195 : vector<1x8x128xf32> to vector<8x128xf32>
    %197 = vector.shape_cast %196 : vector<8x128xf32> to vector<1x1x8x128xf32>
    %198 = vector.broadcast %197 : vector<1x1x8x128xf32> to vector<2x8x8x128xf32>
    %199 = arith.mulf %188, %198 : vector<2x8x8x128xf32>
    %200 = arith.addf %187, %199 : vector<2x8x8x128xf32>
    %201 = vector.extract_strided_slice %154 {offsets = [0, 4, 0, 0], sizes = [2, 8, 8, 128], strides = [1, 1, 1, 1]} : vector<2x12x8x128xf32> to vector<2x8x8x128xf32>
    %c23 = arith.constant 23 : index
    %c0_106 = arith.constant 0 : index
    %c0_107 = arith.constant 0 : index
    %202 = vector.load %arg3[%c23, %c0_106, %c0_107] : memref<25x8x128xf32, #tpu.memory_space<vmem>>, vector<1x8x128xf32>
    %203 = vector.shape_cast %202 : vector<1x8x128xf32> to vector<8x128xf32>
    %204 = vector.shape_cast %203 : vector<8x128xf32> to vector<1x1x8x128xf32>
    %205 = vector.broadcast %204 : vector<1x1x8x128xf32> to vector<2x8x8x128xf32>
    %206 = arith.mulf %201, %205 : vector<2x8x8x128xf32>
    %207 = arith.addf %194, %206 : vector<2x8x8x128xf32>
    %c0_108 = arith.constant 0 : index
    %c0_109 = arith.constant 0 : index
    %c10_110 = arith.constant 10 : index
    %c0_111 = arith.constant 0 : index
    %208 = vector.load %arg9[%c0_108, %c0_109, %c10_110, %c0_111] : memref<2x12x24x128xf32, #tpu.memory_space<vmem>>, vector<2x12x8x128xf32>
    %209 = vector.extract_strided_slice %208 {offsets = [0, 0, 0, 0], sizes = [2, 8, 8, 128], strides = [1, 1, 1, 1]} : vector<2x12x8x128xf32> to vector<2x8x8x128xf32>
    %c4_112 = arith.constant 4 : index
    %c0_113 = arith.constant 0 : index
    %c0_114 = arith.constant 0 : index
    %210 = vector.load %arg3[%c4_112, %c0_113, %c0_114] : memref<25x8x128xf32, #tpu.memory_space<vmem>>, vector<1x8x128xf32>
    %211 = vector.shape_cast %210 : vector<1x8x128xf32> to vector<8x128xf32>
    %212 = vector.shape_cast %211 : vector<8x128xf32> to vector<1x1x8x128xf32>
    %213 = vector.broadcast %212 : vector<1x1x8x128xf32> to vector<2x8x8x128xf32>
    %214 = arith.mulf %209, %213 : vector<2x8x8x128xf32>
    %215 = arith.addf %207, %214 : vector<2x8x8x128xf32>
    %216 = vector.extract_strided_slice %208 {offsets = [0, 1, 0, 0], sizes = [2, 8, 8, 128], strides = [1, 1, 1, 1]} : vector<2x12x8x128xf32> to vector<2x8x8x128xf32>
    %c9_115 = arith.constant 9 : index
    %c0_116 = arith.constant 0 : index
    %c0_117 = arith.constant 0 : index
    %217 = vector.load %arg3[%c9_115, %c0_116, %c0_117] : memref<25x8x128xf32, #tpu.memory_space<vmem>>, vector<1x8x128xf32>
    %218 = vector.shape_cast %217 : vector<1x8x128xf32> to vector<8x128xf32>
    %219 = vector.shape_cast %218 : vector<8x128xf32> to vector<1x1x8x128xf32>
    %220 = vector.broadcast %219 : vector<1x1x8x128xf32> to vector<2x8x8x128xf32>
    %221 = arith.mulf %216, %220 : vector<2x8x8x128xf32>
    %222 = arith.addf %215, %221 : vector<2x8x8x128xf32>
    %223 = vector.extract_strided_slice %208 {offsets = [0, 2, 0, 0], sizes = [2, 8, 8, 128], strides = [1, 1, 1, 1]} : vector<2x12x8x128xf32> to vector<2x8x8x128xf32>
    %c14 = arith.constant 14 : index
    %c0_118 = arith.constant 0 : index
    %c0_119 = arith.constant 0 : index
    %224 = vector.load %arg3[%c14, %c0_118, %c0_119] : memref<25x8x128xf32, #tpu.memory_space<vmem>>, vector<1x8x128xf32>
    %225 = vector.shape_cast %224 : vector<1x8x128xf32> to vector<8x128xf32>
    %226 = vector.shape_cast %225 : vector<8x128xf32> to vector<1x1x8x128xf32>
    %227 = vector.broadcast %226 : vector<1x1x8x128xf32> to vector<2x8x8x128xf32>
    %228 = arith.mulf %223, %227 : vector<2x8x8x128xf32>
    %229 = arith.addf %222, %228 : vector<2x8x8x128xf32>
    %230 = vector.extract_strided_slice %208 {offsets = [0, 3, 0, 0], sizes = [2, 8, 8, 128], strides = [1, 1, 1, 1]} : vector<2x12x8x128xf32> to vector<2x8x8x128xf32>
    %c19 = arith.constant 19 : index
    %c0_120 = arith.constant 0 : index
    %c0_121 = arith.constant 0 : index
    %231 = vector.load %arg3[%c19, %c0_120, %c0_121] : memref<25x8x128xf32, #tpu.memory_space<vmem>>, vector<1x8x128xf32>
    %232 = vector.shape_cast %231 : vector<1x8x128xf32> to vector<8x128xf32>
    %233 = vector.shape_cast %232 : vector<8x128xf32> to vector<1x1x8x128xf32>
    %234 = vector.broadcast %233 : vector<1x1x8x128xf32> to vector<2x8x8x128xf32>
    %235 = arith.mulf %230, %234 : vector<2x8x8x128xf32>
    %236 = arith.addf %229, %235 : vector<2x8x8x128xf32>
    %237 = vector.extract_strided_slice %208 {offsets = [0, 4, 0, 0], sizes = [2, 8, 8, 128], strides = [1, 1, 1, 1]} : vector<2x12x8x128xf32> to vector<2x8x8x128xf32>
    %c24 = arith.constant 24 : index
    %c0_122 = arith.constant 0 : index
    %c0_123 = arith.constant 0 : index
    %238 = vector.load %arg3[%c24, %c0_122, %c0_123] : memref<25x8x128xf32, #tpu.memory_space<vmem>>, vector<1x8x128xf32>
    %239 = vector.shape_cast %238 : vector<1x8x128xf32> to vector<8x128xf32>
    %240 = vector.shape_cast %239 : vector<8x128xf32> to vector<1x1x8x128xf32>
    %241 = vector.broadcast %240 : vector<1x1x8x128xf32> to vector<2x8x8x128xf32>
    %242 = arith.mulf %237, %241 : vector<2x8x8x128xf32>
    %243 = arith.addf %236, %242 : vector<2x8x8x128xf32>
    %244 = vector.shape_cast %200 : vector<2x8x8x128xf32> to vector<128x128xf32>
    %c0_124 = arith.constant 0 : index
    %c0_125 = arith.constant 0 : index
    %245 = vector.load %arg4[%c0_124, %c0_125] : memref<128x128xf32, #tpu.memory_space<vmem>>, vector<128x128xf32>
    %cst_126 = arith.constant dense<0.000000e+00> : vector<128x128xf32>
    %246 = tpu.matmul %244, %245, %cst_126 {dimension_numbers = #tpu.dot_dimension_numbers<[1], [0], [0], [1], [0, 0, 1, 1], [], []>} : vector<128x128xf32>, vector<128x128xf32>, vector<128x128xf32> -> vector<128x128xf32>
    %c0_127 = arith.constant 0 : index
    %c0_128 = arith.constant 0 : index
    %247 = vector.load %arg5[%c0_127, %c0_128] : memref<1x128xf32, #tpu.memory_space<vmem>>, vector<1x128xf32>
    %248 = vector.broadcast %247 : vector<1x128xf32> to vector<128x128xf32>
    %249 = arith.addf %246, %248 : vector<128x128xf32>
    %250 = vector.shape_cast %243 : vector<2x8x8x128xf32> to vector<128x128xf32>
    %c0_129 = arith.constant 0 : index
    %c0_130 = arith.constant 0 : index
    %251 = vector.load %arg6[%c0_129, %c0_130] : memref<128x128xf32, #tpu.memory_space<vmem>>, vector<128x128xf32>
    %cst_131 = arith.constant dense<0.000000e+00> : vector<128x128xf32>
    %252 = tpu.matmul %250, %251, %cst_131 {dimension_numbers = #tpu.dot_dimension_numbers<[1], [0], [0], [1], [0, 0, 1, 1], [], []>} : vector<128x128xf32>, vector<128x128xf32>, vector<128x128xf32> -> vector<128x128xf32>
    %c0_132 = arith.constant 0 : index
    %c0_133 = arith.constant 0 : index
    %253 = vector.load %arg7[%c0_132, %c0_133] : memref<1x128xf32, #tpu.memory_space<vmem>>, vector<1x128xf32>
    %254 = vector.broadcast %253 : vector<1x128xf32> to vector<128x128xf32>
    %255 = arith.addf %252, %254 : vector<128x128xf32>
    %cst_134 = arith.constant 0.000000e+00 : f32
    %256 = vector.broadcast %cst_134 : f32 to vector<128x128xf32>
    %257 = arith.maximumf %249, %256 : vector<128x128xf32>
    %cst_135 = arith.constant 0.000000e+00 : f32
    %258 = vector.broadcast %cst_135 : f32 to vector<128x128xf32>
    %259 = arith.maximumf %255, %258 : vector<128x128xf32>
    %260 = arith.addf %257, %259 : vector<128x128xf32>
    %261 = vector.shape_cast %260 : vector<128x128xf32> to vector<2x8x8x128xf32>
    %262 = tpu.iota {dimensions = array<i32: 0>} : vector<8x1xi32>
    %c0_i32 = arith.constant 0 : i32
    %263 = vector.broadcast %c0_i32 : i32 to vector<8x1xi32>
    %264 = arith.cmpi eq, %262, %263 : vector<8x1xi32>
    %c7_i32 = arith.constant 7 : i32
    %265 = vector.broadcast %c7_i32 : i32 to vector<8x1xi32>
    %266 = arith.cmpi eq, %262, %265 : vector<8x1xi32>
    %267 = vector.extract_strided_slice %261 {offsets = [0, 0, 0, 0], sizes = [2, 1, 8, 128], strides = [1, 1, 1, 1]} : vector<2x8x8x128xf32> to vector<2x1x8x128xf32>
    %c1_i32 = arith.constant 1 : i32
    %268 = tpu.dynamic_rotate %267 by %c1_i32 dim 2 : vector<2x1x8x128xf32>, i32 -> vector<2x1x8x128xf32>
    %269 = vector.shape_cast %264 : vector<8x1xi1> to vector<1x1x8x1xi1>
    %270 = vector.broadcast %269 : vector<1x1x8x1xi1> to vector<2x1x8x128xi1>
    %271 = arith.select %270, %267, %268 : vector<2x1x8x128xi1>, vector<2x1x8x128xf32>
    %c7_i32_136 = arith.constant 7 : i32
    %272 = tpu.dynamic_rotate %267 by %c7_i32_136 dim 2 : vector<2x1x8x128xf32>, i32 -> vector<2x1x8x128xf32>
    %273 = vector.shape_cast %266 : vector<8x1xi1> to vector<1x1x8x1xi1>
    %274 = vector.broadcast %273 : vector<1x1x8x1xi1> to vector<2x1x8x128xi1>
    %275 = arith.select %274, %267, %272 : vector<2x1x8x128xi1>, vector<2x1x8x128xf32>
    %cst_137 = arith.constant 7.500000e-01 : f32
    %276 = vector.broadcast %cst_137 : f32 to vector<2x1x8x128xf32>
    %277 = arith.mulf %276, %267 : vector<2x1x8x128xf32>
    %cst_138 = arith.constant 2.500000e-01 : f32
    %278 = vector.broadcast %cst_138 : f32 to vector<2x1x8x128xf32>
    %279 = arith.mulf %278, %271 : vector<2x1x8x128xf32>
    %280 = arith.addf %277, %279 : vector<2x1x8x128xf32>
    %c0_139 = arith.constant 0 : index
    %c0_140 = arith.constant 0 : index
    %c0_141 = arith.constant 0 : index
    %c0_142 = arith.constant 0 : index
    %c0_143 = arith.constant 0 : index
    %281 = vector.load %arg8[%c0_139, %c0_140, %c0_141, %c0_142, %c0_143] : memref<2x8x2x8x256xf32, #tpu.memory_space<vmem>>, vector<2x1x1x8x128xf32>
    %282 = vector.shape_cast %281 : vector<2x1x1x8x128xf32> to vector<2x1x8x128xf32>
    %283 = vector.shape_cast %280 : vector<2x1x8x128xf32> to vector<2x1x1x8x128xf32>
    tpu.vector_store %arg8[%c0_139, %c0_140, %c0_141, %c0_142, %c0_143], %283 {strides = array<i32>} : memref<2x8x2x8x256xf32, #tpu.memory_space<vmem>>, vector<2x1x1x8x128xf32>,
    %cst_144 = arith.constant 7.500000e-01 : f32
    %284 = vector.broadcast %cst_144 : f32 to vector<2x1x8x128xf32>
    %285 = arith.mulf %284, %267 : vector<2x1x8x128xf32>
    %cst_145 = arith.constant 2.500000e-01 : f32
    %286 = vector.broadcast %cst_145 : f32 to vector<2x1x8x128xf32>
    %287 = arith.mulf %286, %275 : vector<2x1x8x128xf32>
    %288 = arith.addf %285, %287 : vector<2x1x8x128xf32>
    %c0_146 = arith.constant 0 : index
    %c0_147 = arith.constant 0 : index
    %c0_148 = arith.constant 0 : index
    %c0_149 = arith.constant 0 : index
    %c128 = arith.constant 128 : index
    %289 = vector.load %arg8[%c0_146, %c0_147, %c0_148, %c0_149, %c128] : memref<2x8x2x8x256xf32, #tpu.memory_space<vmem>>, vector<2x1x1x8x128xf32>
    %290 = vector.shape_cast %289 : vector<2x1x1x8x128xf32> to vector<2x1x8x128xf32>
    %291 = vector.shape_cast %288 : vector<2x1x8x128xf32> to vector<2x1x1x8x128xf32>
    tpu.vector_store %arg8[%c0_146, %c0_147, %c0_148, %c0_149, %c128], %291 {strides = array<i32>} : memref<2x8x2x8x256xf32, #tpu.memory_space<vmem>>, vector<2x1x1x8x128xf32>,
    %292 = vector.extract_strided_slice %261 {offsets = [0, 1, 0, 0], sizes = [2, 7, 8, 128], strides = [1, 1, 1, 1]} : vector<2x8x8x128xf32> to vector<2x7x8x128xf32>
    %cst_150 = arith.constant 7.500000e-01 : f32
    %293 = vector.broadcast %cst_150 : f32 to vector<2x7x8x128xf32>
    %294 = arith.mulf %293, %292 : vector<2x7x8x128xf32>
    %295 = vector.extract_strided_slice %261 {offsets = [0, 0, 0, 0], sizes = [2, 7, 8, 128], strides = [1, 1, 1, 1]} : vector<2x8x8x128xf32> to vector<2x7x8x128xf32>
    %cst_151 = arith.constant 2.500000e-01 : f32
    %296 = vector.broadcast %cst_151 : f32 to vector<2x7x8x128xf32>
    %297 = arith.mulf %296, %295 : vector<2x7x8x128xf32>
    %298 = arith.addf %294, %297 : vector<2x7x8x128xf32>
    %c1_i32_152 = arith.constant 1 : i32
    %299 = tpu.dynamic_rotate %298 by %c1_i32_152 dim 2 : vector<2x7x8x128xf32>, i32 -> vector<2x7x8x128xf32>
    %300 = vector.shape_cast %264 : vector<8x1xi1> to vector<1x1x8x1xi1>
    %301 = vector.broadcast %300 : vector<1x1x8x1xi1> to vector<2x7x8x128xi1>
    %302 = arith.select %301, %298, %299 : vector<2x7x8x128xi1>, vector<2x7x8x128xf32>
    %c7_i32_153 = arith.constant 7 : i32
    %303 = tpu.dynamic_rotate %298 by %c7_i32_153 dim 2 : vector<2x7x8x128xf32>, i32 -> vector<2x7x8x128xf32>
    %304 = vector.shape_cast %266 : vector<8x1xi1> to vector<1x1x8x1xi1>
    %305 = vector.broadcast %304 : vector<1x1x8x1xi1> to vector<2x7x8x128xi1>
    %306 = arith.select %305, %298, %303 : vector<2x7x8x128xi1>, vector<2x7x8x128xf32>
    %cst_154 = arith.constant 7.500000e-01 : f32
    %307 = vector.broadcast %cst_154 : f32 to vector<2x7x8x128xf32>
    %308 = arith.mulf %307, %298 : vector<2x7x8x128xf32>
    %cst_155 = arith.constant 2.500000e-01 : f32
    %309 = vector.broadcast %cst_155 : f32 to vector<2x7x8x128xf32>
    %310 = arith.mulf %309, %302 : vector<2x7x8x128xf32>
    %311 = arith.addf %308, %310 : vector<2x7x8x128xf32>
    %c0_156 = arith.constant 0 : index
    %c1_157 = arith.constant 1 : index
    %c0_158 = arith.constant 0 : index
    %c0_159 = arith.constant 0 : index
    %c0_160 = arith.constant 0 : index
    %312 = vector.load %arg8[%c0_156, %c1_157, %c0_158, %c0_159, %c0_160] : memref<2x8x2x8x256xf32, #tpu.memory_space<vmem>>, vector<2x7x1x8x128xf32>
    %313 = vector.shape_cast %312 : vector<2x7x1x8x128xf32> to vector<2x7x8x128xf32>
    %314 = vector.shape_cast %311 : vector<2x7x8x128xf32> to vector<2x7x1x8x128xf32>
    tpu.vector_store %arg8[%c0_156, %c1_157, %c0_158, %c0_159, %c0_160], %314 {strides = array<i32>} : memref<2x8x2x8x256xf32, #tpu.memory_space<vmem>>, vector<2x7x1x8x128xf32>,
    %cst_161 = arith.constant 7.500000e-01 : f32
    %315 = vector.broadcast %cst_161 : f32 to vector<2x7x8x128xf32>
    %316 = arith.mulf %315, %298 : vector<2x7x8x128xf32>
    %cst_162 = arith.constant 2.500000e-01 : f32
    %317 = vector.broadcast %cst_162 : f32 to vector<2x7x8x128xf32>
    %318 = arith.mulf %317, %306 : vector<2x7x8x128xf32>
    %319 = arith.addf %316, %318 : vector<2x7x8x128xf32>
    %c0_163 = arith.constant 0 : index
    %c1_164 = arith.constant 1 : index
    %c0_165 = arith.constant 0 : index
    %c0_166 = arith.constant 0 : index
    %c128_167 = arith.constant 128 : index
    %320 = vector.load %arg8[%c0_163, %c1_164, %c0_165, %c0_166, %c128_167] : memref<2x8x2x8x256xf32, #tpu.memory_space<vmem>>, vector<2x7x1x8x128xf32>
    %321 = vector.shape_cast %320 : vector<2x7x1x8x128xf32> to vector<2x7x8x128xf32>
    %322 = vector.shape_cast %319 : vector<2x7x8x128xf32> to vector<2x7x1x8x128xf32>
    tpu.vector_store %arg8[%c0_163, %c1_164, %c0_165, %c0_166, %c128_167], %322 {strides = array<i32>} : memref<2x8x2x8x256xf32, #tpu.memory_space<vmem>>, vector<2x7x1x8x128xf32>,
    %323 = vector.extract_strided_slice %261 {offsets = [0, 0, 0, 0], sizes = [2, 7, 8, 128], strides = [1, 1, 1, 1]} : vector<2x8x8x128xf32> to vector<2x7x8x128xf32>
    %cst_168 = arith.constant 7.500000e-01 : f32
    %324 = vector.broadcast %cst_168 : f32 to vector<2x7x8x128xf32>
    %325 = arith.mulf %324, %323 : vector<2x7x8x128xf32>
    %326 = vector.extract_strided_slice %261 {offsets = [0, 1, 0, 0], sizes = [2, 7, 8, 128], strides = [1, 1, 1, 1]} : vector<2x8x8x128xf32> to vector<2x7x8x128xf32>
    %cst_169 = arith.constant 2.500000e-01 : f32
    %327 = vector.broadcast %cst_169 : f32 to vector<2x7x8x128xf32>
    %328 = arith.mulf %327, %326 : vector<2x7x8x128xf32>
    %329 = arith.addf %325, %328 : vector<2x7x8x128xf32>
    %c1_i32_170 = arith.constant 1 : i32
    %330 = tpu.dynamic_rotate %329 by %c1_i32_170 dim 2 : vector<2x7x8x128xf32>, i32 -> vector<2x7x8x128xf32>
    %331 = vector.shape_cast %264 : vector<8x1xi1> to vector<1x1x8x1xi1>
    %332 = vector.broadcast %331 : vector<1x1x8x1xi1> to vector<2x7x8x128xi1>
    %333 = arith.select %332, %329, %330 : vector<2x7x8x128xi1>, vector<2x7x8x128xf32>
    %c7_i32_171 = arith.constant 7 : i32
    %334 = tpu.dynamic_rotate %329 by %c7_i32_171 dim 2 : vector<2x7x8x128xf32>, i32 -> vector<2x7x8x128xf32>
    %335 = vector.shape_cast %266 : vector<8x1xi1> to vector<1x1x8x1xi1>
    %336 = vector.broadcast %335 : vector<1x1x8x1xi1> to vector<2x7x8x128xi1>
    %337 = arith.select %336, %329, %334 : vector<2x7x8x128xi1>, vector<2x7x8x128xf32>
    %cst_172 = arith.constant 7.500000e-01 : f32
    %338 = vector.broadcast %cst_172 : f32 to vector<2x7x8x128xf32>
    %339 = arith.mulf %338, %329 : vector<2x7x8x128xf32>
    %cst_173 = arith.constant 2.500000e-01 : f32
    %340 = vector.broadcast %cst_173 : f32 to vector<2x7x8x128xf32>
    %341 = arith.mulf %340, %333 : vector<2x7x8x128xf32>
    %342 = arith.addf %339, %341 : vector<2x7x8x128xf32>
    %c0_174 = arith.constant 0 : index
    %c0_175 = arith.constant 0 : index
    %c1_176 = arith.constant 1 : index
    %c0_177 = arith.constant 0 : index
    %c0_178 = arith.constant 0 : index
    %343 = vector.load %arg8[%c0_174, %c0_175, %c1_176, %c0_177, %c0_178] : memref<2x8x2x8x256xf32, #tpu.memory_space<vmem>>, vector<2x7x1x8x128xf32>
    %344 = vector.shape_cast %343 : vector<2x7x1x8x128xf32> to vector<2x7x8x128xf32>
    %345 = vector.shape_cast %342 : vector<2x7x8x128xf32> to vector<2x7x1x8x128xf32>
    tpu.vector_store %arg8[%c0_174, %c0_175, %c1_176, %c0_177, %c0_178], %345 {strides = array<i32>} : memref<2x8x2x8x256xf32, #tpu.memory_space<vmem>>, vector<2x7x1x8x128xf32>,
    %cst_179 = arith.constant 7.500000e-01 : f32
    %346 = vector.broadcast %cst_179 : f32 to vector<2x7x8x128xf32>
    %347 = arith.mulf %346, %329 : vector<2x7x8x128xf32>
    %cst_180 = arith.constant 2.500000e-01 : f32
    %348 = vector.broadcast %cst_180 : f32 to vector<2x7x8x128xf32>
    %349 = arith.mulf %348, %337 : vector<2x7x8x128xf32>
    %350 = arith.addf %347, %349 : vector<2x7x8x128xf32>
    %c0_181 = arith.constant 0 : index
    %c0_182 = arith.constant 0 : index
    %c1_183 = arith.constant 1 : index
    %c0_184 = arith.constant 0 : index
    %c128_185 = arith.constant 128 : index
    %351 = vector.load %arg8[%c0_181, %c0_182, %c1_183, %c0_184, %c128_185] : memref<2x8x2x8x256xf32, #tpu.memory_space<vmem>>, vector<2x7x1x8x128xf32>
    %352 = vector.shape_cast %351 : vector<2x7x1x8x128xf32> to vector<2x7x8x128xf32>
    %353 = vector.shape_cast %350 : vector<2x7x8x128xf32> to vector<2x7x1x8x128xf32>
    tpu.vector_store %arg8[%c0_181, %c0_182, %c1_183, %c0_184, %c128_185], %353 {strides = array<i32>} : memref<2x8x2x8x256xf32, #tpu.memory_space<vmem>>, vector<2x7x1x8x128xf32>,
    %354 = vector.extract_strided_slice %261 {offsets = [0, 7, 0, 0], sizes = [2, 1, 8, 128], strides = [1, 1, 1, 1]} : vector<2x8x8x128xf32> to vector<2x1x8x128xf32>
    %c1_i32_186 = arith.constant 1 : i32
    %355 = tpu.dynamic_rotate %354 by %c1_i32_186 dim 2 : vector<2x1x8x128xf32>, i32 -> vector<2x1x8x128xf32>
    %356 = vector.shape_cast %264 : vector<8x1xi1> to vector<1x1x8x1xi1>
    %357 = vector.broadcast %356 : vector<1x1x8x1xi1> to vector<2x1x8x128xi1>
    %358 = arith.select %357, %354, %355 : vector<2x1x8x128xi1>, vector<2x1x8x128xf32>
    %c7_i32_187 = arith.constant 7 : i32
    %359 = tpu.dynamic_rotate %354 by %c7_i32_187 dim 2 : vector<2x1x8x128xf32>, i32 -> vector<2x1x8x128xf32>
    %360 = vector.shape_cast %266 : vector<8x1xi1> to vector<1x1x8x1xi1>
    %361 = vector.broadcast %360 : vector<1x1x8x1xi1> to vector<2x1x8x128xi1>
    %362 = arith.select %361, %354, %359 : vector<2x1x8x128xi1>, vector<2x1x8x128xf32>
    %cst_188 = arith.constant 7.500000e-01 : f32
    %363 = vector.broadcast %cst_188 : f32 to vector<2x1x8x128xf32>
    %364 = arith.mulf %363, %354 : vector<2x1x8x128xf32>
    %cst_189 = arith.constant 2.500000e-01 : f32
    %365 = vector.broadcast %cst_189 : f32 to vector<2x1x8x128xf32>
    %366 = arith.mulf %365, %358 : vector<2x1x8x128xf32>
    %367 = arith.addf %364, %366 : vector<2x1x8x128xf32>
    %c0_190 = arith.constant 0 : index
    %c7_191 = arith.constant 7 : index
    %c1_192 = arith.constant 1 : index
    %c0_193 = arith.constant 0 : index
    %c0_194 = arith.constant 0 : index
    %368 = vector.load %arg8[%c0_190, %c7_191, %c1_192, %c0_193, %c0_194] : memref<2x8x2x8x256xf32, #tpu.memory_space<vmem>>, vector<2x1x1x8x128xf32>
    %369 = vector.shape_cast %368 : vector<2x1x1x8x128xf32> to vector<2x1x8x128xf32>
    %370 = vector.shape_cast %367 : vector<2x1x8x128xf32> to vector<2x1x1x8x128xf32>
    tpu.vector_store %arg8[%c0_190, %c7_191, %c1_192, %c0_193, %c0_194], %370 {strides = array<i32>} : memref<2x8x2x8x256xf32, #tpu.memory_space<vmem>>, vector<2x1x1x8x128xf32>,
    %cst_195 = arith.constant 7.500000e-01 : f32
    %371 = vector.broadcast %cst_195 : f32 to vector<2x1x8x128xf32>
    %372 = arith.mulf %371, %354 : vector<2x1x8x128xf32>
    %cst_196 = arith.constant 2.500000e-01 : f32
    %373 = vector.broadcast %cst_196 : f32 to vector<2x1x8x128xf32>
    %374 = arith.mulf %373, %362 : vector<2x1x8x128xf32>
    %375 = arith.addf %372, %374 : vector<2x1x8x128xf32>
    %c0_197 = arith.constant 0 : index
    %c7_198 = arith.constant 7 : index
    %c1_199 = arith.constant 1 : index
    %c0_200 = arith.constant 0 : index
    %c128_201 = arith.constant 128 : index
    %376 = vector.load %arg8[%c0_197, %c7_198, %c1_199, %c0_200, %c128_201] : memref<2x8x2x8x256xf32, #tpu.memory_space<vmem>>, vector<2x1x1x8x128xf32>
    %377 = vector.shape_cast %376 : vector<2x1x1x8x128xf32> to vector<2x1x8x128xf32>
    %378 = vector.shape_cast %375 : vector<2x1x8x128xf32> to vector<2x1x1x8x128xf32>
    tpu.vector_store %arg8[%c0_197, %c7_198, %c1_199, %c0_200, %c128_201], %378 {strides = array<i32>} : memref<2x8x2x8x256xf32, #tpu.memory_space<vmem>>, vector<2x1x1x8x128xf32>,
    return
  }
  func.func @transform_0(%arg0: i32) -> (i32, i32, i32, i32) {
    %c0_i32 = arith.constant 0 : i32
    %c0_i32_0 = arith.constant 0 : i32
    %c0_i32_1 = arith.constant 0 : i32
    %c0_i32_2 = arith.constant 0 : i32
    return %arg0, %c0_i32, %c0_i32_0, %c0_i32_1 : i32, i32, i32, i32
  }
  func.func @transform_1(%arg0: i32) -> (i32, i32, i32) {
    %c0_i32 = arith.constant 0 : i32
    %c0_i32_0 = arith.constant 0 : i32
    %c0_i32_1 = arith.constant 0 : i32
    %c0_i32_2 = arith.constant 0 : i32
    return %c0_i32, %c0_i32_0, %c0_i32_1 : i32, i32, i32
  }
  func.func @transform_2(%arg0: i32) -> (i32, i32, i32) {
    %c0_i32 = arith.constant 0 : i32
    %c0_i32_0 = arith.constant 0 : i32
    %c0_i32_1 = arith.constant 0 : i32
    %c0_i32_2 = arith.constant 0 : i32
    return %c0_i32, %c0_i32_0, %c0_i32_1 : i32, i32, i32
  }
  func.func @transform_3(%arg0: i32) -> (i32, i32) {
    %c0_i32 = arith.constant 0 : i32
    %c0_i32_0 = arith.constant 0 : i32
    %c0_i32_1 = arith.constant 0 : i32
    return %c0_i32, %c0_i32_0 : i32, i32
  }
  func.func @transform_4(%arg0: i32) -> (i32, i32) {
    %c0_i32 = arith.constant 0 : i32
    %c0_i32_0 = arith.constant 0 : i32
    %c0_i32_1 = arith.constant 0 : i32
    return %c0_i32, %c0_i32_0 : i32, i32
  }
  func.func @transform_5(%arg0: i32) -> (i32, i32) {
    %c0_i32 = arith.constant 0 : i32
    %c0_i32_0 = arith.constant 0 : i32
    %c0_i32_1 = arith.constant 0 : i32
    return %c0_i32, %c0_i32_0 : i32, i32
  }
  func.func @transform_6(%arg0: i32) -> (i32, i32) {
    %c0_i32 = arith.constant 0 : i32
    %c0_i32_0 = arith.constant 0 : i32
    %c0_i32_1 = arith.constant 0 : i32
    return %c0_i32, %c0_i32_0 : i32, i32
  }
  func.func @transform_7(%arg0: i32) -> (i32, i32, i32, i32, i32) {
    %c0_i32 = arith.constant 0 : i32
    %c0_i32_0 = arith.constant 0 : i32
    %c0_i32_1 = arith.constant 0 : i32
    %c0_i32_2 = arith.constant 0 : i32
    %c0_i32_3 = arith.constant 0 : i32
    return %arg0, %c0_i32, %c0_i32_0, %c0_i32_1, %c0_i32_2 : i32, i32, i32, i32, i32
  }
}

</mosaic_0001>

<llo_original>
// kernel: complex_upsample_pallas.1
$region0: #{complex_upsample_pallas.1}
  #allocation0 [shape = 'u32[]', space=smem, size = 0x4, offset = 0x4, fixed_abs, tag = 'smem constant byte address 0x4 - core index']
  #allocation1 [shape = 'u32[72,128]{1,0:T(1,128)}', space=vmem, size = 0x9000, scoped, tag = 'internal scratch']
  #allocation2 [shape = 'f32[2,12,24,128]{3,2,1,0:T(8,128)}', space=vmem, size = 0x48000, scoped, tag = 'scratch operand']
  %s0 = inlined_call_operand.vmem [shape: f32[2,8,8,128], index: 0, kind: input, shape index: {}]
  %s1 = inlined_call_operand.vmem [shape: f32[9,8,128], index: 1, kind: input, shape index: {}]
  %s2 = inlined_call_operand.vmem [shape: f32[25,8,128], index: 2, kind: input, shape index: {}]
  %s3 = inlined_call_operand.vmem [shape: f32[128,128], index: 3, kind: input, shape index: {}]
  %s4 = inlined_call_operand.vmem [shape: f32[1,128], index: 4, kind: input, shape index: {}]
  %s5 = inlined_call_operand.hbm [shape: f32[128,128], index: 5, kind: input, shape index: {}]
  %s6 = inlined_call_operand.vmem [shape: f32[1,128], index: 6, kind: input, shape index: {}]
  %s7 = inlined_call_operand.vmem [shape: f32[2,8,2,8,256], index: 7, kind: output, shape index: {}]
  %s8 = sld [smem:[#allocation0]]
  $region42: #{complex_upsample_pallas.1} parent=0
    _
  %s10 = ssub.s32 1, %s8
  %s11 = scalar_select 0, %s10, %s8
  $region1: #{complex_upsample_pallas.1} parent=0
    #allocation3 [shape = 'u8[65536]{0}', space=vmem, size = 0x10000, scoped, tag = 'input window, operand 5, single buffered']
    #allocation4 [shape = 's32[1]{0}', space=sflag, size = 0x4, scoped, tag = 'scoped memory for complex_upsample_pallas.1']
    %12 = vsyncpa [#allocation4], 0
    // Predicated region
    $region2: #{complex_upsample_pallas.1} parent=1 // pred_check
      _
    $region3: #{complex_upsample_pallas.1} parent=1 // pred_check_branch
      %14 = sbr.rel (0) target = $region5
    $region4: #{complex_upsample_pallas.1} parent=1 // pred_region
      _
    $region5: #{complex_upsample_pallas.1} parent=1 // pred_fallthru
      _
    // Predicated region
    $region6: #{complex_upsample_pallas.1} parent=1 // pred_check
      _
    $region7: #{complex_upsample_pallas.1} parent=1 // pred_check_branch
      %16 = sbr.rel (0) target = $region9
    $region8: #{complex_upsample_pallas.1} parent=1 // pred_region
      _
    $region9: #{complex_upsample_pallas.1} parent=1 // pred_fallthru
      _
    // Predicated region
    $region10: #{complex_upsample_pallas.1} parent=1 // pred_check
      _
    $region11: #{complex_upsample_pallas.1} parent=1 // pred_check_branch
      %18 = sbr.rel (0) target = $region13
    $region12: #{complex_upsample_pallas.1} parent=1 // pred_region
      _
    $region13: #{complex_upsample_pallas.1} parent=1 // pred_fallthru
      _
    // Predicated region
    $region14: #{complex_upsample_pallas.1} parent=1 // pred_check
      _
    $region15: #{complex_upsample_pallas.1} parent=1 // pred_check_branch
      %20 = sbr.rel (0) target = $region17
    $region16: #{complex_upsample_pallas.1} parent=1 // pred_region
      _
    $region17: #{complex_upsample_pallas.1} parent=1 // pred_fallthru
      _
    // Predicated region
    $region18: #{complex_upsample_pallas.1} parent=1 // pred_check
      _
    $region19: #{complex_upsample_pallas.1} parent=1 // pred_check_branch
      %22 = sbr.rel (0) target = $region21
    $region20: #{complex_upsample_pallas.1} parent=1 // pred_region
      _
    $region21: #{complex_upsample_pallas.1} parent=1 // pred_fallthru
      _
    // Predicated region
    $region22: #{complex_upsample_pallas.1} parent=1 // pred_check
      _
    $region23: #{complex_upsample_pallas.1} parent=1 // pred_check_branch
      %24 = sbr.rel (0) target = $region25
    $region24: #{complex_upsample_pallas.1} parent=1 // pred_region
      %26 = vsyncadd [#allocation4], 0
      %s27 = sshll.u32 %s5, 4
      %s28 = int_to_ptr.hbm [resolvable:$true] %s27
      %s29 = sshll.u32 [#allocation3], 4
      %s30 = int_to_ptr.vmem [resolvable:$true] %s29
      %35 = dma.hbm_to_vmem [thread:$0]  %s28, 2048, %s30, [#allocation4], 128, 128, 8
    $region25: #{complex_upsample_pallas.1} parent=1 // pred_fallthru
      _
    // Predicated region
    $region26: #{complex_upsample_pallas.1} parent=1 // pred_check
      _
    $region27: #{complex_upsample_pallas.1} parent=1 // pred_check_branch
      %37 = sbr.rel (0) target = $region29
    $region28: #{complex_upsample_pallas.1} parent=1 // pred_region
      _
    $region29: #{complex_upsample_pallas.1} parent=1 // pred_fallthru
      _
    // Predicated region
    $region30: #{complex_upsample_pallas.1} parent=1 // pred_check
      _
    $region31: #{complex_upsample_pallas.1} parent=1 // pred_check_branch
      %39 = sbr.rel (0) target = $region33
    $region32: #{complex_upsample_pallas.1} parent=1 // pred_region
      %41 = dma.done [#allocation4], 2048
    $region33: #{complex_upsample_pallas.1} parent=1 // pred_fallthru
      _
    %42 = vst [vmem:[#allocation2] sm:$0xff] 0.0
    %43 = vst [vmem:[#allocation2 + $0x8] sm:$0xff] 0.0
    %44 = vst [vmem:[#allocation2 + $0x10] sm:$0xff] 0.0
    %45 = vst [vmem:[#allocation2 + $0x18] sm:$0xff] 0.0
    %46 = vst [vmem:[#allocation2 + $0x20] sm:$0xff] 0.0
    %47 = vst [vmem:[#allocation2 + $0x28] sm:$0xff] 0.0
    %48 = vst [vmem:[#allocation2 + $0x120] sm:$0xff] 0.0
    %49 = vst [vmem:[#allocation2 + $0x128] sm:$0xff] 0.0
    %50 = vst [vmem:[#allocation2 + $0x130] sm:$0xff] 0.0
    %51 = vst [vmem:[#allocation2 + $0x138] sm:$0xff] 0.0
    %52 = vst [vmem:[#allocation2 + $0x140] sm:$0xff] 0.0
    %53 = vst [vmem:[#allocation2 + $0x148] sm:$0xff] 0.0
    %s54 = scalar_lea.vmem [#allocation2], 240
    %55 = vst [vmem:[%s54] sm:$0xff] 0.0
    %56 = vst [vmem:[%s54 + $0x8] sm:$0xff] 0.0
    %57 = vst [vmem:[%s54 + $0x10] sm:$0xff] 0.0
    %58 = vst [vmem:[%s54 + $0x18] sm:$0xff] 0.0
    %59 = vst [vmem:[%s54 + $0x20] sm:$0xff] 0.0
    %60 = vst [vmem:[%s54 + $0x28] sm:$0xff] 0.0
    %61 = vst [vmem:[%s54 + $0x120] sm:$0xff] 0.0
    %62 = vst [vmem:[%s54 + $0x128] sm:$0xff] 0.0
    %63 = vst [vmem:[%s54 + $0x130] sm:$0xff] 0.0
    %64 = vst [vmem:[%s54 + $0x138] sm:$0xff] 0.0
    %65 = vst [vmem:[%s54 + $0x140] sm:$0xff] 0.0
    %66 = vst [vmem:[%s54 + $0x148] sm:$0xff] 0.0
    %s67 = scalar_lea.vmem [#allocation2], 48
    %68 = vst [vmem:[%s67 + $0x6] sm:$0x3] 0.0
    %69 = vst [vmem:[%s67 + $0x1e] sm:$0x3] 0.0
    %70 = vst [vmem:[%s67 + $0x36] sm:$0x3] 0.0
    %71 = vst [vmem:[%s67 + $0x4e] sm:$0x3] 0.0
    %72 = vst [vmem:[%s67 + $0x66] sm:$0x3] 0.0
    %73 = vst [vmem:[%s67 + $0x7e] sm:$0x3] 0.0
    %74 = vst [vmem:[%s67 + $0x96] sm:$0x3] 0.0
    %75 = vst [vmem:[%s67 + $0xae] sm:$0x3] 0.0
    %76 = vst [vmem:[%s67 + $0x126] sm:$0x3] 0.0
    %77 = vst [vmem:[%s67 + $0x13e] sm:$0x3] 0.0
    %78 = vst [vmem:[%s67 + $0x156] sm:$0x3] 0.0
    %79 = vst [vmem:[%s67 + $0x16e] sm:$0x3] 0.0
    %80 = vst [vmem:[%s67 + $0x186] sm:$0x3] 0.0
    %81 = vst [vmem:[%s67 + $0x19e] sm:$0x3] 0.0
    %82 = vst [vmem:[%s67 + $0x1b6] sm:$0x3] 0.0
    %83 = vst [vmem:[%s67 + $0x1ce] sm:$0x3] 0.0
    %84 = vst [vmem:[%s67 + $0x10] sm:$0x3] 0.0
    %85 = vst [vmem:[%s67 + $0x28] sm:$0x3] 0.0
    %86 = vst [vmem:[%s67 + $0x40] sm:$0x3] 0.0
    %87 = vst [vmem:[%s67 + $0x58] sm:$0x3] 0.0
    %88 = vst [vmem:[%s67 + $0x70] sm:$0x3] 0.0
    %89 = vst [vmem:[%s67 + $0x88] sm:$0x3] 0.0
    %90 = vst [vmem:[%s67 + $0xa0] sm:$0x3] 0.0
    %91 = vst [vmem:[%s67 + $0xb8] sm:$0x3] 0.0
    %92 = vst [vmem:[%s67 + $0x130] sm:$0x3] 0.0
    %93 = vst [vmem:[%s67 + $0x148] sm:$0x3] 0.0
    %94 = vst [vmem:[%s67 + $0x160] sm:$0x3] 0.0
    %95 = vst [vmem:[%s67 + $0x178] sm:$0x3] 0.0
    %96 = vst [vmem:[%s67 + $0x190] sm:$0x3] 0.0
    %97 = vst [vmem:[%s67 + $0x1a8] sm:$0x3] 0.0
    %98 = vst [vmem:[%s67 + $0x1c0] sm:$0x3] 0.0
    %99 = vst [vmem:[%s67 + $0x1d8] sm:$0x3] 0.0
    %v100 = vld [vmem:[%s0] sm:$0xff]
    %v101 = vld [vmem:[%s0 + $0x8] sm:$0xff]
    %v102 = vld [vmem:[%s0 + $0x10] sm:$0xff]
    %v103 = vld [vmem:[%s0 + $0x18] sm:$0xff]
    %v104 = vld [vmem:[%s0 + $0x20] sm:$0xff]
    %v105 = vld [vmem:[%s0 + $0x28] sm:$0xff]
    %v106 = vld [vmem:[%s0 + $0x30] sm:$0xff]
    %v107 = vld [vmem:[%s0 + $0x38] sm:$0xff]
    %v108 = vld [vmem:[%s0 + $0x40] sm:$0xff]
    %v109 = vld [vmem:[%s0 + $0x48] sm:$0xff]
    %v110 = vld [vmem:[%s0 + $0x50] sm:$0xff]
    %v111 = vld [vmem:[%s0 + $0x58] sm:$0xff]
    %v112 = vld [vmem:[%s0 + $0x60] sm:$0xff]
    %v113 = vld [vmem:[%s0 + $0x68] sm:$0xff]
    %v114 = vld [vmem:[%s0 + $0x70] sm:$0xff]
    %v115 = vld [vmem:[%s0 + $0x78] sm:$0xff]
    %116 = vst [vmem:[%s67 + $0x8] sm:$0xff] %v100
    %117 = vst [vmem:[%s67 + $0x20] sm:$0xff] %v101
    %118 = vst [vmem:[%s67 + $0x38] sm:$0xff] %v102
    %119 = vst [vmem:[%s67 + $0x50] sm:$0xff] %v103
    %120 = vst [vmem:[%s67 + $0x68] sm:$0xff] %v104
    %121 = vst [vmem:[%s67 + $0x80] sm:$0xff] %v105
    %122 = vst [vmem:[%s67 + $0x98] sm:$0xff] %v106
    %123 = vst [vmem:[%s67 + $0xb0] sm:$0xff] %v107
    %124 = vst [vmem:[%s67 + $0x128] sm:$0xff] %v108
    %125 = vst [vmem:[%s67 + $0x140] sm:$0xff] %v109
    %126 = vst [vmem:[%s67 + $0x158] sm:$0xff] %v110
    %127 = vst [vmem:[%s67 + $0x170] sm:$0xff] %v111
    %128 = vst [vmem:[%s67 + $0x188] sm:$0xff] %v112
    %129 = vst [vmem:[%s67 + $0x1a0] sm:$0xff] %v113
    %130 = vst [vmem:[%s67 + $0x1b8] sm:$0xff] %v114
    %131 = vst [vmem:[%s67 + $0x1d0] sm:$0xff] %v115
    %v132 = vld [vmem:[#allocation2 + $0x6] sm:$0xff]
    %v133 = vld [vmem:[#allocation2 + $0x1e] sm:$0xff]
    %v134 = vld [vmem:[#allocation2 + $0x36] sm:$0xff]
    %v135 = vld [vmem:[#allocation2 + $0x4e] sm:$0xff]
    %v136 = vld [vmem:[#allocation2 + $0x66] sm:$0xff]
    %v137 = vld [vmem:[#allocation2 + $0x7e] sm:$0xff]
    %v138 = vld [vmem:[#allocation2 + $0x96] sm:$0xff]
    %v139 = vld [vmem:[#allocation2 + $0xae] sm:$0xff]
    %v140 = vld [vmem:[#allocation2 + $0xc6] sm:$0xff]
    %v141 = vld [vmem:[#allocation2 + $0xde] sm:$0xff]
    %v142 = vld [vmem:[#allocation2 + $0xf6] sm:$0xff]
    %v143 = vld [vmem:[#allocation2 + $0x10e] sm:$0xff]
    %v144 = vld [vmem:[#allocation2 + $0x126] sm:$0xff]
    %v145 = vld [vmem:[#allocation2 + $0x13e] sm:$0xff]
    %v146 = vld [vmem:[#allocation2 + $0x156] sm:$0xff]
    %v147 = vld [vmem:[#allocation2 + $0x16e] sm:$0xff]
    %v148 = vld [vmem:[#allocation2 + $0x186] sm:$0xff]
    %v149 = vld [vmem:[#allocation2 + $0x19e] sm:$0xff]
    %v150 = vld [vmem:[#allocation2 + $0x1b6] sm:$0xff]
    %v151 = vld [vmem:[#allocation2 + $0x1ce] sm:$0xff]
    %v152 = vld [vmem:[#allocation2 + $0x1e6] sm:$0xff]
    %v153 = vld [vmem:[#allocation2 + $0x1fe] sm:$0xff]
    %v154 = vld [vmem:[#allocation2 + $0x216] sm:$0xff]
    %v155 = vld [vmem:[#allocation2 + $0x22e] sm:$0xff]
    %v156 = vld [vmem:[%s2] sm:$0xff]
    %v157 = vmul.f32 %v132, %v156
    %v158 = vmul.f32 %v133, %v156
    %v159 = vmul.f32 %v134, %v156
    %v160 = vmul.f32 %v135, %v156
    %v161 = vmul.f32 %v136, %v156
    %v162 = vmul.f32 %v137, %v156
    %v163 = vmul.f32 %v138, %v156
    %v164 = vmul.f32 %v139, %v156
    %v165 = vmul.f32 %v144, %v156
    %v166 = vmul.f32 %v145, %v156
    %v167 = vmul.f32 %v146, %v156
    %v168 = vmul.f32 %v147, %v156
    %v169 = vmul.f32 %v148, %v156
    %v170 = vmul.f32 %v149, %v156
    %v171 = vmul.f32 %v150, %v156
    %v172 = vmul.f32 %v151, %v156
    %v173 = vadd.f32 %v157, 0.0
    %v174 = vadd.f32 %v158, 0.0
    %v175 = vadd.f32 %v159, 0.0
    %v176 = vadd.f32 %v160, 0.0
    %v177 = vadd.f32 %v161, 0.0
    %v178 = vadd.f32 %v162, 0.0
    %v179 = vadd.f32 %v163, 0.0
    %v180 = vadd.f32 %v164, 0.0
    %v181 = vadd.f32 %v165, 0.0
    %v182 = vadd.f32 %v166, 0.0
    %v183 = vadd.f32 %v167, 0.0
    %v184 = vadd.f32 %v168, 0.0
    %v185 = vadd.f32 %v169, 0.0
    %v186 = vadd.f32 %v170, 0.0
    %v187 = vadd.f32 %v171, 0.0
    %v188 = vadd.f32 %v172, 0.0
    %s189 = scalar_lea.vmem %s2, 40
    %v190 = vld [vmem:[%s189] sm:$0xff]
    %v191 = vmul.f32 %v133, %v190
    %v192 = vmul.f32 %v134, %v190
    %v193 = vmul.f32 %v135, %v190
    %v194 = vmul.f32 %v136, %v190
    %v195 = vmul.f32 %v137, %v190
    %v196 = vmul.f32 %v138, %v190
    %v197 = vmul.f32 %v139, %v190
    %v198 = vmul.f32 %v140, %v190
    %v199 = vmul.f32 %v145, %v190
    %v200 = vmul.f32 %v146, %v190
    %v201 = vmul.f32 %v147, %v190
    %v202 = vmul.f32 %v148, %v190
    %v203 = vmul.f32 %v149, %v190
    %v204 = vmul.f32 %v150, %v190
    %v205 = vmul.f32 %v151, %v190
    %v206 = vmul.f32 %v152, %v190
    %v207 = vadd.f32 %v173, %v191
    %v208 = vadd.f32 %v174, %v192
    %v209 = vadd.f32 %v175, %v193
    %v210 = vadd.f32 %v176, %v194
    %v211 = vadd.f32 %v177, %v195
    %v212 = vadd.f32 %v178, %v196
    %v213 = vadd.f32 %v179, %v197
    %v214 = vadd.f32 %v180, %v198
    %v215 = vadd.f32 %v181, %v199
    %v216 = vadd.f32 %v182, %v200
    %v217 = vadd.f32 %v183, %v201
    %v218 = vadd.f32 %v184, %v202
    %v219 = vadd.f32 %v185, %v203
    %v220 = vadd.f32 %v186, %v204
    %v221 = vadd.f32 %v187, %v205
    %v222 = vadd.f32 %v188, %v206
    %s223 = scalar_lea.vmem %s2, 80
    %v224 = vld [vmem:[%s223] sm:$0xff]
    %v225 = vmul.f32 %v134, %v224
    %v226 = vmul.f32 %v135, %v224
    %v227 = vmul.f32 %v136, %v224
    %v228 = vmul.f32 %v137, %v224
    %v229 = vmul.f32 %v138, %v224
    %v230 = vmul.f32 %v139, %v224
    %v231 = vmul.f32 %v140, %v224
    %v232 = vmul.f32 %v141, %v224
    %v233 = vmul.f32 %v146, %v224
    %v234 = vmul.f32 %v147, %v224
    %v235 = vmul.f32 %v148, %v224
    %v236 = vmul.f32 %v149, %v224
    %v237 = vmul.f32 %v150, %v224
    %v238 = vmul.f32 %v151, %v224
    %v239 = vmul.f32 %v152, %v224
    %v240 = vmul.f32 %v153, %v224
    %v241 = vadd.f32 %v207, %v225
    %v242 = vadd.f32 %v208, %v226
    %v243 = vadd.f32 %v209, %v227
    %v244 = vadd.f32 %v210, %v228
    %v245 = vadd.f32 %v211, %v229
    %v246 = vadd.f32 %v212, %v230
    %v247 = vadd.f32 %v213, %v231
    %v248 = vadd.f32 %v214, %v232
    %v249 = vadd.f32 %v215, %v233
    %v250 = vadd.f32 %v216, %v234
    %v251 = vadd.f32 %v217, %v235
    %v252 = vadd.f32 %v218, %v236
    %v253 = vadd.f32 %v219, %v237
    %v254 = vadd.f32 %v220, %v238
    %v255 = vadd.f32 %v221, %v239
    %v256 = vadd.f32 %v222, %v240
    %s257 = scalar_lea.vmem %s2, 120
    %v258 = vld [vmem:[%s257] sm:$0xff]
    %v259 = vmul.f32 %v135, %v258
    %v260 = vmul.f32 %v136, %v258
    %v261 = vmul.f32 %v137, %v258
    %v262 = vmul.f32 %v138, %v258
    %v263 = vmul.f32 %v139, %v258
    %v264 = vmul.f32 %v140, %v258
    %v265 = vmul.f32 %v141, %v258
    %v266 = vmul.f32 %v142, %v258
    %v267 = vmul.f32 %v147, %v258
    %v268 = vmul.f32 %v148, %v258
    %v269 = vmul.f32 %v149, %v258
    %v270 = vmul.f32 %v150, %v258
    %v271 = vmul.f32 %v151, %v258
    %v272 = vmul.f32 %v152, %v258
    %v273 = vmul.f32 %v153, %v258
    %v274 = vmul.f32 %v154, %v258
    %v275 = vadd.f32 %v241, %v259
    %v276 = vadd.f32 %v242, %v260
    %v277 = vadd.f32 %v243, %v261
    %v278 = vadd.f32 %v244, %v262
    %v279 = vadd.f32 %v245, %v263
    %v280 = vadd.f32 %v246, %v264
    %v281 = vadd.f32 %v247, %v265
    %v282 = vadd.f32 %v248, %v266
    %v283 = vadd.f32 %v249, %v267
    %v284 = vadd.f32 %v250, %v268
    %v285 = vadd.f32 %v251, %v269
    %v286 = vadd.f32 %v252, %v270
    %v287 = vadd.f32 %v253, %v271
    %v288 = vadd.f32 %v254, %v272
    %v289 = vadd.f32 %v255, %v273
    %v290 = vadd.f32 %v256, %v274
    %s291 = scalar_lea.vmem %s2, 160
    %v292 = vld [vmem:[%s291] sm:$0xff]
    %v293 = vmul.f32 %v136, %v292
    %v294 = vmul.f32 %v137, %v292
    %v295 = vmul.f32 %v138, %v292
    %v296 = vmul.f32 %v139, %v292
    %v297 = vmul.f32 %v140, %v292
    %v298 = vmul.f32 %v141, %v292
    %v299 = vmul.f32 %v142, %v292
    %v300 = vmul.f32 %v143, %v292
    %v301 = vmul.f32 %v148, %v292
    %v302 = vmul.f32 %v149, %v292
    %v303 = vmul.f32 %v150, %v292
    %v304 = vmul.f32 %v151, %v292
    %v305 = vmul.f32 %v152, %v292
    %v306 = vmul.f32 %v153, %v292
    %v307 = vmul.f32 %v154, %v292
    %v308 = vmul.f32 %v155, %v292
    %v309 = vadd.f32 %v275, %v293
    %v310 = vadd.f32 %v276, %v294
    %v311 = vadd.f32 %v277, %v295
    %v312 = vadd.f32 %v278, %v296
    %v313 = vadd.f32 %v279, %v297
    %v314 = vadd.f32 %v280, %v298
    %v315 = vadd.f32 %v281, %v299
    %v316 = vadd.f32 %v282, %v300
    %v317 = vadd.f32 %v283, %v301
    %v318 = vadd.f32 %v284, %v302
    %v319 = vadd.f32 %v285, %v303
    %v320 = vadd.f32 %v286, %v304
    %v321 = vadd.f32 %v287, %v305
    %v322 = vadd.f32 %v288, %v306
    %v323 = vadd.f32 %v289, %v307
    %v324 = vadd.f32 %v290, %v308
    %v325 = vld [vmem:[#allocation2 + $0x7] sm:$0xff]
    %v326 = vld [vmem:[#allocation2 + $0x1f] sm:$0xff]
    %v327 = vld [vmem:[#allocation2 + $0x37] sm:$0xff]
    %v328 = vld [vmem:[#allocation2 + $0x4f] sm:$0xff]
    %v329 = vld [vmem:[#allocation2 + $0x67] sm:$0xff]
    %v330 = vld [vmem:[#allocation2 + $0x7f] sm:$0xff]
    %v331 = vld [vmem:[#allocation2 + $0x97] sm:$0xff]
    %v332 = vld [vmem:[#allocation2 + $0xaf] sm:$0xff]
    %v333 = vld [vmem:[#allocation2 + $0xc7] sm:$0xff]
    %v334 = vld [vmem:[#allocation2 + $0xdf] sm:$0xff]
    %v335 = vld [vmem:[#allocation2 + $0xf7] sm:$0xff]
    %v336 = vld [vmem:[#allocation2 + $0x10f] sm:$0xff]
    %v337 = vld [vmem:[#allocation2 + $0x127] sm:$0xff]
    %v338 = vld [vmem:[#allocation2 + $0x13f] sm:$0xff]
    %v339 = vld [vmem:[#allocation2 + $0x157] sm:$0xff]
    %v340 = vld [vmem:[#allocation2 + $0x16f] sm:$0xff]
    %v341 = vld [vmem:[#allocation2 + $0x187] sm:$0xff]
    %v342 = vld [vmem:[#allocation2 + $0x19f] sm:$0xff]
    %v343 = vld [vmem:[#allocation2 + $0x1b7] sm:$0xff]
    %v344 = vld [vmem:[#allocation2 + $0x1cf] sm:$0xff]
    %v345 = vld [vmem:[#allocation2 + $0x1e7] sm:$0xff]
    %v346 = vld [vmem:[#allocation2 + $0x1ff] sm:$0xff]
    %v347 = vld [vmem:[#allocation2 + $0x217] sm:$0xff]
    %v348 = vld [vmem:[#allocation2 + $0x22f] sm:$0xff]
    %s349 = scalar_lea.vmem %s2, 8
    %v350 = vld [vmem:[%s349] sm:$0xff]
    %v351 = vmul.f32 %v325, %v350
    %v352 = vmul.f32 %v326, %v350
    %v353 = vmul.f32 %v327, %v350
    %v354 = vmul.f32 %v328, %v350
    %v355 = vmul.f32 %v329, %v350
    %v356 = vmul.f32 %v330, %v350
    %v357 = vmul.f32 %v331, %v350
    %v358 = vmul.f32 %v332, %v350
    %v359 = vmul.f32 %v337, %v350
    %v360 = vmul.f32 %v338, %v350
    %v361 = vmul.f32 %v339, %v350
    %v362 = vmul.f32 %v340, %v350
    %v363 = vmul.f32 %v341, %v350
    %v364 = vmul.f32 %v342, %v350
    %v365 = vmul.f32 %v343, %v350
    %v366 = vmul.f32 %v344, %v350
    %v367 = vadd.f32 %v309, %v351
    %v368 = vadd.f32 %v310, %v352
    %v369 = vadd.f32 %v311, %v353
    %v370 = vadd.f32 %v312, %v354
    %v371 = vadd.f32 %v313, %v355
    %v372 = vadd.f32 %v314, %v356
    %v373 = vadd.f32 %v315, %v357
    %v374 = vadd.f32 %v316, %v358
    %v375 = vadd.f32 %v317, %v359
    %v376 = vadd.f32 %v318, %v360
    %v377 = vadd.f32 %v319, %v361
    %v378 = vadd.f32 %v320, %v362
    %v379 = vadd.f32 %v321, %v363
    %v380 = vadd.f32 %v322, %v364
    %v381 = vadd.f32 %v323, %v365
    %v382 = vadd.f32 %v324, %v366
    %s383 = scalar_lea.vmem %s2, 48
    %v384 = vld [vmem:[%s383] sm:$0xff]
    %v385 = vmul.f32 %v326, %v384
    %v386 = vmul.f32 %v327, %v384
    %v387 = vmul.f32 %v328, %v384
    %v388 = vmul.f32 %v329, %v384
    %v389 = vmul.f32 %v330, %v384
    %v390 = vmul.f32 %v331, %v384
    %v391 = vmul.f32 %v332, %v384
    %v392 = vmul.f32 %v333, %v384
    %v393 = vmul.f32 %v338, %v384
    %v394 = vmul.f32 %v339, %v384
    %v395 = vmul.f32 %v340, %v384
    %v396 = vmul.f32 %v341, %v384
    %v397 = vmul.f32 %v342, %v384
    %v398 = vmul.f32 %v343, %v384
    %v399 = vmul.f32 %v344, %v384
    %v400 = vmul.f32 %v345, %v384
    %v401 = vadd.f32 %v367, %v385
    %v402 = vadd.f32 %v368, %v386
    %v403 = vadd.f32 %v369, %v387
    %v404 = vadd.f32 %v370, %v388
    %v405 = vadd.f32 %v371, %v389
    %v406 = vadd.f32 %v372, %v390
    %v407 = vadd.f32 %v373, %v391
    %v408 = vadd.f32 %v374, %v392
    %v409 = vadd.f32 %v375, %v393
    %v410 = vadd.f32 %v376, %v394
    %v411 = vadd.f32 %v377, %v395
    %v412 = vadd.f32 %v378, %v396
    %v413 = vadd.f32 %v379, %v397
    %v414 = vadd.f32 %v380, %v398
    %v415 = vadd.f32 %v381, %v399
    %v416 = vadd.f32 %v382, %v400
    %v417 = vld [vmem:[%s1] sm:$0xff]
    %v418 = vmul.f32 %v326, %v417
    %v419 = vmul.f32 %v327, %v417
    %v420 = vmul.f32 %v328, %v417
    %v421 = vmul.f32 %v329, %v417
    %v422 = vmul.f32 %v330, %v417
    %v423 = vmul.f32 %v331, %v417
    %v424 = vmul.f32 %v332, %v417
    %v425 = vmul.f32 %v333, %v417
    %v426 = vmul.f32 %v338, %v417
    %v427 = vmul.f32 %v339, %v417
    %v428 = vmul.f32 %v340, %v417
    %v429 = vmul.f32 %v341, %v417
    %v430 = vmul.f32 %v342, %v417
    %v431 = vmul.f32 %v343, %v417
    %v432 = vmul.f32 %v344, %v417
    %v433 = vmul.f32 %v345, %v417
    %v434 = vadd.f32 %v418, 0.0
    %v435 = vadd.f32 %v419, 0.0
    %v436 = vadd.f32 %v420, 0.0
    %v437 = vadd.f32 %v421, 0.0
    %v438 = vadd.f32 %v422, 0.0
    %v439 = vadd.f32 %v423, 0.0
    %v440 = vadd.f32 %v424, 0.0
    %v441 = vadd.f32 %v425, 0.0
    %v442 = vadd.f32 %v426, 0.0
    %v443 = vadd.f32 %v427, 0.0
    %v444 = vadd.f32 %v428, 0.0
    %v445 = vadd.f32 %v429, 0.0
    %v446 = vadd.f32 %v430, 0.0
    %v447 = vadd.f32 %v431, 0.0
    %v448 = vadd.f32 %v432, 0.0
    %v449 = vadd.f32 %v433, 0.0
    %s450 = scalar_lea.vmem %s2, 88
    %v451 = vld [vmem:[%s450] sm:$0xff]
    %v452 = vmul.f32 %v327, %v451
    %v453 = vmul.f32 %v328, %v451
    %v454 = vmul.f32 %v329, %v451
    %v455 = vmul.f32 %v330, %v451
    %v456 = vmul.f32 %v331, %v451
    %v457 = vmul.f32 %v332, %v451
    %v458 = vmul.f32 %v333, %v451
    %v459 = vmul.f32 %v334, %v451
    %v460 = vmul.f32 %v339, %v451
    %v461 = vmul.f32 %v340, %v451
    %v462 = vmul.f32 %v341, %v451
    %v463 = vmul.f32 %v342, %v451
    %v464 = vmul.f32 %v343, %v451
    %v465 = vmul.f32 %v344, %v451
    %v466 = vmul.f32 %v345, %v451
    %v467 = vmul.f32 %v346, %v451
    %v468 = vadd.f32 %v401, %v452
    %v469 = vadd.f32 %v402, %v453
    %v470 = vadd.f32 %v403, %v454
    %v471 = vadd.f32 %v404, %v455
    %v472 = vadd.f32 %v405, %v456
    %v473 = vadd.f32 %v406, %v457
    %v474 = vadd.f32 %v407, %v458
    %v475 = vadd.f32 %v408, %v459
    %v476 = vadd.f32 %v409, %v460
    %v477 = vadd.f32 %v410, %v461
    %v478 = vadd.f32 %v411, %v462
    %v479 = vadd.f32 %v412, %v463
    %v480 = vadd.f32 %v413, %v464
    %v481 = vadd.f32 %v414, %v465
    %v482 = vadd.f32 %v415, %v466
    %v483 = vadd.f32 %v416, %v467
    %s484 = scalar_lea.vmem %s1, 24
    %v485 = vld [vmem:[%s484] sm:$0xff]
    %v486 = vmul.f32 %v327, %v485
    %v487 = vmul.f32 %v328, %v485
    %v488 = vmul.f32 %v329, %v485
    %v489 = vmul.f32 %v330, %v485
    %v490 = vmul.f32 %v331, %v485
    %v491 = vmul.f32 %v332, %v485
    %v492 = vmul.f32 %v333, %v485
    %v493 = vmul.f32 %v334, %v485
    %v494 = vmul.f32 %v339, %v485
    %v495 = vmul.f32 %v340, %v485
    %v496 = vmul.f32 %v341, %v485
    %v497 = vmul.f32 %v342, %v485
    %v498 = vmul.f32 %v343, %v485
    %v499 = vmul.f32 %v344, %v485
    %v500 = vmul.f32 %v345, %v485
    %v501 = vmul.f32 %v346, %v485
    %v502 = vadd.f32 %v434, %v486
    %v503 = vadd.f32 %v435, %v487
    %v504 = vadd.f32 %v436, %v488
    %v505 = vadd.f32 %v437, %v489
    %v506 = vadd.f32 %v438, %v490
    %v507 = vadd.f32 %v439, %v491
    %v508 = vadd.f32 %v440, %v492
    %v509 = vadd.f32 %v441, %v493
    %v510 = vadd.f32 %v442, %v494
    %v511 = vadd.f32 %v443, %v495
    %v512 = vadd.f32 %v444, %v496
    %v513 = vadd.f32 %v445, %v497
    %v514 = vadd.f32 %v446, %v498
    %v515 = vadd.f32 %v447, %v499
    %v516 = vadd.f32 %v448, %v500
    %v517 = vadd.f32 %v449, %v501
    %s518 = scalar_lea.vmem %s2, 128
    %v519 = vld [vmem:[%s518] sm:$0xff]
    %v520 = vmul.f32 %v328, %v519
    %v521 = vmul.f32 %v329, %v519
    %v522 = vmul.f32 %v330, %v519
    %v523 = vmul.f32 %v331, %v519
    %v524 = vmul.f32 %v332, %v519
    %v525 = vmul.f32 %v333, %v519
    %v526 = vmul.f32 %v334, %v519
    %v527 = vmul.f32 %v335, %v519
    %v528 = vmul.f32 %v340, %v519
    %v529 = vmul.f32 %v341, %v519
    %v530 = vmul.f32 %v342, %v519
    %v531 = vmul.f32 %v343, %v519
    %v532 = vmul.f32 %v344, %v519
    %v533 = vmul.f32 %v345, %v519
    %v534 = vmul.f32 %v346, %v519
    %v535 = vmul.f32 %v347, %v519
    %v536 = vadd.f32 %v468, %v520
    %v537 = vadd.f32 %v469, %v521
    %v538 = vadd.f32 %v470, %v522
    %v539 = vadd.f32 %v471, %v523
    %v540 = vadd.f32 %v472, %v524
    %v541 = vadd.f32 %v473, %v525
    %v542 = vadd.f32 %v474, %v526
    %v543 = vadd.f32 %v475, %v527
    %v544 = vadd.f32 %v476, %v528
    %v545 = vadd.f32 %v477, %v529
    %v546 = vadd.f32 %v478, %v530
    %v547 = vadd.f32 %v479, %v531
    %v548 = vadd.f32 %v480, %v532
    %v549 = vadd.f32 %v481, %v533
    %v550 = vadd.f32 %v482, %v534
    %v551 = vadd.f32 %v483, %v535
    %s552 = scalar_lea.vmem %s1, 48
    %v553 = vld [vmem:[%s552] sm:$0xff]
    %v554 = vmul.f32 %v328, %v553
    %v555 = vmul.f32 %v329, %v553
    %v556 = vmul.f32 %v330, %v553
    %v557 = vmul.f32 %v331, %v553
    %v558 = vmul.f32 %v332, %v553
    %v559 = vmul.f32 %v333, %v553
    %v560 = vmul.f32 %v334, %v553
    %v561 = vmul.f32 %v335, %v553
    %v562 = vmul.f32 %v340, %v553
    %v563 = vmul.f32 %v341, %v553
    %v564 = vmul.f32 %v342, %v553
    %v565 = vmul.f32 %v343, %v553
    %v566 = vmul.f32 %v344, %v553
    %v567 = vmul.f32 %v345, %v553
    %v568 = vmul.f32 %v346, %v553
    %v569 = vmul.f32 %v347, %v553
    %v570 = vadd.f32 %v502, %v554
    %v571 = vadd.f32 %v503, %v555
    %v572 = vadd.f32 %v504, %v556
    %v573 = vadd.f32 %v505, %v557
    %v574 = vadd.f32 %v506, %v558
    %v575 = vadd.f32 %v507, %v559
    %v576 = vadd.f32 %v508, %v560
    %v577 = vadd.f32 %v509, %v561
    %v578 = vadd.f32 %v510, %v562
    %v579 = vadd.f32 %v511, %v563
    %v580 = vadd.f32 %v512, %v564
    %v581 = vadd.f32 %v513, %v565
    %v582 = vadd.f32 %v514, %v566
    %v583 = vadd.f32 %v515, %v567
    %v584 = vadd.f32 %v516, %v568
    %v585 = vadd.f32 %v517, %v569
    %s586 = scalar_lea.vmem %s2, 168
    %v587 = vld [vmem:[%s586] sm:$0xff]
    %v588 = vmul.f32 %v329, %v587
    %v589 = vmul.f32 %v330, %v587
    %v590 = vmul.f32 %v331, %v587
    %v591 = vmul.f32 %v332, %v587
    %v592 = vmul.f32 %v333, %v587
    %v593 = vmul.f32 %v334, %v587
    %v594 = vmul.f32 %v335, %v587
    %v595 = vmul.f32 %v336, %v587
    %v596 = vmul.f32 %v341, %v587
    %v597 = vmul.f32 %v342, %v587
    %v598 = vmul.f32 %v343, %v587
    %v599 = vmul.f32 %v344, %v587
    %v600 = vmul.f32 %v345, %v587
    %v601 = vmul.f32 %v346, %v587
    %v602 = vmul.f32 %v347, %v587
    %v603 = vmul.f32 %v348, %v587
    %v604 = vadd.f32 %v536, %v588
    %v605 = vadd.f32 %v537, %v589
    %v606 = vadd.f32 %v538, %v590
    %v607 = vadd.f32 %v539, %v591
    %v608 = vadd.f32 %v540, %v592
    %v609 = vadd.f32 %v541, %v593
    %v610 = vadd.f32 %v542, %v594
    %v611 = vadd.f32 %v543, %v595
    %v612 = vadd.f32 %v544, %v596
    %v613 = vadd.f32 %v545, %v597
    %v614 = vadd.f32 %v546, %v598
    %v615 = vadd.f32 %v547, %v599
    %v616 = vadd.f32 %v548, %v600
    %v617 = vadd.f32 %v549, %v601
    %v618 = vadd.f32 %v550, %v602
    %v619 = vadd.f32 %v551, %v603
    %v620 = vld [vmem:[#allocation2 + $0x8] sm:$0xff]
    %v621 = vld [vmem:[#allocation2 + $0x20] sm:$0xff]
    %v622 = vld [vmem:[#allocation2 + $0x38] sm:$0xff]
    %v623 = vld [vmem:[#allocation2 + $0x50] sm:$0xff]
    %v624 = vld [vmem:[#allocation2 + $0x68] sm:$0xff]
    %v625 = vld [vmem:[#allocation2 + $0x80] sm:$0xff]
    %v626 = vld [vmem:[#allocation2 + $0x98] sm:$0xff]
    %v627 = vld [vmem:[#allocation2 + $0xb0] sm:$0xff]
    %v628 = vld [vmem:[#allocation2 + $0xc8] sm:$0xff]
    %v629 = vld [vmem:[#allocation2 + $0xe0] sm:$0xff]
    %v630 = vld [vmem:[#allocation2 + $0xf8] sm:$0xff]
    %v631 = vld [vmem:[#allocation2 + $0x110] sm:$0xff]
    %v632 = vld [vmem:[#allocation2 + $0x128] sm:$0xff]
    %v633 = vld [vmem:[#allocation2 + $0x140] sm:$0xff]
    %v634 = vld [vmem:[#allocation2 + $0x158] sm:$0xff]
    %v635 = vld [vmem:[#allocation2 + $0x170] sm:$0xff]
    %v636 = vld [vmem:[#allocation2 + $0x188] sm:$0xff]
    %v637 = vld [vmem:[#allocation2 + $0x1a0] sm:$0xff]
    %v638 = vld [vmem:[#allocation2 + $0x1b8] sm:$0xff]
    %v639 = vld [vmem:[#allocation2 + $0x1d0] sm:$0xff]
    %v640 = vld [vmem:[#allocation2 + $0x1e8] sm:$0xff]
    %v641 = vld [vmem:[#allocation2 + $0x200] sm:$0xff]
    %v642 = vld [vmem:[#allocation2 + $0x218] sm:$0xff]
    %v643 = vld [vmem:[#allocation2 + $0x230] sm:$0xff]
    %s644 = scalar_lea.vmem %s2, 16
    %v645 = vld [vmem:[%s644] sm:$0xff]
    %v646 = vmul.f32 %v620, %v645
    %v647 = vmul.f32 %v621, %v645
    %v648 = vmul.f32 %v622, %v645
    %v649 = vmul.f32 %v623, %v645
    %v650 = vmul.f32 %v624, %v645
    %v651 = vmul.f32 %v625, %v645
    %v652 = vmul.f32 %v626, %v645
    %v653 = vmul.f32 %v627, %v645
    %v654 = vmul.f32 %v632, %v645
    %v655 = vmul.f32 %v633, %v645
    %v656 = vmul.f32 %v634, %v645
    %v657 = vmul.f32 %v635, %v645
    %v658 = vmul.f32 %v636, %v645
    %v659 = vmul.f32 %v637, %v645
    %v660 = vmul.f32 %v638, %v645
    %v661 = vmul.f32 %v639, %v645
    %v662 = vadd.f32 %v604, %v646
    %v663 = vadd.f32 %v605, %v647
    %v664 = vadd.f32 %v606, %v648
    %v665 = vadd.f32 %v607, %v649
    %v666 = vadd.f32 %v608, %v650
    %v667 = vadd.f32 %v609, %v651
    %v668 = vadd.f32 %v610, %v652
    %v669 = vadd.f32 %v611, %v653
    %v670 = vadd.f32 %v612, %v654
    %v671 = vadd.f32 %v613, %v655
    %v672 = vadd.f32 %v614, %v656
    %v673 = vadd.f32 %v615, %v657
    %v674 = vadd.f32 %v616, %v658
    %v675 = vadd.f32 %v617, %v659
    %v676 = vadd.f32 %v618, %v660
    %v677 = vadd.f32 %v619, %v661
    %s678 = scalar_lea.vmem %s2, 56
    %v679 = vld [vmem:[%s678] sm:$0xff]
    %v680 = vmul.f32 %v621, %v679
    %v681 = vmul.f32 %v622, %v679
    %v682 = vmul.f32 %v623, %v679
    %v683 = vmul.f32 %v624, %v679
    %v684 = vmul.f32 %v625, %v679
    %v685 = vmul.f32 %v626, %v679
    %v686 = vmul.f32 %v627, %v679
    %v687 = vmul.f32 %v628, %v679
    %v688 = vmul.f32 %v633, %v679
    %v689 = vmul.f32 %v634, %v679
    %v690 = vmul.f32 %v635, %v679
    %v691 = vmul.f32 %v636, %v679
    %v692 = vmul.f32 %v637, %v679
    %v693 = vmul.f32 %v638, %v679
    %v694 = vmul.f32 %v639, %v679
    %v695 = vmul.f32 %v640, %v679
    %v696 = vadd.f32 %v662, %v680
    %v697 = vadd.f32 %v663, %v681
    %v698 = vadd.f32 %v664, %v682
    %v699 = vadd.f32 %v665, %v683
    %v700 = vadd.f32 %v666, %v684
    %v701 = vadd.f32 %v667, %v685
    %v702 = vadd.f32 %v668, %v686
    %v703 = vadd.f32 %v669, %v687
    %v704 = vadd.f32 %v670, %v688
    %v705 = vadd.f32 %v671, %v689
    %v706 = vadd.f32 %v672, %v690
    %v707 = vadd.f32 %v673, %v691
    %v708 = vadd.f32 %v674, %v692
    %v709 = vadd.f32 %v675, %v693
    %v710 = vadd.f32 %v676, %v694
    %v711 = vadd.f32 %v677, %v695
    %s712 = scalar_lea.vmem %s1, 8
    %v713 = vld [vmem:[%s712] sm:$0xff]
    %v714 = vmul.f32 %v621, %v713
    %v715 = vmul.f32 %v622, %v713
    %v716 = vmul.f32 %v623, %v713
    %v717 = vmul.f32 %v624, %v713
    %v718 = vmul.f32 %v625, %v713
    %v719 = vmul.f32 %v626, %v713
    %v720 = vmul.f32 %v627, %v713
    %v721 = vmul.f32 %v628, %v713
    %v722 = vmul.f32 %v633, %v713
    %v723 = vmul.f32 %v634, %v713
    %v724 = vmul.f32 %v635, %v713
    %v725 = vmul.f32 %v636, %v713
    %v726 = vmul.f32 %v637, %v713
    %v727 = vmul.f32 %v638, %v713
    %v728 = vmul.f32 %v639, %v713
    %v729 = vmul.f32 %v640, %v713
    %v730 = vadd.f32 %v570, %v714
    %v731 = vadd.f32 %v571, %v715
    %v732 = vadd.f32 %v572, %v716
    %v733 = vadd.f32 %v573, %v717
    %v734 = vadd.f32 %v574, %v718
    %v735 = vadd.f32 %v575, %v719
    %v736 = vadd.f32 %v576, %v720
    %v737 = vadd.f32 %v577, %v721
    %v738 = vadd.f32 %v578, %v722
    %v739 = vadd.f32 %v579, %v723
    %v740 = vadd.f32 %v580, %v724
    %v741 = vadd.f32 %v581, %v725
    %v742 = vadd.f32 %v582, %v726
    %v743 = vadd.f32 %v583, %v727
    %v744 = vadd.f32 %v584, %v728
    %v745 = vadd.f32 %v585, %v729
    %s746 = scalar_lea.vmem %s2, 96
    %v747 = vld [vmem:[%s746] sm:$0xff]
    %v748 = vmul.f32 %v622, %v747
    %v749 = vmul.f32 %v623, %v747
    %v750 = vmul.f32 %v624, %v747
    %v751 = vmul.f32 %v625, %v747
    %v752 = vmul.f32 %v626, %v747
    %v753 = vmul.f32 %v627, %v747
    %v754 = vmul.f32 %v628, %v747
    %v755 = vmul.f32 %v629, %v747
    %v756 = vmul.f32 %v634, %v747
    %v757 = vmul.f32 %v635, %v747
    %v758 = vmul.f32 %v636, %v747
    %v759 = vmul.f32 %v637, %v747
    %v760 = vmul.f32 %v638, %v747
    %v761 = vmul.f32 %v639, %v747
    %v762 = vmul.f32 %v640, %v747
    %v763 = vmul.f32 %v641, %v747
    %v764 = vadd.f32 %v696, %v748
    %v765 = vadd.f32 %v697, %v749
    %v766 = vadd.f32 %v698, %v750
    %v767 = vadd.f32 %v699, %v751
    %v768 = vadd.f32 %v700, %v752
    %v769 = vadd.f32 %v701, %v753
    %v770 = vadd.f32 %v702, %v754
    %v771 = vadd.f32 %v703, %v755
    %v772 = vadd.f32 %v704, %v756
    %v773 = vadd.f32 %v705, %v757
    %v774 = vadd.f32 %v706, %v758
    %v775 = vadd.f32 %v707, %v759
    %v776 = vadd.f32 %v708, %v760
    %v777 = vadd.f32 %v709, %v761
    %v778 = vadd.f32 %v710, %v762
    %v779 = vadd.f32 %v711, %v763
    %s780 = scalar_lea.vmem %s1, 32
    %v781 = vld [vmem:[%s780] sm:$0xff]
    %v782 = vmul.f32 %v622, %v781
    %v783 = vmul.f32 %v623, %v781
    %v784 = vmul.f32 %v624, %v781
    %v785 = vmul.f32 %v625, %v781
    %v786 = vmul.f32 %v626, %v781
    %v787 = vmul.f32 %v627, %v781
    %v788 = vmul.f32 %v628, %v781
    %v789 = vmul.f32 %v629, %v781
    %v790 = vmul.f32 %v634, %v781
    %v791 = vmul.f32 %v635, %v781
    %v792 = vmul.f32 %v636, %v781
    %v793 = vmul.f32 %v637, %v781
    %v794 = vmul.f32 %v638, %v781
    %v795 = vmul.f32 %v639, %v781
    %v796 = vmul.f32 %v640, %v781
    %v797 = vmul.f32 %v641, %v781
    %v798 = vadd.f32 %v730, %v782
    %v799 = vadd.f32 %v731, %v783
    %v800 = vadd.f32 %v732, %v784
    %v801 = vadd.f32 %v733, %v785
    %v802 = vadd.f32 %v734, %v786
    %v803 = vadd.f32 %v735, %v787
    %v804 = vadd.f32 %v736, %v788
    %v805 = vadd.f32 %v737, %v789
    %v806 = vadd.f32 %v738, %v790
    %v807 = vadd.f32 %v739, %v791
    %v808 = vadd.f32 %v740, %v792
    %v809 = vadd.f32 %v741, %v793
    %v810 = vadd.f32 %v742, %v794
    %v811 = vadd.f32 %v743, %v795
    %v812 = vadd.f32 %v744, %v796
    %v813 = vadd.f32 %v745, %v797
    %s814 = scalar_lea.vmem %s2, 136
    %v815 = vld [vmem:[%s814] sm:$0xff]
    %v816 = vmul.f32 %v623, %v815
    %v817 = vmul.f32 %v624, %v815
    %v818 = vmul.f32 %v625, %v815
    %v819 = vmul.f32 %v626, %v815
    %v820 = vmul.f32 %v627, %v815
    %v821 = vmul.f32 %v628, %v815
    %v822 = vmul.f32 %v629, %v815
    %v823 = vmul.f32 %v630, %v815
    %v824 = vmul.f32 %v635, %v815
    %v825 = vmul.f32 %v636, %v815
    %v826 = vmul.f32 %v637, %v815
    %v827 = vmul.f32 %v638, %v815
    %v828 = vmul.f32 %v639, %v815
    %v829 = vmul.f32 %v640, %v815
    %v830 = vmul.f32 %v641, %v815
    %v831 = vmul.f32 %v642, %v815
    %v832 = vadd.f32 %v764, %v816
    %v833 = vadd.f32 %v765, %v817
    %v834 = vadd.f32 %v766, %v818
    %v835 = vadd.f32 %v767, %v819
    %v836 = vadd.f32 %v768, %v820
    %v837 = vadd.f32 %v769, %v821
    %v838 = vadd.f32 %v770, %v822
    %v839 = vadd.f32 %v771, %v823
    %v840 = vadd.f32 %v772, %v824
    %v841 = vadd.f32 %v773, %v825
    %v842 = vadd.f32 %v774, %v826
    %v843 = vadd.f32 %v775, %v827
    %v844 = vadd.f32 %v776, %v828
    %v845 = vadd.f32 %v777, %v829
    %v846 = vadd.f32 %v778, %v830
    %v847 = vadd.f32 %v779, %v831
    %s848 = scalar_lea.vmem %s1, 56
    %v849 = vld [vmem:[%s848] sm:$0xff]
    %v850 = vmul.f32 %v623, %v849
    %v851 = vmul.f32 %v624, %v849
    %v852 = vmul.f32 %v625, %v849
    %v853 = vmul.f32 %v626, %v849
    %v854 = vmul.f32 %v627, %v849
    %v855 = vmul.f32 %v628, %v849
    %v856 = vmul.f32 %v629, %v849
    %v857 = vmul.f32 %v630, %v849
    %v858 = vmul.f32 %v635, %v849
    %v859 = vmul.f32 %v636, %v849
    %v860 = vmul.f32 %v637, %v849
    %v861 = vmul.f32 %v638, %v849
    %v862 = vmul.f32 %v639, %v849
    %v863 = vmul.f32 %v640, %v849
    %v864 = vmul.f32 %v641, %v849
    %v865 = vmul.f32 %v642, %v849
    %v866 = vadd.f32 %v798, %v850
    %v867 = vadd.f32 %v799, %v851
    %v868 = vadd.f32 %v800, %v852
    %v869 = vadd.f32 %v801, %v853
    %v870 = vadd.f32 %v802, %v854
    %v871 = vadd.f32 %v803, %v855
    %v872 = vadd.f32 %v804, %v856
    %v873 = vadd.f32 %v805, %v857
    %v874 = vadd.f32 %v806, %v858
    %v875 = vadd.f32 %v807, %v859
    %v876 = vadd.f32 %v808, %v860
    %v877 = vadd.f32 %v809, %v861
    %v878 = vadd.f32 %v810, %v862
    %v879 = vadd.f32 %v811, %v863
    %v880 = vadd.f32 %v812, %v864
    %v881 = vadd.f32 %v813, %v865
    %s882 = scalar_lea.vmem %s2, 176
    %v883 = vld [vmem:[%s882] sm:$0xff]
    %v884 = vmul.f32 %v624, %v883
    %v885 = vmul.f32 %v625, %v883
    %v886 = vmul.f32 %v626, %v883
    %v887 = vmul.f32 %v627, %v883
    %v888 = vmul.f32 %v628, %v883
    %v889 = vmul.f32 %v629, %v883
    %v890 = vmul.f32 %v630, %v883
    %v891 = vmul.f32 %v631, %v883
    %v892 = vmul.f32 %v636, %v883
    %v893 = vmul.f32 %v637, %v883
    %v894 = vmul.f32 %v638, %v883
    %v895 = vmul.f32 %v639, %v883
    %v896 = vmul.f32 %v640, %v883
    %v897 = vmul.f32 %v641, %v883
    %v898 = vmul.f32 %v642, %v883
    %v899 = vmul.f32 %v643, %v883
    %v900 = vadd.f32 %v832, %v884
    %v901 = vadd.f32 %v833, %v885
    %v902 = vadd.f32 %v834, %v886
    %v903 = vadd.f32 %v835, %v887
    %v904 = vadd.f32 %v836, %v888
    %v905 = vadd.f32 %v837, %v889
    %v906 = vadd.f32 %v838, %v890
    %v907 = vadd.f32 %v839, %v891
    %v908 = vadd.f32 %v840, %v892
    %v909 = vadd.f32 %v841, %v893
    %v910 = vadd.f32 %v842, %v894
    %v911 = vadd.f32 %v843, %v895
    %v912 = vadd.f32 %v844, %v896
    %v913 = vadd.f32 %v845, %v897
    %v914 = vadd.f32 %v846, %v898
    %v915 = vadd.f32 %v847, %v899
    %v916 = vld [vmem:[#allocation2 + $0x9] sm:$0xff]
    %v917 = vld [vmem:[#allocation2 + $0x21] sm:$0xff]
    %v918 = vld [vmem:[#allocation2 + $0x39] sm:$0xff]
    %v919 = vld [vmem:[#allocation2 + $0x51] sm:$0xff]
    %v920 = vld [vmem:[#allocation2 + $0x69] sm:$0xff]
    %v921 = vld [vmem:[#allocation2 + $0x81] sm:$0xff]
    %v922 = vld [vmem:[#allocation2 + $0x99] sm:$0xff]
    %v923 = vld [vmem:[#allocation2 + $0xb1] sm:$0xff]
    %v924 = vld [vmem:[#allocation2 + $0xc9] sm:$0xff]
    %v925 = vld [vmem:[#allocation2 + $0xe1] sm:$0xff]
    %v926 = vld [vmem:[#allocation2 + $0xf9] sm:$0xff]
    %v927 = vld [vmem:[#allocation2 + $0x111] sm:$0xff]
    %v928 = vld [vmem:[#allocation2 + $0x129] sm:$0xff]
    %v929 = vld [vmem:[#allocation2 + $0x141] sm:$0xff]
    %v930 = vld [vmem:[#allocation2 + $0x159] sm:$0xff]
    %v931 = vld [vmem:[#allocation2 + $0x171] sm:$0xff]
    %v932 = vld [vmem:[#allocation2 + $0x189] sm:$0xff]
    %v933 = vld [vmem:[#allocation2 + $0x1a1] sm:$0xff]
    %v934 = vld [vmem:[#allocation2 + $0x1b9] sm:$0xff]
    %v935 = vld [vmem:[#allocation2 + $0x1d1] sm:$0xff]
    %v936 = vld [vmem:[#allocation2 + $0x1e9] sm:$0xff]
    %v937 = vld [vmem:[#allocation2 + $0x201] sm:$0xff]
    %v938 = vld [vmem:[#allocation2 + $0x219] sm:$0xff]
    %v939 = vld [vmem:[#allocation2 + $0x231] sm:$0xff]
    %s940 = scalar_lea.vmem %s2, 24
    %v941 = vld [vmem:[%s940] sm:$0xff]
    %v942 = vmul.f32 %v916, %v941
    %v943 = vmul.f32 %v917, %v941
    %v944 = vmul.f32 %v918, %v941
    %v945 = vmul.f32 %v919, %v941
    %v946 = vmul.f32 %v920, %v941
    %v947 = vmul.f32 %v921, %v941
    %v948 = vmul.f32 %v922, %v941
    %v949 = vmul.f32 %v923, %v941
    %v950 = vmul.f32 %v928, %v941
    %v951 = vmul.f32 %v929, %v941
    %v952 = vmul.f32 %v930, %v941
    %v953 = vmul.f32 %v931, %v941
    %v954 = vmul.f32 %v932, %v941
    %v955 = vmul.f32 %v933, %v941
    %v956 = vmul.f32 %v934, %v941
    %v957 = vmul.f32 %v935, %v941
    %v958 = vadd.f32 %v900, %v942
    %v959 = vadd.f32 %v901, %v943
    %v960 = vadd.f32 %v902, %v944
    %v961 = vadd.f32 %v903, %v945
    %v962 = vadd.f32 %v904, %v946
    %v963 = vadd.f32 %v905, %v947
    %v964 = vadd.f32 %v906, %v948
    %v965 = vadd.f32 %v907, %v949
    %v966 = vadd.f32 %v908, %v950
    %v967 = vadd.f32 %v909, %v951
    %v968 = vadd.f32 %v910, %v952
    %v969 = vadd.f32 %v911, %v953
    %v970 = vadd.f32 %v912, %v954
    %v971 = vadd.f32 %v913, %v955
    %v972 = vadd.f32 %v914, %v956
    %v973 = vadd.f32 %v915, %v957
    %s974 = scalar_lea.vmem %s2, 64
    %v975 = vld [vmem:[%s974] sm:$0xff]
    %v976 = vmul.f32 %v917, %v975
    %v977 = vmul.f32 %v918, %v975
    %v978 = vmul.f32 %v919, %v975
    %v979 = vmul.f32 %v920, %v975
    %v980 = vmul.f32 %v921, %v975
    %v981 = vmul.f32 %v922, %v975
    %v982 = vmul.f32 %v923, %v975
    %v983 = vmul.f32 %v924, %v975
    %v984 = vmul.f32 %v929, %v975
    %v985 = vmul.f32 %v930, %v975
    %v986 = vmul.f32 %v931, %v975
    %v987 = vmul.f32 %v932, %v975
    %v988 = vmul.f32 %v933, %v975
    %v989 = vmul.f32 %v934, %v975
    %v990 = vmul.f32 %v935, %v975
    %v991 = vmul.f32 %v936, %v975
    %v992 = vadd.f32 %v958, %v976
    %v993 = vadd.f32 %v959, %v977
    %v994 = vadd.f32 %v960, %v978
    %v995 = vadd.f32 %v961, %v979
    %v996 = vadd.f32 %v962, %v980
    %v997 = vadd.f32 %v963, %v981
    %v998 = vadd.f32 %v964, %v982
    %v999 = vadd.f32 %v965, %v983
    %v1000 = vadd.f32 %v966, %v984
    %v1001 = vadd.f32 %v967, %v985
    %v1002 = vadd.f32 %v968, %v986
    %v1003 = vadd.f32 %v969, %v987
    %v1004 = vadd.f32 %v970, %v988
    %v1005 = vadd.f32 %v971, %v989
    %v1006 = vadd.f32 %v972, %v990
    %v1007 = vadd.f32 %v973, %v991
    %s1008 = scalar_lea.vmem %s1, 16
    %v1009 = vld [vmem:[%s1008] sm:$0xff]
    %v1010 = vmul.f32 %v917, %v1009
    %v1011 = vmul.f32 %v918, %v1009
    %v1012 = vmul.f32 %v919, %v1009
    %v1013 = vmul.f32 %v920, %v1009
    %v1014 = vmul.f32 %v921, %v1009
    %v1015 = vmul.f32 %v922, %v1009
    %v1016 = vmul.f32 %v923, %v1009
    %v1017 = vmul.f32 %v924, %v1009
    %v1018 = vmul.f32 %v929, %v1009
    %v1019 = vmul.f32 %v930, %v1009
    %v1020 = vmul.f32 %v931, %v1009
    %v1021 = vmul.f32 %v932, %v1009
    %v1022 = vmul.f32 %v933, %v1009
    %v1023 = vmul.f32 %v934, %v1009
    %v1024 = vmul.f32 %v935, %v1009
    %v1025 = vmul.f32 %v936, %v1009
    %v1026 = vadd.f32 %v866, %v1010
    %v1027 = vadd.f32 %v867, %v1011
    %v1028 = vadd.f32 %v868, %v1012
    %v1029 = vadd.f32 %v869, %v1013
    %v1030 = vadd.f32 %v870, %v1014
    %v1031 = vadd.f32 %v871, %v1015
    %v1032 = vadd.f32 %v872, %v1016
    %v1033 = vadd.f32 %v873, %v1017
    %v1034 = vadd.f32 %v874, %v1018
    %v1035 = vadd.f32 %v875, %v1019
    %v1036 = vadd.f32 %v876, %v1020
    %v1037 = vadd.f32 %v877, %v1021
    %v1038 = vadd.f32 %v878, %v1022
    %v1039 = vadd.f32 %v879, %v1023
    %v1040 = vadd.f32 %v880, %v1024
    %v1041 = vadd.f32 %v881, %v1025
    %s1042 = scalar_lea.vmem %s2, 104
    %v1043 = vld [vmem:[%s1042] sm:$0xff]
    %v1044 = vmul.f32 %v918, %v1043
    %v1045 = vmul.f32 %v919, %v1043
    %v1046 = vmul.f32 %v920, %v1043
    %v1047 = vmul.f32 %v921, %v1043
    %v1048 = vmul.f32 %v922, %v1043
    %v1049 = vmul.f32 %v923, %v1043
    %v1050 = vmul.f32 %v924, %v1043
    %v1051 = vmul.f32 %v925, %v1043
    %v1052 = vmul.f32 %v930, %v1043
    %v1053 = vmul.f32 %v931, %v1043
    %v1054 = vmul.f32 %v932, %v1043
    %v1055 = vmul.f32 %v933, %v1043
    %v1056 = vmul.f32 %v934, %v1043
    %v1057 = vmul.f32 %v935, %v1043
    %v1058 = vmul.f32 %v936, %v1043
    %v1059 = vmul.f32 %v937, %v1043
    %v1060 = vadd.f32 %v992, %v1044
    %v1061 = vadd.f32 %v993, %v1045
    %v1062 = vadd.f32 %v994, %v1046
    %v1063 = vadd.f32 %v995, %v1047
    %v1064 = vadd.f32 %v996, %v1048
    %v1065 = vadd.f32 %v997, %v1049
    %v1066 = vadd.f32 %v998, %v1050
    %v1067 = vadd.f32 %v999, %v1051
    %v1068 = vadd.f32 %v1000, %v1052
    %v1069 = vadd.f32 %v1001, %v1053
    %v1070 = vadd.f32 %v1002, %v1054
    %v1071 = vadd.f32 %v1003, %v1055
    %v1072 = vadd.f32 %v1004, %v1056
    %v1073 = vadd.f32 %v1005, %v1057
    %v1074 = vadd.f32 %v1006, %v1058
    %v1075 = vadd.f32 %v1007, %v1059
    %s1076 = scalar_lea.vmem %s1, 40
    %v1077 = vld [vmem:[%s1076] sm:$0xff]
    %v1078 = vmul.f32 %v918, %v1077
    %v1079 = vmul.f32 %v919, %v1077
    %v1080 = vmul.f32 %v920, %v1077
    %v1081 = vmul.f32 %v921, %v1077
    %v1082 = vmul.f32 %v922, %v1077
    %v1083 = vmul.f32 %v923, %v1077
    %v1084 = vmul.f32 %v924, %v1077
    %v1085 = vmul.f32 %v925, %v1077
    %v1086 = vmul.f32 %v930, %v1077
    %v1087 = vmul.f32 %v931, %v1077
    %v1088 = vmul.f32 %v932, %v1077
    %v1089 = vmul.f32 %v933, %v1077
    %v1090 = vmul.f32 %v934, %v1077
    %v1091 = vmul.f32 %v935, %v1077
    %v1092 = vmul.f32 %v936, %v1077
    %v1093 = vmul.f32 %v937, %v1077
    %v1094 = vadd.f32 %v1026, %v1078
    %v1095 = vadd.f32 %v1027, %v1079
    %v1096 = vadd.f32 %v1028, %v1080
    %v1097 = vadd.f32 %v1029, %v1081
    %v1098 = vadd.f32 %v1030, %v1082
    %v1099 = vadd.f32 %v1031, %v1083
    %v1100 = vadd.f32 %v1032, %v1084
    %v1101 = vadd.f32 %v1033, %v1085
    %v1102 = vadd.f32 %v1034, %v1086
    %v1103 = vadd.f32 %v1035, %v1087
    %v1104 = vadd.f32 %v1036, %v1088
    %v1105 = vadd.f32 %v1037, %v1089
    %v1106 = vadd.f32 %v1038, %v1090
    %v1107 = vadd.f32 %v1039, %v1091
    %v1108 = vadd.f32 %v1040, %v1092
    %v1109 = vadd.f32 %v1041, %v1093
    %s1110 = scalar_lea.vmem %s2, 144
    %v1111 = vld [vmem:[%s1110] sm:$0xff]
    %v1112 = vmul.f32 %v919, %v1111
    %v1113 = vmul.f32 %v920, %v1111
    %v1114 = vmul.f32 %v921, %v1111
    %v1115 = vmul.f32 %v922, %v1111
    %v1116 = vmul.f32 %v923, %v1111
    %v1117 = vmul.f32 %v924, %v1111
    %v1118 = vmul.f32 %v925, %v1111
    %v1119 = vmul.f32 %v926, %v1111
    %v1120 = vmul.f32 %v931, %v1111
    %v1121 = vmul.f32 %v932, %v1111
    %v1122 = vmul.f32 %v933, %v1111
    %v1123 = vmul.f32 %v934, %v1111
    %v1124 = vmul.f32 %v935, %v1111
    %v1125 = vmul.f32 %v936, %v1111
    %v1126 = vmul.f32 %v937, %v1111
    %v1127 = vmul.f32 %v938, %v1111
    %v1128 = vadd.f32 %v1060, %v1112
    %v1129 = vadd.f32 %v1061, %v1113
    %v1130 = vadd.f32 %v1062, %v1114
    %v1131 = vadd.f32 %v1063, %v1115
    %v1132 = vadd.f32 %v1064, %v1116
    %v1133 = vadd.f32 %v1065, %v1117
    %v1134 = vadd.f32 %v1066, %v1118
    %v1135 = vadd.f32 %v1067, %v1119
    %v1136 = vadd.f32 %v1068, %v1120
    %v1137 = vadd.f32 %v1069, %v1121
    %v1138 = vadd.f32 %v1070, %v1122
    %v1139 = vadd.f32 %v1071, %v1123
    %v1140 = vadd.f32 %v1072, %v1124
    %v1141 = vadd.f32 %v1073, %v1125
    %v1142 = vadd.f32 %v1074, %v1126
    %v1143 = vadd.f32 %v1075, %v1127
    %s1144 = scalar_lea.vmem %s1, 64
    %v1145 = vld [vmem:[%s1144] sm:$0xff]
    %v1146 = vmul.f32 %v919, %v1145
    %v1147 = vmul.f32 %v920, %v1145
    %v1148 = vmul.f32 %v921, %v1145
    %v1149 = vmul.f32 %v922, %v1145
    %v1150 = vmul.f32 %v923, %v1145
    %v1151 = vmul.f32 %v924, %v1145
    %v1152 = vmul.f32 %v925, %v1145
    %v1153 = vmul.f32 %v926, %v1145
    %v1154 = vmul.f32 %v931, %v1145
    %v1155 = vmul.f32 %v932, %v1145
    %v1156 = vmul.f32 %v933, %v1145
    %v1157 = vmul.f32 %v934, %v1145
    %v1158 = vmul.f32 %v935, %v1145
    %v1159 = vmul.f32 %v936, %v1145
    %v1160 = vmul.f32 %v937, %v1145
    %v1161 = vmul.f32 %v938, %v1145
    %v1162 = vadd.f32 %v1094, %v1146
    %v1163 = vadd.f32 %v1095, %v1147
    %v1164 = vadd.f32 %v1096, %v1148
    %v1165 = vadd.f32 %v1097, %v1149
    %v1166 = vadd.f32 %v1098, %v1150
    %v1167 = vadd.f32 %v1099, %v1151
    %v1168 = vadd.f32 %v1100, %v1152
    %v1169 = vadd.f32 %v1101, %v1153
    %v1170 = vadd.f32 %v1102, %v1154
    %v1171 = vadd.f32 %v1103, %v1155
    %v1172 = vadd.f32 %v1104, %v1156
    %v1173 = vadd.f32 %v1105, %v1157
    %v1174 = vadd.f32 %v1106, %v1158
    %v1175 = vadd.f32 %v1107, %v1159
    %v1176 = vadd.f32 %v1108, %v1160
    %v1177 = vadd.f32 %v1109, %v1161
    %s1178 = scalar_lea.vmem %s2, 184
    %v1179 = vld [vmem:[%s1178] sm:$0xff]
    %v1180 = vmul.f32 %v920, %v1179
    %v1181 = vmul.f32 %v921, %v1179
    %v1182 = vmul.f32 %v922, %v1179
    %v1183 = vmul.f32 %v923, %v1179
    %v1184 = vmul.f32 %v924, %v1179
    %v1185 = vmul.f32 %v925, %v1179
    %v1186 = vmul.f32 %v926, %v1179
    %v1187 = vmul.f32 %v927, %v1179
    %v1188 = vmul.f32 %v932, %v1179
    %v1189 = vmul.f32 %v933, %v1179
    %v1190 = vmul.f32 %v934, %v1179
    %v1191 = vmul.f32 %v935, %v1179
    %v1192 = vmul.f32 %v936, %v1179
    %v1193 = vmul.f32 %v937, %v1179
    %v1194 = vmul.f32 %v938, %v1179
    %v1195 = vmul.f32 %v939, %v1179
    %v1196 = vadd.f32 %v1128, %v1180
    %v1197 = vadd.f32 %v1129, %v1181
    %v1198 = vadd.f32 %v1130, %v1182
    %v1199 = vadd.f32 %v1131, %v1183
    %v1200 = vadd.f32 %v1132, %v1184
    %v1201 = vadd.f32 %v1133, %v1185
    %v1202 = vadd.f32 %v1134, %v1186
    %v1203 = vadd.f32 %v1135, %v1187
    %v1204 = vadd.f32 %v1136, %v1188
    %v1205 = vadd.f32 %v1137, %v1189
    %v1206 = vadd.f32 %v1138, %v1190
    %v1207 = vadd.f32 %v1139, %v1191
    %v1208 = vadd.f32 %v1140, %v1192
    %v1209 = vadd.f32 %v1141, %v1193
    %v1210 = vadd.f32 %v1142, %v1194
    %v1211 = vadd.f32 %v1143, %v1195
    %v1212 = vld [vmem:[#allocation2 + $0xa] sm:$0xff]
    %v1213 = vld [vmem:[#allocation2 + $0x22] sm:$0xff]
    %v1214 = vld [vmem:[#allocation2 + $0x3a] sm:$0xff]
    %v1215 = vld [vmem:[#allocation2 + $0x52] sm:$0xff]
    %v1216 = vld [vmem:[#allocation2 + $0x6a] sm:$0xff]
    %v1217 = vld [vmem:[#allocation2 + $0x82] sm:$0xff]
    %v1218 = vld [vmem:[#allocation2 + $0x9a] sm:$0xff]
    %v1219 = vld [vmem:[#allocation2 + $0xb2] sm:$0xff]
    %v1220 = vld [vmem:[#allocation2 + $0xca] sm:$0xff]
    %v1221 = vld [vmem:[#allocation2 + $0xe2] sm:$0xff]
    %v1222 = vld [vmem:[#allocation2 + $0xfa] sm:$0xff]
    %v1223 = vld [vmem:[#allocation2 + $0x112] sm:$0xff]
    %v1224 = vld [vmem:[#allocation2 + $0x12a] sm:$0xff]
    %v1225 = vld [vmem:[#allocation2 + $0x142] sm:$0xff]
    %v1226 = vld [vmem:[#allocation2 + $0x15a] sm:$0xff]
    %v1227 = vld [vmem:[#allocation2 + $0x172] sm:$0xff]
    %v1228 = vld [vmem:[#allocation2 + $0x18a] sm:$0xff]
    %v1229 = vld [vmem:[#allocation2 + $0x1a2] sm:$0xff]
    %v1230 = vld [vmem:[#allocation2 + $0x1ba] sm:$0xff]
    %v1231 = vld [vmem:[#allocation2 + $0x1d2] sm:$0xff]
    %v1232 = vld [vmem:[#allocation2 + $0x1ea] sm:$0xff]
    %v1233 = vld [vmem:[#allocation2 + $0x202] sm:$0xff]
    %v1234 = vld [vmem:[#allocation2 + $0x21a] sm:$0xff]
    %v1235 = vld [vmem:[#allocation2 + $0x232] sm:$0xff]
    %s1236 = scalar_lea.vmem %s2, 32
    %v1237 = vld [vmem:[%s1236] sm:$0xff]
    %v1238 = vmul.f32 %v1212, %v1237
    %v1239 = vmul.f32 %v1213, %v1237
    %v1240 = vmul.f32 %v1214, %v1237
    %v1241 = vmul.f32 %v1215, %v1237
    %v1242 = vmul.f32 %v1216, %v1237
    %v1243 = vmul.f32 %v1217, %v1237
    %v1244 = vmul.f32 %v1218, %v1237
    %v1245 = vmul.f32 %v1219, %v1237
    %v1246 = vmul.f32 %v1224, %v1237
    %v1247 = vmul.f32 %v1225, %v1237
    %v1248 = vmul.f32 %v1226, %v1237
    %v1249 = vmul.f32 %v1227, %v1237
    %v1250 = vmul.f32 %v1228, %v1237
    %v1251 = vmul.f32 %v1229, %v1237
    %v1252 = vmul.f32 %v1230, %v1237
    %v1253 = vmul.f32 %v1231, %v1237
    %v1254 = vadd.f32 %v1196, %v1238
    %v1255 = vadd.f32 %v1197, %v1239
    %v1256 = vadd.f32 %v1198, %v1240
    %v1257 = vadd.f32 %v1199, %v1241
    %v1258 = vadd.f32 %v1200, %v1242
    %v1259 = vadd.f32 %v1201, %v1243
    %v1260 = vadd.f32 %v1202, %v1244
    %v1261 = vadd.f32 %v1203, %v1245
    %v1262 = vadd.f32 %v1204, %v1246
    %v1263 = vadd.f32 %v1205, %v1247
    %v1264 = vadd.f32 %v1206, %v1248
    %v1265 = vadd.f32 %v1207, %v1249
    %v1266 = vadd.f32 %v1208, %v1250
    %v1267 = vadd.f32 %v1209, %v1251
    %v1268 = vadd.f32 %v1210, %v1252
    %v1269 = vadd.f32 %v1211, %v1253
    %s1270 = scalar_lea.vmem %s2, 72
    %v1271 = vld [vmem:[%s1270] sm:$0xff]
    %v1272 = vmul.f32 %v1213, %v1271
    %v1273 = vmul.f32 %v1214, %v1271
    %v1274 = vmul.f32 %v1215, %v1271
    %v1275 = vmul.f32 %v1216, %v1271
    %v1276 = vmul.f32 %v1217, %v1271
    %v1277 = vmul.f32 %v1218, %v1271
    %v1278 = vmul.f32 %v1219, %v1271
    %v1279 = vmul.f32 %v1220, %v1271
    %v1280 = vmul.f32 %v1225, %v1271
    %v1281 = vmul.f32 %v1226, %v1271
    %v1282 = vmul.f32 %v1227, %v1271
    %v1283 = vmul.f32 %v1228, %v1271
    %v1284 = vmul.f32 %v1229, %v1271
    %v1285 = vmul.f32 %v1230, %v1271
    %v1286 = vmul.f32 %v1231, %v1271
    %v1287 = vmul.f32 %v1232, %v1271
    %v1288 = vadd.f32 %v1254, %v1272
    %v1289 = vadd.f32 %v1255, %v1273
    %v1290 = vadd.f32 %v1256, %v1274
    %v1291 = vadd.f32 %v1257, %v1275
    %v1292 = vadd.f32 %v1258, %v1276
    %v1293 = vadd.f32 %v1259, %v1277
    %v1294 = vadd.f32 %v1260, %v1278
    %v1295 = vadd.f32 %v1261, %v1279
    %v1296 = vadd.f32 %v1262, %v1280
    %v1297 = vadd.f32 %v1263, %v1281
    %v1298 = vadd.f32 %v1264, %v1282
    %v1299 = vadd.f32 %v1265, %v1283
    %v1300 = vadd.f32 %v1266, %v1284
    %v1301 = vadd.f32 %v1267, %v1285
    %v1302 = vadd.f32 %v1268, %v1286
    %v1303 = vadd.f32 %v1269, %v1287
    %s1304 = scalar_lea.vmem %s2, 112
    %v1305 = vld [vmem:[%s1304] sm:$0xff]
    %v1306 = vmul.f32 %v1214, %v1305
    %v1307 = vmul.f32 %v1215, %v1305
    %v1308 = vmul.f32 %v1216, %v1305
    %v1309 = vmul.f32 %v1217, %v1305
    %v1310 = vmul.f32 %v1218, %v1305
    %v1311 = vmul.f32 %v1219, %v1305
    %v1312 = vmul.f32 %v1220, %v1305
    %v1313 = vmul.f32 %v1221, %v1305
    %v1314 = vmul.f32 %v1226, %v1305
    %v1315 = vmul.f32 %v1227, %v1305
    %v1316 = vmul.f32 %v1228, %v1305
    %v1317 = vmul.f32 %v1229, %v1305
    %v1318 = vmul.f32 %v1230, %v1305
    %v1319 = vmul.f32 %v1231, %v1305
    %v1320 = vmul.f32 %v1232, %v1305
    %v1321 = vmul.f32 %v1233, %v1305
    %v1322 = vadd.f32 %v1288, %v1306
    %v1323 = vadd.f32 %v1289, %v1307
    %v1324 = vadd.f32 %v1290, %v1308
    %v1325 = vadd.f32 %v1291, %v1309
    %v1326 = vadd.f32 %v1292, %v1310
    %v1327 = vadd.f32 %v1293, %v1311
    %v1328 = vadd.f32 %v1294, %v1312
    %v1329 = vadd.f32 %v1295, %v1313
    %v1330 = vadd.f32 %v1296, %v1314
    %v1331 = vadd.f32 %v1297, %v1315
    %v1332 = vadd.f32 %v1298, %v1316
    %v1333 = vadd.f32 %v1299, %v1317
    %v1334 = vadd.f32 %v1300, %v1318
    %v1335 = vadd.f32 %v1301, %v1319
    %v1336 = vadd.f32 %v1302, %v1320
    %v1337 = vadd.f32 %v1303, %v1321
    %s1338 = scalar_lea.vmem %s2, 152
    %v1339 = vld [vmem:[%s1338] sm:$0xff]
    %v1340 = vmul.f32 %v1215, %v1339
    %v1341 = vmul.f32 %v1216, %v1339
    %v1342 = vmul.f32 %v1217, %v1339
    %v1343 = vmul.f32 %v1218, %v1339
    %v1344 = vmul.f32 %v1219, %v1339
    %v1345 = vmul.f32 %v1220, %v1339
    %v1346 = vmul.f32 %v1221, %v1339
    %v1347 = vmul.f32 %v1222, %v1339
    %v1348 = vmul.f32 %v1227, %v1339
    %v1349 = vmul.f32 %v1228, %v1339
    %v1350 = vmul.f32 %v1229, %v1339
    %v1351 = vmul.f32 %v1230, %v1339
    %v1352 = vmul.f32 %v1231, %v1339
    %v1353 = vmul.f32 %v1232, %v1339
    %v1354 = vmul.f32 %v1233, %v1339
    %v1355 = vmul.f32 %v1234, %v1339
    %v1356 = vadd.f32 %v1322, %v1340
    %v1357 = vadd.f32 %v1323, %v1341
    %v1358 = vadd.f32 %v1324, %v1342
    %v1359 = vadd.f32 %v1325, %v1343
    %v1360 = vadd.f32 %v1326, %v1344
    %v1361 = vadd.f32 %v1327, %v1345
    %v1362 = vadd.f32 %v1328, %v1346
    %v1363 = vadd.f32 %v1329, %v1347
    %v1364 = vadd.f32 %v1330, %v1348
    %v1365 = vadd.f32 %v1331, %v1349
    %v1366 = vadd.f32 %v1332, %v1350
    %v1367 = vadd.f32 %v1333, %v1351
    %v1368 = vadd.f32 %v1334, %v1352
    %v1369 = vadd.f32 %v1335, %v1353
    %v1370 = vadd.f32 %v1336, %v1354
    %v1371 = vadd.f32 %v1337, %v1355
    %s1372 = scalar_lea.vmem %s2, 192
    %v1373 = vld [vmem:[%s1372] sm:$0xff]
    %v1374 = vmul.f32 %v1216, %v1373
    %v1375 = vmul.f32 %v1217, %v1373
    %v1376 = vmul.f32 %v1218, %v1373
    %v1377 = vmul.f32 %v1219, %v1373
    %v1378 = vmul.f32 %v1220, %v1373
    %v1379 = vmul.f32 %v1221, %v1373
    %v1380 = vmul.f32 %v1222, %v1373
    %v1381 = vmul.f32 %v1223, %v1373
    %v1382 = vmul.f32 %v1228, %v1373
    %v1383 = vmul.f32 %v1229, %v1373
    %v1384 = vmul.f32 %v1230, %v1373
    %v1385 = vmul.f32 %v1231, %v1373
    %v1386 = vmul.f32 %v1232, %v1373
    %v1387 = vmul.f32 %v1233, %v1373
    %v1388 = vmul.f32 %v1234, %v1373
    %v1389 = vmul.f32 %v1235, %v1373
    %v1390 = vadd.f32 %v1356, %v1374
    %v1391 = vadd.f32 %v1357, %v1375
    %v1392 = vadd.f32 %v1358, %v1376
    %v1393 = vadd.f32 %v1359, %v1377
    %v1394 = vadd.f32 %v1360, %v1378
    %v1395 = vadd.f32 %v1361, %v1379
    %v1396 = vadd.f32 %v1362, %v1380
    %v1397 = vadd.f32 %v1363, %v1381
    %v1398 = vadd.f32 %v1364, %v1382
    %v1399 = vadd.f32 %v1365, %v1383
    %v1400 = vadd.f32 %v1366, %v1384
    %v1401 = vadd.f32 %v1367, %v1385
    %v1402 = vadd.f32 %v1368, %v1386
    %v1403 = vadd.f32 %v1369, %v1387
    %v1404 = vadd.f32 %v1370, %v1388
    %v1405 = vadd.f32 %v1371, %v1389
    %v1406 = vld [vmem:[%s3] sm:$0xff]
    %v1407 = vld [vmem:[%s3 + $0x8] sm:$0xff]
    %v1408 = vld [vmem:[%s3 + $0x10] sm:$0xff]
    %v1409 = vld [vmem:[%s3 + $0x18] sm:$0xff]
    %v1410 = vld [vmem:[%s3 + $0x20] sm:$0xff]
    %v1411 = vld [vmem:[%s3 + $0x28] sm:$0xff]
    %v1412 = vld [vmem:[%s3 + $0x30] sm:$0xff]
    %v1413 = vld [vmem:[%s3 + $0x38] sm:$0xff]
    %v1414 = vld [vmem:[%s3 + $0x40] sm:$0xff]
    %v1415 = vld [vmem:[%s3 + $0x48] sm:$0xff]
    %v1416 = vld [vmem:[%s3 + $0x50] sm:$0xff]
    %v1417 = vld [vmem:[%s3 + $0x58] sm:$0xff]
    %v1418 = vld [vmem:[%s3 + $0x60] sm:$0xff]
    %v1419 = vld [vmem:[%s3 + $0x68] sm:$0xff]
    %v1420 = vld [vmem:[%s3 + $0x70] sm:$0xff]
    %v1421 = vld [vmem:[%s3 + $0x78] sm:$0xff]
    %v1422 = vld [vmem:[%s4] sm:$0x1]
    %v1424 = vperm.slane %v1422, 0
    %1426 = vmatpush.msra.mxu0 %v1421
    %1427 = vmatpush.msra.mxu0 %v1420
    %1428 = vmatpush.msra.mxu0 %v1419
    %1429 = vmatpush.msra.mxu0 %v1418
    %1430 = vmatpush.msra.mxu0 %v1417
    %1431 = vmatpush.msra.mxu0 %v1416
    %1432 = vmatpush.msra.mxu0 %v1415
    %1433 = vmatpush.msra.mxu0 %v1414
    %1434 = vmatpush.msra.mxu0 %v1413
    %1435 = vmatpush.msra.mxu0 %v1412
    %1436 = vmatpush.msra.mxu0 %v1411
    %1437 = vmatpush.msra.mxu0 %v1410
    %1438 = vmatpush.msra.mxu0 %v1409
    %1439 = vmatpush.msra.mxu0 %v1408
    %1440 = vmatpush.msra.mxu0 %v1407
    %1441 = vmatpush.msra.mxu0 %v1406
    %1442 = vmatmul.f32.gmra.mxu0 %v1162
    %v1443 = vpop.f32.mrf.mxu0
    %v1444 = vadd.f32 %v1424, %v1443
    %1445 = vmatmul.f32.gmra.mxu0 %v1163
    %v1446 = vpop.f32.mrf.mxu0
    %v1447 = vadd.f32 %v1424, %v1446
    %1448 = vmatmul.f32.gmra.mxu0 %v1164
    %v1449 = vpop.f32.mrf.mxu0
    %v1450 = vadd.f32 %v1424, %v1449
    %1451 = vmatmul.f32.gmra.mxu0 %v1165
    %v1452 = vpop.f32.mrf.mxu0
    %v1453 = vadd.f32 %v1424, %v1452
    %1454 = vmatmul.f32.gmra.mxu0 %v1166
    %v1455 = vpop.f32.mrf.mxu0
    %v1456 = vadd.f32 %v1424, %v1455
    %1457 = vmatmul.f32.gmra.mxu0 %v1167
    %v1458 = vpop.f32.mrf.mxu0
    %v1459 = vadd.f32 %v1424, %v1458
    %1460 = vmatmul.f32.gmra.mxu0 %v1168
    %v1461 = vpop.f32.mrf.mxu0
    %v1462 = vadd.f32 %v1424, %v1461
    %1463 = vmatmul.f32.gmra.mxu0 %v1169
    %v1464 = vpop.f32.mrf.mxu0
    %v1465 = vadd.f32 %v1424, %v1464
    %1466 = vmatmul.f32.gmra.mxu0 %v1170
    %v1467 = vpop.f32.mrf.mxu0
    %v1468 = vadd.f32 %v1424, %v1467
    %1469 = vmatmul.f32.gmra.mxu0 %v1171
    %v1470 = vpop.f32.mrf.mxu0
    %v1471 = vadd.f32 %v1424, %v1470
    %1472 = vmatmul.f32.gmra.mxu0 %v1172
    %v1473 = vpop.f32.mrf.mxu0
    %v1474 = vadd.f32 %v1424, %v1473
    %1475 = vmatmul.f32.gmra.mxu0 %v1173
    %v1476 = vpop.f32.mrf.mxu0
    %v1477 = vadd.f32 %v1424, %v1476
    %1478 = vmatmul.f32.gmra.mxu0 %v1174
    %v1479 = vpop.f32.mrf.mxu0
    %v1480 = vadd.f32 %v1424, %v1479
    %1481 = vmatmul.f32.gmra.mxu0 %v1175
    %v1482 = vpop.f32.mrf.mxu0
    %v1483 = vadd.f32 %v1424, %v1482
    %1484 = vmatmul.f32.gmra.mxu0 %v1176
    %v1485 = vpop.f32.mrf.mxu0
    %v1486 = vadd.f32 %v1424, %v1485
    %1487 = vmatmul.f32.gmra.mxu0 %v1177
    %v1488 = vpop.f32.mrf.mxu0
    %v1489 = vadd.f32 %v1424, %v1488
    %1490 = vdwg.mxu0
    %v1491 = vld [vmem:[#allocation3] sm:$0xff]
    %v1492 = vld [vmem:[#allocation3 + $0x8] sm:$0xff]
    %v1493 = vld [vmem:[#allocation3 + $0x10] sm:$0xff]
    %v1494 = vld [vmem:[#allocation3 + $0x18] sm:$0xff]
    %v1495 = vld [vmem:[#allocation3 + $0x20] sm:$0xff]
    %v1496 = vld [vmem:[#allocation3 + $0x28] sm:$0xff]
    %v1497 = vld [vmem:[#allocation3 + $0x30] sm:$0xff]
    %v1498 = vld [vmem:[#allocation3 + $0x38] sm:$0xff]
    %v1499 = vld [vmem:[#allocation3 + $0x40] sm:$0xff]
    %v1500 = vld [vmem:[#allocation3 + $0x48] sm:$0xff]
    %v1501 = vld [vmem:[#allocation3 + $0x50] sm:$0xff]
    %v1502 = vld [vmem:[#allocation3 + $0x58] sm:$0xff]
    %v1503 = vld [vmem:[#allocation3 + $0x60] sm:$0xff]
    %v1504 = vld [vmem:[#allocation3 + $0x68] sm:$0xff]
    %v1505 = vld [vmem:[#allocation3 + $0x70] sm:$0xff]
    %v1506 = vld [vmem:[#allocation3 + $0x78] sm:$0xff]
    %v1507 = vld [vmem:[%s6] sm:$0x1]
    %v1509 = vperm.slane %v1507, 0
    %1511 = vmatpush.msra.mxu0 %v1506
    %1512 = vmatpush.msra.mxu0 %v1505
    %1513 = vmatpush.msra.mxu0 %v1504
    %1514 = vmatpush.msra.mxu0 %v1503
    %1515 = vmatpush.msra.mxu0 %v1502
    %1516 = vmatpush.msra.mxu0 %v1501
    %1517 = vmatpush.msra.mxu0 %v1500
    %1518 = vmatpush.msra.mxu0 %v1499
    %1519 = vmatpush.msra.mxu0 %v1498
    %1520 = vmatpush.msra.mxu0 %v1497
    %1521 = vmatpush.msra.mxu0 %v1496
    %1522 = vmatpush.msra.mxu0 %v1495
    %1523 = vmatpush.msra.mxu0 %v1494
    %1524 = vmatpush.msra.mxu0 %v1493
    %1525 = vmatpush.msra.mxu0 %v1492
    %1526 = vmatpush.msra.mxu0 %v1491
    %1527 = vmatmul.f32.gmra.mxu0 %v1390
    %v1528 = vpop.f32.mrf.mxu0
    %v1529 = vadd.f32 %v1509, %v1528
    %1530 = vmatmul.f32.gmra.mxu0 %v1391
    %v1531 = vpop.f32.mrf.mxu0
    %v1532 = vadd.f32 %v1509, %v1531
    %1533 = vmatmul.f32.gmra.mxu0 %v1392
    %v1534 = vpop.f32.mrf.mxu0
    %v1535 = vadd.f32 %v1509, %v1534
    %1536 = vmatmul.f32.gmra.mxu0 %v1393
    %v1537 = vpop.f32.mrf.mxu0
    %v1538 = vadd.f32 %v1509, %v1537
    %1539 = vmatmul.f32.gmra.mxu0 %v1394
    %v1540 = vpop.f32.mrf.mxu0
    %v1541 = vadd.f32 %v1509, %v1540
    %1542 = vmatmul.f32.gmra.mxu0 %v1395
    %v1543 = vpop.f32.mrf.mxu0
    %v1544 = vadd.f32 %v1509, %v1543
    %1545 = vmatmul.f32.gmra.mxu0 %v1396
    %v1546 = vpop.f32.mrf.mxu0
    %v1547 = vadd.f32 %v1509, %v1546
    %1548 = vmatmul.f32.gmra.mxu0 %v1397
    %v1549 = vpop.f32.mrf.mxu0
    %v1550 = vadd.f32 %v1509, %v1549
    %1551 = vmatmul.f32.gmra.mxu0 %v1398
    %v1552 = vpop.f32.mrf.mxu0
    %v1553 = vadd.f32 %v1509, %v1552
    %1554 = vmatmul.f32.gmra.mxu0 %v1399
    %v1555 = vpop.f32.mrf.mxu0
    %v1556 = vadd.f32 %v1509, %v1555
    %1557 = vmatmul.f32.gmra.mxu0 %v1400
    %v1558 = vpop.f32.mrf.mxu0
    %v1559 = vadd.f32 %v1509, %v1558
    %1560 = vmatmul.f32.gmra.mxu0 %v1401
    %v1561 = vpop.f32.mrf.mxu0
    %v1562 = vadd.f32 %v1509, %v1561
    %1563 = vmatmul.f32.gmra.mxu0 %v1402
    %v1564 = vpop.f32.mrf.mxu0
    %v1565 = vadd.f32 %v1509, %v1564
    %1566 = vmatmul.f32.gmra.mxu0 %v1403
    %v1567 = vpop.f32.mrf.mxu0
    %v1568 = vadd.f32 %v1509, %v1567
    %1569 = vmatmul.f32.gmra.mxu0 %v1404
    %v1570 = vpop.f32.mrf.mxu0
    %v1571 = vadd.f32 %v1509, %v1570
    %1572 = vmatmul.f32.gmra.mxu0 %v1405
    %v1573 = vpop.f32.mrf.mxu0
    %v1574 = vadd.f32 %v1509, %v1573
    %1575 = vdwg.mxu0
    %v1576 = vmax.f32 %v1444, 0.0
    %v1577 = vmax.f32 %v1447, 0.0
    %v1578 = vmax.f32 %v1450, 0.0
    %v1579 = vmax.f32 %v1453, 0.0
    %v1580 = vmax.f32 %v1456, 0.0
    %v1581 = vmax.f32 %v1459, 0.0
    %v1582 = vmax.f32 %v1462, 0.0
    %v1583 = vmax.f32 %v1465, 0.0
    %v1584 = vmax.f32 %v1468, 0.0
    %v1585 = vmax.f32 %v1471, 0.0
    %v1586 = vmax.f32 %v1474, 0.0
    %v1587 = vmax.f32 %v1477, 0.0
    %v1588 = vmax.f32 %v1480, 0.0
    %v1589 = vmax.f32 %v1483, 0.0
    %v1590 = vmax.f32 %v1486, 0.0
    %v1591 = vmax.f32 %v1489, 0.0
    %v1592 = vmax.f32 %v1529, 0.0
    %v1593 = vmax.f32 %v1532, 0.0
    %v1594 = vmax.f32 %v1535, 0.0
    %v1595 = vmax.f32 %v1538, 0.0
    %v1596 = vmax.f32 %v1541, 0.0
    %v1597 = vmax.f32 %v1544, 0.0
    %v1598 = vmax.f32 %v1547, 0.0
    %v1599 = vmax.f32 %v1550, 0.0
    %v1600 = vmax.f32 %v1553, 0.0
    %v1601 = vmax.f32 %v1556, 0.0
    %v1602 = vmax.f32 %v1559, 0.0
    %v1603 = vmax.f32 %v1562, 0.0
    %v1604 = vmax.f32 %v1565, 0.0
    %v1605 = vmax.f32 %v1568, 0.0
    %v1606 = vmax.f32 %v1571, 0.0
    %v1607 = vmax.f32 %v1574, 0.0
    %v1608 = vadd.f32 %v1576, %v1592
    %v1609 = vadd.f32 %v1577, %v1593
    %v1610 = vadd.f32 %v1578, %v1594
    %v1611 = vadd.f32 %v1579, %v1595
    %v1612 = vadd.f32 %v1580, %v1596
    %v1613 = vadd.f32 %v1581, %v1597
    %v1614 = vadd.f32 %v1582, %v1598
    %v1615 = vadd.f32 %v1583, %v1599
    %v1616 = vadd.f32 %v1584, %v1600
    %v1617 = vadd.f32 %v1585, %v1601
    %v1618 = vadd.f32 %v1586, %v1602
    %v1619 = vadd.f32 %v1587, %v1603
    %v1620 = vadd.f32 %v1588, %v1604
    %v1621 = vadd.f32 %v1589, %v1605
    %v1622 = vadd.f32 %v1590, %v1606
    %v1623 = vadd.f32 %v1591, %v1607
    %v1624 = vlaneseq
    %v1625 = vshrl.u32 %v1624, 7
    %vm1626 = vcmp.eq.s32.totalorder %v1625, 0
    %vm1627 = vcmp.eq.s32.totalorder %v1625, 7
    %v1628 = vrot.slane %v1608, 7
    %v1629 = vrot.slane %v1616, 7
    %v1630 = vsel %vm1626, 1, 0
    %vm1631 = vcmp.eq.s32.totalorder %v1630, 1
    %v1632 = vsel %vm1631, %v1608, %v1628
    %v1633 = vsel %vm1631, %v1616, %v1629
    %v1634 = vrot.slane %v1608, 1
    %v1635 = vrot.slane %v1616, 1
    %v1636 = vsel %vm1627, 1, 0
    %vm1637 = vcmp.eq.s32.totalorder %v1636, 1
    %v1638 = vsel %vm1637, %v1608, %v1634
    %v1639 = vsel %vm1637, %v1616, %v1635
    %v1640 = vmul.f32 %v1608, 0.75
    %v1641 = vmul.f32 %v1616, 0.75
    %v1642 = vmul.f32 %v1632, 0.25
    %v1643 = vmul.f32 %v1633, 0.25
    %v1644 = vadd.f32 %v1640, %v1642
    %v1645 = vadd.f32 %v1641, %v1643
    %1646 = vst [vmem:[%s7] sm:$0xff] %v1644
    %1647 = vst [vmem:[%s7 + $0x100] sm:$0xff] %v1645
    %v1648 = vmul.f32 %v1638, 0.25
    %v1649 = vmul.f32 %v1639, 0.25
    %v1650 = vadd.f32 %v1640, %v1648
    %v1651 = vadd.f32 %v1641, %v1649
    %1652 = vst [vmem:[%s7 + $0x8] sm:$0xff] %v1650
    %1653 = vst [vmem:[%s7 + $0x108] sm:$0xff] %v1651
    %v1654 = vmul.f32 %v1609, 0.75
    %v1655 = vmul.f32 %v1610, 0.75
    %v1656 = vmul.f32 %v1611, 0.75
    %v1657 = vmul.f32 %v1612, 0.75
    %v1658 = vmul.f32 %v1613, 0.75
    %v1659 = vmul.f32 %v1614, 0.75
    %v1660 = vmul.f32 %v1615, 0.75
    %v1661 = vmul.f32 %v1617, 0.75
    %v1662 = vmul.f32 %v1618, 0.75
    %v1663 = vmul.f32 %v1619, 0.75
    %v1664 = vmul.f32 %v1620, 0.75
    %v1665 = vmul.f32 %v1621, 0.75
    %v1666 = vmul.f32 %v1622, 0.75
    %v1667 = vmul.f32 %v1623, 0.75
    %v1668 = vmul.f32 %v1608, 0.25
    %v1669 = vmul.f32 %v1609, 0.25
    %v1670 = vmul.f32 %v1610, 0.25
    %v1671 = vmul.f32 %v1611, 0.25
    %v1672 = vmul.f32 %v1612, 0.25
    %v1673 = vmul.f32 %v1613, 0.25
    %v1674 = vmul.f32 %v1614, 0.25
    %v1675 = vmul.f32 %v1616, 0.25
    %v1676 = vmul.f32 %v1617, 0.25
    %v1677 = vmul.f32 %v1618, 0.25
    %v1678 = vmul.f32 %v1619, 0.25
    %v1679 = vmul.f32 %v1620, 0.25
    %v1680 = vmul.f32 %v1621, 0.25
    %v1681 = vmul.f32 %v1622, 0.25
    %v1682 = vadd.f32 %v1654, %v1668
    %v1683 = vadd.f32 %v1655, %v1669
    %v1684 = vadd.f32 %v1656, %v1670
    %v1685 = vadd.f32 %v1657, %v1671
    %v1686 = vadd.f32 %v1658, %v1672
    %v1687 = vadd.f32 %v1659, %v1673
    %v1688 = vadd.f32 %v1660, %v1674
    %v1689 = vadd.f32 %v1661, %v1675
    %v1690 = vadd.f32 %v1662, %v1676
    %v1691 = vadd.f32 %v1663, %v1677
    %v1692 = vadd.f32 %v1664, %v1678
    %v1693 = vadd.f32 %v1665, %v1679
    %v1694 = vadd.f32 %v1666, %v1680
    %v1695 = vadd.f32 %v1667, %v1681
    %v1696 = vrot.slane %v1682, 7
    %v1697 = vrot.slane %v1683, 7
    %v1698 = vrot.slane %v1684, 7
    %v1699 = vrot.slane %v1685, 7
    %v1700 = vrot.slane %v1686, 7
    %v1701 = vrot.slane %v1687, 7
    %v1702 = vrot.slane %v1688, 7
    %v1703 = vrot.slane %v1689, 7
    %v1704 = vrot.slane %v1690, 7
    %v1705 = vrot.slane %v1691, 7
    %v1706 = vrot.slane %v1692, 7
    %v1707 = vrot.slane %v1693, 7
    %v1708 = vrot.slane %v1694, 7
    %v1709 = vrot.slane %v1695, 7
    %v1710 = vsel %vm1631, %v1682, %v1696
    %v1711 = vsel %vm1631, %v1683, %v1697
    %v1712 = vsel %vm1631, %v1684, %v1698
    %v1713 = vsel %vm1631, %v1685, %v1699
    %v1714 = vsel %vm1631, %v1686, %v1700
    %v1715 = vsel %vm1631, %v1687, %v1701
    %v1716 = vsel %vm1631, %v1688, %v1702
    %v1717 = vsel %vm1631, %v1689, %v1703
    %v1718 = vsel %vm1631, %v1690, %v1704
    %v1719 = vsel %vm1631, %v1691, %v1705
    %v1720 = vsel %vm1631, %v1692, %v1706
    %v1721 = vsel %vm1631, %v1693, %v1707
    %v1722 = vsel %vm1631, %v1694, %v1708
    %v1723 = vsel %vm1631, %v1695, %v1709
    %v1724 = vrot.slane %v1682, 1
    %v1725 = vrot.slane %v1683, 1
    %v1726 = vrot.slane %v1684, 1
    %v1727 = vrot.slane %v1685, 1
    %v1728 = vrot.slane %v1686, 1
    %v1729 = vrot.slane %v1687, 1
    %v1730 = vrot.slane %v1688, 1
    %v1731 = vrot.slane %v1689, 1
    %v1732 = vrot.slane %v1690, 1
    %v1733 = vrot.slane %v1691, 1
    %v1734 = vrot.slane %v1692, 1
    %v1735 = vrot.slane %v1693, 1
    %v1736 = vrot.slane %v1694, 1
    %v1737 = vrot.slane %v1695, 1
    %v1738 = vsel %vm1637, %v1682, %v1724
    %v1739 = vsel %vm1637, %v1683, %v1725
    %v1740 = vsel %vm1637, %v1684, %v1726
    %v1741 = vsel %vm1637, %v1685, %v1727
    %v1742 = vsel %vm1637, %v1686, %v1728
    %v1743 = vsel %vm1637, %v1687, %v1729
    %v1744 = vsel %vm1637, %v1688, %v1730
    %v1745 = vsel %vm1637, %v1689, %v1731
    %v1746 = vsel %vm1637, %v1690, %v1732
    %v1747 = vsel %vm1637, %v1691, %v1733
    %v1748 = vsel %vm1637, %v1692, %v1734
    %v1749 = vsel %vm1637, %v1693, %v1735
    %v1750 = vsel %vm1637, %v1694, %v1736
    %v1751 = vsel %vm1637, %v1695, %v1737
    %v1752 = vmul.f32 %v1682, 0.75
    %v1753 = vmul.f32 %v1683, 0.75
    %v1754 = vmul.f32 %v1684, 0.75
    %v1755 = vmul.f32 %v1685, 0.75
    %v1756 = vmul.f32 %v1686, 0.75
    %v1757 = vmul.f32 %v1687, 0.75
    %v1758 = vmul.f32 %v1688, 0.75
    %v1759 = vmul.f32 %v1689, 0.75
    %v1760 = vmul.f32 %v1690, 0.75
    %v1761 = vmul.f32 %v1691, 0.75
    %v1762 = vmul.f32 %v1692, 0.75
    %v1763 = vmul.f32 %v1693, 0.75
    %v1764 = vmul.f32 %v1694, 0.75
    %v1765 = vmul.f32 %v1695, 0.75
    %v1766 = vmul.f32 %v1710, 0.25
    %v1767 = vmul.f32 %v1711, 0.25
    %v1768 = vmul.f32 %v1712, 0.25
    %v1769 = vmul.f32 %v1713, 0.25
    %v1770 = vmul.f32 %v1714, 0.25
    %v1771 = vmul.f32 %v1715, 0.25
    %v1772 = vmul.f32 %v1716, 0.25
    %v1773 = vmul.f32 %v1717, 0.25
    %v1774 = vmul.f32 %v1718, 0.25
    %v1775 = vmul.f32 %v1719, 0.25
    %v1776 = vmul.f32 %v1720, 0.25
    %v1777 = vmul.f32 %v1721, 0.25
    %v1778 = vmul.f32 %v1722, 0.25
    %v1779 = vmul.f32 %v1723, 0.25
    %v1780 = vadd.f32 %v1752, %v1766
    %v1781 = vadd.f32 %v1753, %v1767
    %v1782 = vadd.f32 %v1754, %v1768
    %v1783 = vadd.f32 %v1755, %v1769
    %v1784 = vadd.f32 %v1756, %v1770
    %v1785 = vadd.f32 %v1757, %v1771
    %v1786 = vadd.f32 %v1758, %v1772
    %v1787 = vadd.f32 %v1759, %v1773
    %v1788 = vadd.f32 %v1760, %v1774
    %v1789 = vadd.f32 %v1761, %v1775
    %v1790 = vadd.f32 %v1762, %v1776
    %v1791 = vadd.f32 %v1763, %v1777
    %v1792 = vadd.f32 %v1764, %v1778
    %v1793 = vadd.f32 %v1765, %v1779
    %s1794 = scalar_lea.vmem %s7, 32
    %1795 = vst [vmem:[%s1794] sm:$0xff] %v1780
    %1796 = vst [vmem:[%s1794 + $0x20] sm:$0xff] %v1781
    %1797 = vst [vmem:[%s1794 + $0x40] sm:$0xff] %v1782
    %1798 = vst [vmem:[%s1794 + $0x60] sm:$0xff] %v1783
    %1799 = vst [vmem:[%s1794 + $0x80] sm:$0xff] %v1784
    %1800 = vst [vmem:[%s1794 + $0xa0] sm:$0xff] %v1785
    %1801 = vst [vmem:[%s1794 + $0xc0] sm:$0xff] %v1786
    %1802 = vst [vmem:[%s1794 + $0x100] sm:$0xff] %v1787
    %1803 = vst [vmem:[%s1794 + $0x120] sm:$0xff] %v1788
    %1804 = vst [vmem:[%s1794 + $0x140] sm:$0xff] %v1789
    %1805 = vst [vmem:[%s1794 + $0x160] sm:$0xff] %v1790
    %1806 = vst [vmem:[%s1794 + $0x180] sm:$0xff] %v1791
    %1807 = vst [vmem:[%s1794 + $0x1a0] sm:$0xff] %v1792
    %1808 = vst [vmem:[%s1794 + $0x1c0] sm:$0xff] %v1793
    %v1809 = vmul.f32 %v1738, 0.25
    %v1810 = vmul.f32 %v1739, 0.25
    %v1811 = vmul.f32 %v1740, 0.25
    %v1812 = vmul.f32 %v1741, 0.25
    %v1813 = vmul.f32 %v1742, 0.25
    %v1814 = vmul.f32 %v1743, 0.25
    %v1815 = vmul.f32 %v1744, 0.25
    %v1816 = vmul.f32 %v1745, 0.25
    %v1817 = vmul.f32 %v1746, 0.25
    %v1818 = vmul.f32 %v1747, 0.25
    %v1819 = vmul.f32 %v1748, 0.25
    %v1820 = vmul.f32 %v1749, 0.25
    %v1821 = vmul.f32 %v1750, 0.25
    %v1822 = vmul.f32 %v1751, 0.25
    %v1823 = vadd.f32 %v1752, %v1809
    %v1824 = vadd.f32 %v1753, %v1810
    %v1825 = vadd.f32 %v1754, %v1811
    %v1826 = vadd.f32 %v1755, %v1812
    %v1827 = vadd.f32 %v1756, %v1813
    %v1828 = vadd.f32 %v1757, %v1814
    %v1829 = vadd.f32 %v1758, %v1815
    %v1830 = vadd.f32 %v1759, %v1816
    %v1831 = vadd.f32 %v1760, %v1817
    %v1832 = vadd.f32 %v1761, %v1818
    %v1833 = vadd.f32 %v1762, %v1819
    %v1834 = vadd.f32 %v1763, %v1820
    %v1835 = vadd.f32 %v1764, %v1821
    %v1836 = vadd.f32 %v1765, %v1822
    %1837 = vst [vmem:[%s1794 + $0x8] sm:$0xff] %v1823
    %1838 = vst [vmem:[%s1794 + $0x28] sm:$0xff] %v1824
    %1839 = vst [vmem:[%s1794 + $0x48] sm:$0xff] %v1825
    %1840 = vst [vmem:[%s1794 + $0x68] sm:$0xff] %v1826
    %1841 = vst [vmem:[%s1794 + $0x88] sm:$0xff] %v1827
    %1842 = vst [vmem:[%s1794 + $0xa8] sm:$0xff] %v1828
    %1843 = vst [vmem:[%s1794 + $0xc8] sm:$0xff] %v1829
    %1844 = vst [vmem:[%s1794 + $0x108] sm:$0xff] %v1830
    %1845 = vst [vmem:[%s1794 + $0x128] sm:$0xff] %v1831
    %1846 = vst [vmem:[%s1794 + $0x148] sm:$0xff] %v1832
    %1847 = vst [vmem:[%s1794 + $0x168] sm:$0xff] %v1833
    %1848 = vst [vmem:[%s1794 + $0x188] sm:$0xff] %v1834
    %1849 = vst [vmem:[%s1794 + $0x1a8] sm:$0xff] %v1835
    %1850 = vst [vmem:[%s1794 + $0x1c8] sm:$0xff] %v1836
    %v1851 = vmul.f32 %v1615, 0.25
    %v1852 = vmul.f32 %v1623, 0.25
    %v1853 = vadd.f32 %v1640, %v1669
    %v1854 = vadd.f32 %v1654, %v1670
    %v1855 = vadd.f32 %v1655, %v1671
    %v1856 = vadd.f32 %v1656, %v1672
    %v1857 = vadd.f32 %v1657, %v1673
    %v1858 = vadd.f32 %v1658, %v1674
    %v1859 = vadd.f32 %v1659, %v1851
    %v1860 = vadd.f32 %v1641, %v1676
    %v1861 = vadd.f32 %v1661, %v1677
    %v1862 = vadd.f32 %v1662, %v1678
    %v1863 = vadd.f32 %v1663, %v1679
    %v1864 = vadd.f32 %v1664, %v1680
    %v1865 = vadd.f32 %v1665, %v1681
    %v1866 = vadd.f32 %v1666, %v1852
    %v1867 = vrot.slane %v1853, 7
    %v1868 = vrot.slane %v1854, 7
    %v1869 = vrot.slane %v1855, 7
    %v1870 = vrot.slane %v1856, 7
    %v1871 = vrot.slane %v1857, 7
    %v1872 = vrot.slane %v1858, 7
    %v1873 = vrot.slane %v1859, 7
    %v1874 = vrot.slane %v1860, 7
    %v1875 = vrot.slane %v1861, 7
    %v1876 = vrot.slane %v1862, 7
    %v1877 = vrot.slane %v1863, 7
    %v1878 = vrot.slane %v1864, 7
    %v1879 = vrot.slane %v1865, 7
    %v1880 = vrot.slane %v1866, 7
    %v1881 = vsel %vm1631, %v1853, %v1867
    %v1882 = vsel %vm1631, %v1854, %v1868
    %v1883 = vsel %vm1631, %v1855, %v1869
    %v1884 = vsel %vm1631, %v1856, %v1870
    %v1885 = vsel %vm1631, %v1857, %v1871
    %v1886 = vsel %vm1631, %v1858, %v1872
    %v1887 = vsel %vm1631, %v1859, %v1873
    %v1888 = vsel %vm1631, %v1860, %v1874
    %v1889 = vsel %vm1631, %v1861, %v1875
    %v1890 = vsel %vm1631, %v1862, %v1876
    %v1891 = vsel %vm1631, %v1863, %v1877
    %v1892 = vsel %vm1631, %v1864, %v1878
    %v1893 = vsel %vm1631, %v1865, %v1879
    %v1894 = vsel %vm1631, %v1866, %v1880
    %v1895 = vrot.slane %v1853, 1
    %v1896 = vrot.slane %v1854, 1
    %v1897 = vrot.slane %v1855, 1
    %v1898 = vrot.slane %v1856, 1
    %v1899 = vrot.slane %v1857, 1
    %v1900 = vrot.slane %v1858, 1
    %v1901 = vrot.slane %v1859, 1
    %v1902 = vrot.slane %v1860, 1
    %v1903 = vrot.slane %v1861, 1
    %v1904 = vrot.slane %v1862, 1
    %v1905 = vrot.slane %v1863, 1
    %v1906 = vrot.slane %v1864, 1
    %v1907 = vrot.slane %v1865, 1
    %v1908 = vrot.slane %v1866, 1
    %v1909 = vsel %vm1637, %v1853, %v1895
    %v1910 = vsel %vm1637, %v1854, %v1896
    %v1911 = vsel %vm1637, %v1855, %v1897
    %v1912 = vsel %vm1637, %v1856, %v1898
    %v1913 = vsel %vm1637, %v1857, %v1899
    %v1914 = vsel %vm1637, %v1858, %v1900
    %v1915 = vsel %vm1637, %v1859, %v1901
    %v1916 = vsel %vm1637, %v1860, %v1902
    %v1917 = vsel %vm1637, %v1861, %v1903
    %v1918 = vsel %vm1637, %v1862, %v1904
    %v1919 = vsel %vm1637, %v1863, %v1905
    %v1920 = vsel %vm1637, %v1864, %v1906
    %v1921 = vsel %vm1637, %v1865, %v1907
    %v1922 = vsel %vm1637, %v1866, %v1908
    %v1923 = vmul.f32 %v1853, 0.75
    %v1924 = vmul.f32 %v1854, 0.75
    %v1925 = vmul.f32 %v1855, 0.75
    %v1926 = vmul.f32 %v1856, 0.75
    %v1927 = vmul.f32 %v1857, 0.75
    %v1928 = vmul.f32 %v1858, 0.75
    %v1929 = vmul.f32 %v1859, 0.75
    %v1930 = vmul.f32 %v1860, 0.75
    %v1931 = vmul.f32 %v1861, 0.75
    %v1932 = vmul.f32 %v1862, 0.75
    %v1933 = vmul.f32 %v1863, 0.75
    %v1934 = vmul.f32 %v1864, 0.75
    %v1935 = vmul.f32 %v1865, 0.75
    %v1936 = vmul.f32 %v1866, 0.75
    %v1937 = vmul.f32 %v1881, 0.25
    %v1938 = vmul.f32 %v1882, 0.25
    %v1939 = vmul.f32 %v1883, 0.25
    %v1940 = vmul.f32 %v1884, 0.25
    %v1941 = vmul.f32 %v1885, 0.25
    %v1942 = vmul.f32 %v1886, 0.25
    %v1943 = vmul.f32 %v1887, 0.25
    %v1944 = vmul.f32 %v1888, 0.25
    %v1945 = vmul.f32 %v1889, 0.25
    %v1946 = vmul.f32 %v1890, 0.25
    %v1947 = vmul.f32 %v1891, 0.25
    %v1948 = vmul.f32 %v1892, 0.25
    %v1949 = vmul.f32 %v1893, 0.25
    %v1950 = vmul.f32 %v1894, 0.25
    %v1951 = vadd.f32 %v1923, %v1937
    %v1952 = vadd.f32 %v1924, %v1938
    %v1953 = vadd.f32 %v1925, %v1939
    %v1954 = vadd.f32 %v1926, %v1940
    %v1955 = vadd.f32 %v1927, %v1941
    %v1956 = vadd.f32 %v1928, %v1942
    %v1957 = vadd.f32 %v1929, %v1943
    %v1958 = vadd.f32 %v1930, %v1944
    %v1959 = vadd.f32 %v1931, %v1945
    %v1960 = vadd.f32 %v1932, %v1946
    %v1961 = vadd.f32 %v1933, %v1947
    %v1962 = vadd.f32 %v1934, %v1948
    %v1963 = vadd.f32 %v1935, %v1949
    %v1964 = vadd.f32 %v1936, %v1950
    %s1965 = scalar_lea.vmem %s7, 16
    %1966 = vst [vmem:[%s1965] sm:$0xff] %v1951
    %1967 = vst [vmem:[%s1965 + $0x20] sm:$0xff] %v1952
    %1968 = vst [vmem:[%s1965 + $0x40] sm:$0xff] %v1953
    %1969 = vst [vmem:[%s1965 + $0x60] sm:$0xff] %v1954
    %1970 = vst [vmem:[%s1965 + $0x80] sm:$0xff] %v1955
    %1971 = vst [vmem:[%s1965 + $0xa0] sm:$0xff] %v1956
    %1972 = vst [vmem:[%s1965 + $0xc0] sm:$0xff] %v1957
    %1973 = vst [vmem:[%s1965 + $0x100] sm:$0xff] %v1958
    %1974 = vst [vmem:[%s1965 + $0x120] sm:$0xff] %v1959
    %1975 = vst [vmem:[%s1965 + $0x140] sm:$0xff] %v1960
    %1976 = vst [vmem:[%s1965 + $0x160] sm:$0xff] %v1961
    %1977 = vst [vmem:[%s1965 + $0x180] sm:$0xff] %v1962
    %1978 = vst [vmem:[%s1965 + $0x1a0] sm:$0xff] %v1963
    %1979 = vst [vmem:[%s1965 + $0x1c0] sm:$0xff] %v1964
    %v1980 = vmul.f32 %v1909, 0.25
    %v1981 = vmul.f32 %v1910, 0.25
    %v1982 = vmul.f32 %v1911, 0.25
    %v1983 = vmul.f32 %v1912, 0.25
    %v1984 = vmul.f32 %v1913, 0.25
    %v1985 = vmul.f32 %v1914, 0.25
    %v1986 = vmul.f32 %v1915, 0.25
    %v1987 = vmul.f32 %v1916, 0.25
    %v1988 = vmul.f32 %v1917, 0.25
    %v1989 = vmul.f32 %v1918, 0.25
    %v1990 = vmul.f32 %v1919, 0.25
    %v1991 = vmul.f32 %v1920, 0.25
    %v1992 = vmul.f32 %v1921, 0.25
    %v1993 = vmul.f32 %v1922, 0.25
    %v1994 = vadd.f32 %v1923, %v1980
    %v1995 = vadd.f32 %v1924, %v1981
    %v1996 = vadd.f32 %v1925, %v1982
    %v1997 = vadd.f32 %v1926, %v1983
    %v1998 = vadd.f32 %v1927, %v1984
    %v1999 = vadd.f32 %v1928, %v1985
    %v2000 = vadd.f32 %v1929, %v1986
    %v2001 = vadd.f32 %v1930, %v1987
    %v2002 = vadd.f32 %v1931, %v1988
    %v2003 = vadd.f32 %v1932, %v1989
    %v2004 = vadd.f32 %v1933, %v1990
    %v2005 = vadd.f32 %v1934, %v1991
    %v2006 = vadd.f32 %v1935, %v1992
    %v2007 = vadd.f32 %v1936, %v1993
    %2008 = vst [vmem:[%s1965 + $0x8] sm:$0xff] %v1994
    %2009 = vst [vmem:[%s1965 + $0x28] sm:$0xff] %v1995
    %2010 = vst [vmem:[%s1965 + $0x48] sm:$0xff] %v1996
    %2011 = vst [vmem:[%s1965 + $0x68] sm:$0xff] %v1997
    %2012 = vst [vmem:[%s1965 + $0x88] sm:$0xff] %v1998
    %2013 = vst [vmem:[%s1965 + $0xa8] sm:$0xff] %v1999
    %2014 = vst [vmem:[%s1965 + $0xc8] sm:$0xff] %v2000
    %2015 = vst [vmem:[%s1965 + $0x108] sm:$0xff] %v2001
    %2016 = vst [vmem:[%s1965 + $0x128] sm:$0xff] %v2002
    %2017 = vst [vmem:[%s1965 + $0x148] sm:$0xff] %v2003
    %2018 = vst [vmem:[%s1965 + $0x168] sm:$0xff] %v2004
    %2019 = vst [vmem:[%s1965 + $0x188] sm:$0xff] %v2005
    %2020 = vst [vmem:[%s1965 + $0x1a8] sm:$0xff] %v2006
    %2021 = vst [vmem:[%s1965 + $0x1c8] sm:$0xff] %v2007
    %v2022 = vrot.slane %v1615, 7
    %v2023 = vrot.slane %v1623, 7
    %v2024 = vsel %vm1631, %v1615, %v2022
    %v2025 = vsel %vm1631, %v1623, %v2023
    %v2026 = vrot.slane %v1615, 1
    %v2027 = vrot.slane %v1623, 1
    %v2028 = vsel %vm1637, %v1615, %v2026
    %v2029 = vsel %vm1637, %v1623, %v2027
    %v2030 = vmul.f32 %v2024, 0.25
    %v2031 = vmul.f32 %v2025, 0.25
    %v2032 = vadd.f32 %v1660, %v2030
    %v2033 = vadd.f32 %v1667, %v2031
    %s2034 = scalar_lea.vmem %s7, 240
    %2035 = vst [vmem:[%s2034] sm:$0xff] %v2032
    %2036 = vst [vmem:[%s2034 + $0x100] sm:$0xff] %v2033
    %v2037 = vmul.f32 %v2028, 0.25
    %v2038 = vmul.f32 %v2029, 0.25
    %v2039 = vadd.f32 %v1660, %v2037
    %v2040 = vadd.f32 %v1667, %v2038
    %2041 = vst [vmem:[%s2034 + $0x8] sm:$0xff] %v2039
    %2042 = vst [vmem:[%s2034 + $0x108] sm:$0xff] %v2040
    // Predicated region
    $region34: #{complex_upsample_pallas.1} parent=1 // pred_check
      _
    $region35: #{complex_upsample_pallas.1} parent=1 // pred_check_branch
      %2044 = sbr.rel (0) target = $region37
    $region36: #{complex_upsample_pallas.1} parent=1 // pred_region
      _
    $region37: #{complex_upsample_pallas.1} parent=1 // pred_fallthru
      _
    // Predicated region
    $region38: #{complex_upsample_pallas.1} parent=1 // pred_check
      _
    $region39: #{complex_upsample_pallas.1} parent=1 // pred_check_branch
      %2046 = sbr.rel (0) target = $region41
    $region40: #{complex_upsample_pallas.1} parent=1 // pred_region
      _
    $region41: #{complex_upsample_pallas.1} parent=1 // pred_fallthru
      _
    %2047 = vsyncpa [#allocation4], 1

</llo_original>
